<compile_context>
chip_gen: v7x
topology: tpu7x:2x2x1
jax: 0.10.0
libtpu: 0.0.40
codegen_flags: <defaults>
</compile_context>

<pallas_src>
import functools

import jax
import jax.numpy as jnp
from jax import lax
from jax.experimental import pallas as pl
from jax.experimental.pallas import tpu as pltpu

LANE = 128


def _round_up(x, m):
    return (x + m - 1) // m * m


def _largest_divisor_leq(n, cap):
    cap = max(1, min(n, cap))
    for d in range(cap, 0, -1):
        if n % d == 0:
            return d
    return 1


# ----------------------------- kernels --------------------------------------

def _folded_kernel(x_ref, w_ref, o_ref, *, K, TH, W_out):
    """Depthwise + pointwise folded into K^2 MXU matmuls (small-channel path).

    x_ref: (1, TH+K-1, Wp, Cp)   halo'd NHWC input rows
    w_ref: (K*K, Cp, Coutp)      W_tap[kh*K+kw] = diag(dw[kh,kw]) @ pw
    o_ref: (1, TH, W_out, Coutp)
    """
    x = x_ref[...][0]                                    # (TH+K-1, Wp, Cp)
    thw = TH * W_out
    coutp = w_ref.shape[-1]
    acc = jnp.zeros((thw, coutp), dtype=jnp.float32)
    for kh in range(K):
        xh = x[kh:kh + TH]                               # outer-dim slice (free)
        for kw in range(K):
            win = xh[:, kw:kw + W_out, :]                # (TH, W_out, Cp)
            win2 = win.reshape(thw, win.shape[-1])       # layout-free if W_out%8==0
            acc = acc + jnp.dot(win2, w_ref[kh * K + kw],
                                preferred_element_type=jnp.float32)
    o_ref[...] = acc.reshape(1, TH, W_out, coutp).astype(o_ref.dtype)


def _two_stage_kernel(x_ref, dw_ref, pw_ref, o_ref, *, K, TH, W_out):
    """VPU depthwise taps + one MXU pointwise matmul (large-channel path).

    x_ref : (1, TH+K-1, Wp, Cp)
    dw_ref: (K*K, Cp)
    pw_ref: (Cp, Coutp)
    o_ref : (1, TH, W_out, Coutp)
    """
    x = x_ref[...][0]                                    # (TH+K-1, Wp, Cp)
    dw = dw_ref[...]                                     # load once, hoisted
    cp = x.shape[-1]
    acc = jnp.zeros((TH, W_out, cp), dtype=jnp.float32)
    for kh in range(K):
        xh = x[kh:kh + TH]
        for kw in range(K):
            acc = acc + xh[:, kw:kw + W_out, :].astype(jnp.float32) * dw[kh * K + kw]
    y = jnp.dot(acc.reshape(TH * W_out, cp), pw_ref[...],
                preferred_element_type=jnp.float32)
    o_ref[...] = y.reshape(1, TH, W_out, y.shape[-1]).astype(o_ref.dtype)


# ----------------------------- pallas_call glue ------------------------------

def _run_pallas(x_pad, weights, *, K, H_out, W_out, Coutp, out_dtype,
                folded, row_tiled):
    N, Hp, Wp, Cp = x_pad.shape
    in_bytes = x_pad.dtype.itemsize
    out_bytes = jnp.dtype(out_dtype).itemsize

    if row_tiled:
        # Largest divisor of H_out whose double-buffered footprint fits a budget
        # that is safe on every generation; prefer >=2 row tiles so the
        # auto-pipeliner has steps to hide the HBM<->VMEM DMAs behind.
        budget = 8 * 1024 * 1024
        per_row = 2 * Wp * Cp * in_bytes + 2 * W_out * Coutp * out_bytes
        cap = max(1, budget // per_row)
        if H_out >= 16:
            cap = min(cap, H_out // 2)
        TH = _largest_divisor_leq(H_out, min(cap, 64))
    else:
        TH = H_out
    TH_in = TH + K - 1
    n_h = H_out // TH

    if row_tiled:
        grid = (N, n_h)
        # Element-indexed H dim: index_map returns an *element* offset (h*TH) so
        # consecutive input windows overlap by the K-1 row halo.
        x_spec = pl.BlockSpec((1, pl.Element(TH_in), Wp, Cp),
                              lambda n, h: (n, h * TH, 0, 0))
        out_spec = pl.BlockSpec((1, TH, W_out, Coutp),
                                lambda n, h: (n, h, 0, 0))
        w_specs = [pl.BlockSpec(w.shape, lambda n, h, nd=w.ndim: (0,) * nd)
                   for w in weights]
        dims = ("parallel", "parallel")
    else:
        grid = (N,)
        x_spec = pl.BlockSpec((1, Hp, Wp, Cp), lambda n: (n, 0, 0, 0))
        out_spec = pl.BlockSpec((1, TH, W_out, Coutp), lambda n: (n, 0, 0, 0))
        w_specs = [pl.BlockSpec(w.shape, lambda n, nd=w.ndim: (0,) * nd)
                   for w in weights]
        dims = ("parallel",)

    if folded:
        kernel = functools.partial(_folded_kernel, K=K, TH=TH, W_out=W_out)
        flops = 2 * N * H_out * W_out * K * K * Cp * Coutp
    else:
        kernel = functools.partial(_two_stage_kernel, K=K, TH=TH, W_out=W_out)
        flops = 2 * N * H_out * W_out * (K * K * Cp + Cp * Coutp)

    weight_bytes = sum(int(w.size) * w.dtype.itemsize for w in weights)
    bytes_accessed = (int(x_pad.size) * in_bytes + weight_bytes
                      + N * H_out * W_out * Coutp * out_bytes)

    # Double-buffered working set -> scoped VMEM request (v5e default is only
    # 16 MiB; v7x physical is 64 MiB -- stay comfortably inside both).
    vmem_needed = (2 * TH_in * Wp * Cp * in_bytes
                   + 2 * TH * W_out * Coutp * out_bytes
                   + 2 * weight_bytes + (2 << 20))
    vmem_limit = int(min(max(vmem_needed, 32 << 20), 64 << 20))

    return pl.pallas_call(
        kernel,
        out_shape=jax.ShapeDtypeStruct((N, H_out, W_out, Coutp), out_dtype),
        grid_spec=pltpu.PrefetchScalarGridSpec(
            num_scalar_prefetch=0,
            grid=grid,
            in_specs=[x_spec] + w_specs,
            out_specs=out_spec),
        compiler_params=pltpu.CompilerParams(
            dimension_semantics=dims,
            vmem_limit_bytes=vmem_limit),
        cost_estimate=pl.CostEstimate(
            flops=int(flops), transcendentals=0,
            bytes_accessed=int(bytes_accessed)),
    )(x_pad, *weights)


def depthwise_separable_conv2d(x_nchw, dw_weight, pw_weight, *, padding=0):
    """Matches DepthWiseConv2d.forward (stride=1, dilation=1, bias=False).

    x_nchw:    (N, Cin, H, W)
    dw_weight: (Cin, 1, K, K)    PyTorch depthwise conv weight
    pw_weight: (Cout, Cin, 1, 1) PyTorch pointwise conv weight
    returns:   (N, Cout, H_out, W_out)
    """
    # TODO(synk): stride > 1 / dilation > 1 variants not implemented (module defaults are 1).
    N, Cin, H, W = x_nchw.shape
    K = dw_weight.shape[-1]
    Cout = pw_weight.shape[0]
    H_out = H + 2 * padding - K + 1
    W_out = W + 2 * padding - K + 1

    Cp = _round_up(Cin, LANE)
    Coutp = _round_up(Cout, LANE)

    # Glue: NCHW -> NHWC; one pad call does both the spatial zero-padding and the
    # channel zero-padding to a lane-dense multiple of 128.
    x_nhwc = jnp.transpose(x_nchw, (0, 2, 3, 1))
    x_pad = jnp.pad(x_nhwc, ((0, 0), (padding, padding), (padding, padding),
                             (0, Cp - Cin)))

    dw = jnp.transpose(dw_weight[:, 0, :, :], (1, 2, 0)).reshape(K * K, Cin)
    dw = jnp.pad(dw.astype(jnp.float32), ((0, 0), (0, Cp - Cin)))        # (K*K, Cp)
    pw = jnp.transpose(pw_weight[:, :, 0, 0], (1, 0)).astype(jnp.float32)
    pw = jnp.pad(pw, ((0, Cp - Cin), (0, Coutp - Cout)))                 # (Cp, Coutp)

    folded = max(Cin, Cout) <= 64
    if folded:
        weights = (dw[:, :, None] * pw[None, :, :],)                     # (K*K, Cp, Coutp)
    else:
        weights = (dw, pw)

    kwargs = dict(K=K, H_out=H_out, W_out=W_out, Coutp=Coutp,
                  out_dtype=x_nchw.dtype, folded=folded)
    try:
        out = _run_pallas(x_pad, weights, row_tiled=True, **kwargs)
    except Exception:
        # Safety net: if Element-indexed (halo'd) row tiling is unsupported by
        # this JAX/Mosaic build, fall back to whole-image blocked tiles.
        out = _run_pallas(x_pad, weights, row_tiled=False, **kwargs)

    out = out[..., :Cout]                       # drop Cout lane padding
    return jnp.transpose(out, (0, 3, 1, 2))     # NHWC -> NCHW


# ----------------------------- test harness ----------------------------------

def _reference(x, dw_w, pw_w, padding):
    Cin = x.shape[1]
    y = lax.conv_general_dilated(
        x, dw_w, window_strides=(1, 1),
        padding=((padding, padding), (padding, padding)),
        dimension_numbers=("NCHW", "OIHW", "NCHW"),
        feature_group_count=Cin,
        precision=lax.Precision.HIGHEST)
    return lax.conv_general_dilated(
        y, pw_w, window_strides=(1, 1), padding="VALID",
        dimension_numbers=("NCHW", "OIHW", "NCHW"),
        precision=lax.Precision.HIGHEST)


if __name__ == "__main__":
    key = jax.random.PRNGKey(0)

    configs = [
        # (N, Cin, Cout, H, W, K, padding)
        (2, 4, 8, 16, 16, 3, 1),      # small channels -> folded MXU path (main case)
        (1, 128, 128, 16, 16, 3, 1),  # lane-sized channels -> two-stage path
        (2, 4, 8, 16, 16, 1, 0),      # module defaults: kernel_size=1, padding=0
    ]
    for (N, Cin, Cout, H, W, K, padding) in configs:
        k1, k2, k3, key = jax.random.split(key, 4)
        x = jax.random.normal(k1, (N, Cin, H, W), dtype=jnp.float32)
        dw_w = jax.random.normal(k2, (Cin, 1, K, K), dtype=jnp.float32) * 0.1
        pw_w = jax.random.normal(k3, (Cout, Cin, 1, 1), dtype=jnp.float32) * 0.1

        out = depthwise_separable_conv2d(x, dw_w, pw_w, padding=padding)
        out = jax.block_until_ready(out)

        ref = _reference(x, dw_w, pw_w, padding)
        assert out.shape == ref.shape, (out.shape, ref.shape)
        max_err = float(jnp.max(jnp.abs(out - ref)))
        assert jnp.allclose(out, ref, atol=1e-3, rtol=1e-3), max_err

    print("KERNEL_OK")
</pallas_src>

<mosaic_0001>
module attributes {stable_mosaic.version = 11 : i64} {
  func.func @_folded_kernel(%arg0: i32, %arg1: memref<1x18x18x128xf32, #tpu.memory_space<vmem>>, %arg2: memref<9x128x128xf32, #tpu.memory_space<vmem>>, %arg3: memref<1x16x16x128xf32, #tpu.memory_space<vmem>>) attributes {dimension_semantics = [#tpu.dimension_semantics<parallel>], iteration_bounds = array<i64: 2>, scalar_prefetch = 0 : i64, scratch_operands = 0 : i64, tpu.core_type = #tpu.core_type<tc>, window_params = [{transform_indices = @transform_0, window_bounds = array<i64: 1, 18, 18, 128>}, {pipeline_mode = #tpu.pipeline_mode<synchronous>, transform_indices = @transform_1, window_bounds = array<i64: 9, 128, 128>}, {transform_indices = @transform_2, window_bounds = array<i64: 1, 16, 16, 128>}]} {
    %c0 = arith.constant 0 : index
    %c0_0 = arith.constant 0 : index
    %c0_1 = arith.constant 0 : index
    %c0_2 = arith.constant 0 : index
    %0 = vector.load %arg1[%c0, %c0_0, %c0_1, %c0_2] : memref<1x18x18x128xf32, #tpu.memory_space<vmem>>, vector<1x18x18x128xf32>
    %1 = vector.shape_cast %0 : vector<1x18x18x128xf32> to vector<18x18x128xf32>
    %cst = arith.constant 0.000000e+00 : f32
    %2 = vector.broadcast %cst : f32 to vector<256x128xf32>
    %3 = vector.extract_strided_slice %1 {offsets = [0, 0, 0], sizes = [16, 18, 128], strides = [1, 1, 1]} : vector<18x18x128xf32> to vector<16x18x128xf32>
    %4 = vector.extract_strided_slice %3 {offsets = [0, 0, 0], sizes = [16, 16, 128], strides = [1, 1, 1]} : vector<16x18x128xf32> to vector<16x16x128xf32>
    %5 = vector.shape_cast %4 : vector<16x16x128xf32> to vector<256x128xf32>
    %c0_3 = arith.constant 0 : index
    %c0_4 = arith.constant 0 : index
    %c0_5 = arith.constant 0 : index
    %6 = vector.load %arg2[%c0_3, %c0_4, %c0_5] : memref<9x128x128xf32, #tpu.memory_space<vmem>>, vector<1x128x128xf32>
    %7 = vector.shape_cast %6 : vector<1x128x128xf32> to vector<128x128xf32>
    %cst_6 = arith.constant dense<0.000000e+00> : vector<256x128xf32>
    %8 = tpu.matmul %5, %7, %cst_6 {dimension_numbers = #tpu.dot_dimension_numbers<[1], [0], [0], [1], [0, 0, 1, 1], [], []>} : vector<256x128xf32>, vector<128x128xf32>, vector<256x128xf32> -> vector<256x128xf32>
    %9 = arith.addf %2, %8 : vector<256x128xf32>
    %10 = vector.extract_strided_slice %3 {offsets = [0, 1, 0], sizes = [16, 16, 128], strides = [1, 1, 1]} : vector<16x18x128xf32> to vector<16x16x128xf32>
    %11 = vector.shape_cast %10 : vector<16x16x128xf32> to vector<256x128xf32>
    %c1 = arith.constant 1 : index
    %c0_7 = arith.constant 0 : index
    %c0_8 = arith.constant 0 : index
    %12 = vector.load %arg2[%c1, %c0_7, %c0_8] : memref<9x128x128xf32, #tpu.memory_space<vmem>>, vector<1x128x128xf32>
    %13 = vector.shape_cast %12 : vector<1x128x128xf32> to vector<128x128xf32>
    %cst_9 = arith.constant dense<0.000000e+00> : vector<256x128xf32>
    %14 = tpu.matmul %11, %13, %cst_9 {dimension_numbers = #tpu.dot_dimension_numbers<[1], [0], [0], [1], [0, 0, 1, 1], [], []>} : vector<256x128xf32>, vector<128x128xf32>, vector<256x128xf32> -> vector<256x128xf32>
    %15 = arith.addf %9, %14 : vector<256x128xf32>
    %16 = vector.extract_strided_slice %3 {offsets = [0, 2, 0], sizes = [16, 16, 128], strides = [1, 1, 1]} : vector<16x18x128xf32> to vector<16x16x128xf32>
    %17 = vector.shape_cast %16 : vector<16x16x128xf32> to vector<256x128xf32>
    %c2 = arith.constant 2 : index
    %c0_10 = arith.constant 0 : index
    %c0_11 = arith.constant 0 : index
    %18 = vector.load %arg2[%c2, %c0_10, %c0_11] : memref<9x128x128xf32, #tpu.memory_space<vmem>>, vector<1x128x128xf32>
    %19 = vector.shape_cast %18 : vector<1x128x128xf32> to vector<128x128xf32>
    %cst_12 = arith.constant dense<0.000000e+00> : vector<256x128xf32>
    %20 = tpu.matmul %17, %19, %cst_12 {dimension_numbers = #tpu.dot_dimension_numbers<[1], [0], [0], [1], [0, 0, 1, 1], [], []>} : vector<256x128xf32>, vector<128x128xf32>, vector<256x128xf32> -> vector<256x128xf32>
    %21 = arith.addf %15, %20 : vector<256x128xf32>
    %22 = vector.extract_strided_slice %1 {offsets = [1, 0, 0], sizes = [16, 18, 128], strides = [1, 1, 1]} : vector<18x18x128xf32> to vector<16x18x128xf32>
    %23 = vector.extract_strided_slice %22 {offsets = [0, 0, 0], sizes = [16, 16, 128], strides = [1, 1, 1]} : vector<16x18x128xf32> to vector<16x16x128xf32>
    %24 = vector.shape_cast %23 : vector<16x16x128xf32> to vector<256x128xf32>
    %c3 = arith.constant 3 : index
    %c0_13 = arith.constant 0 : index
    %c0_14 = arith.constant 0 : index
    %25 = vector.load %arg2[%c3, %c0_13, %c0_14] : memref<9x128x128xf32, #tpu.memory_space<vmem>>, vector<1x128x128xf32>
    %26 = vector.shape_cast %25 : vector<1x128x128xf32> to vector<128x128xf32>
    %cst_15 = arith.constant dense<0.000000e+00> : vector<256x128xf32>
    %27 = tpu.matmul %24, %26, %cst_15 {dimension_numbers = #tpu.dot_dimension_numbers<[1], [0], [0], [1], [0, 0, 1, 1], [], []>} : vector<256x128xf32>, vector<128x128xf32>, vector<256x128xf32> -> vector<256x128xf32>
    %28 = arith.addf %21, %27 : vector<256x128xf32>
    %29 = vector.extract_strided_slice %22 {offsets = [0, 1, 0], sizes = [16, 16, 128], strides = [1, 1, 1]} : vector<16x18x128xf32> to vector<16x16x128xf32>
    %30 = vector.shape_cast %29 : vector<16x16x128xf32> to vector<256x128xf32>
    %c4 = arith.constant 4 : index
    %c0_16 = arith.constant 0 : index
    %c0_17 = arith.constant 0 : index
    %31 = vector.load %arg2[%c4, %c0_16, %c0_17] : memref<9x128x128xf32, #tpu.memory_space<vmem>>, vector<1x128x128xf32>
    %32 = vector.shape_cast %31 : vector<1x128x128xf32> to vector<128x128xf32>
    %cst_18 = arith.constant dense<0.000000e+00> : vector<256x128xf32>
    %33 = tpu.matmul %30, %32, %cst_18 {dimension_numbers = #tpu.dot_dimension_numbers<[1], [0], [0], [1], [0, 0, 1, 1], [], []>} : vector<256x128xf32>, vector<128x128xf32>, vector<256x128xf32> -> vector<256x128xf32>
    %34 = arith.addf %28, %33 : vector<256x128xf32>
    %35 = vector.extract_strided_slice %22 {offsets = [0, 2, 0], sizes = [16, 16, 128], strides = [1, 1, 1]} : vector<16x18x128xf32> to vector<16x16x128xf32>
    %36 = vector.shape_cast %35 : vector<16x16x128xf32> to vector<256x128xf32>
    %c5 = arith.constant 5 : index
    %c0_19 = arith.constant 0 : index
    %c0_20 = arith.constant 0 : index
    %37 = vector.load %arg2[%c5, %c0_19, %c0_20] : memref<9x128x128xf32, #tpu.memory_space<vmem>>, vector<1x128x128xf32>
    %38 = vector.shape_cast %37 : vector<1x128x128xf32> to vector<128x128xf32>
    %cst_21 = arith.constant dense<0.000000e+00> : vector<256x128xf32>
    %39 = tpu.matmul %36, %38, %cst_21 {dimension_numbers = #tpu.dot_dimension_numbers<[1], [0], [0], [1], [0, 0, 1, 1], [], []>} : vector<256x128xf32>, vector<128x128xf32>, vector<256x128xf32> -> vector<256x128xf32>
    %40 = arith.addf %34, %39 : vector<256x128xf32>
    %41 = vector.extract_strided_slice %1 {offsets = [2, 0, 0], sizes = [16, 18, 128], strides = [1, 1, 1]} : vector<18x18x128xf32> to vector<16x18x128xf32>
    %42 = vector.extract_strided_slice %41 {offsets = [0, 0, 0], sizes = [16, 16, 128], strides = [1, 1, 1]} : vector<16x18x128xf32> to vector<16x16x128xf32>
    %43 = vector.shape_cast %42 : vector<16x16x128xf32> to vector<256x128xf32>
    %c6 = arith.constant 6 : index
    %c0_22 = arith.constant 0 : index
    %c0_23 = arith.constant 0 : index
    %44 = vector.load %arg2[%c6, %c0_22, %c0_23] : memref<9x128x128xf32, #tpu.memory_space<vmem>>, vector<1x128x128xf32>
    %45 = vector.shape_cast %44 : vector<1x128x128xf32> to vector<128x128xf32>
    %cst_24 = arith.constant dense<0.000000e+00> : vector<256x128xf32>
    %46 = tpu.matmul %43, %45, %cst_24 {dimension_numbers = #tpu.dot_dimension_numbers<[1], [0], [0], [1], [0, 0, 1, 1], [], []>} : vector<256x128xf32>, vector<128x128xf32>, vector<256x128xf32> -> vector<256x128xf32>
    %47 = arith.addf %40, %46 : vector<256x128xf32>
    %48 = vector.extract_strided_slice %41 {offsets = [0, 1, 0], sizes = [16, 16, 128], strides = [1, 1, 1]} : vector<16x18x128xf32> to vector<16x16x128xf32>
    %49 = vector.shape_cast %48 : vector<16x16x128xf32> to vector<256x128xf32>
    %c7 = arith.constant 7 : index
    %c0_25 = arith.constant 0 : index
    %c0_26 = arith.constant 0 : index
    %50 = vector.load %arg2[%c7, %c0_25, %c0_26] : memref<9x128x128xf32, #tpu.memory_space<vmem>>, vector<1x128x128xf32>
    %51 = vector.shape_cast %50 : vector<1x128x128xf32> to vector<128x128xf32>
    %cst_27 = arith.constant dense<0.000000e+00> : vector<256x128xf32>
    %52 = tpu.matmul %49, %51, %cst_27 {dimension_numbers = #tpu.dot_dimension_numbers<[1], [0], [0], [1], [0, 0, 1, 1], [], []>} : vector<256x128xf32>, vector<128x128xf32>, vector<256x128xf32> -> vector<256x128xf32>
    %53 = arith.addf %47, %52 : vector<256x128xf32>
    %54 = vector.extract_strided_slice %41 {offsets = [0, 2, 0], sizes = [16, 16, 128], strides = [1, 1, 1]} : vector<16x18x128xf32> to vector<16x16x128xf32>
    %55 = vector.shape_cast %54 : vector<16x16x128xf32> to vector<256x128xf32>
    %c8 = arith.constant 8 : index
    %c0_28 = arith.constant 0 : index
    %c0_29 = arith.constant 0 : index
    %56 = vector.load %arg2[%c8, %c0_28, %c0_29] : memref<9x128x128xf32, #tpu.memory_space<vmem>>, vector<1x128x128xf32>
    %57 = vector.shape_cast %56 : vector<1x128x128xf32> to vector<128x128xf32>
    %cst_30 = arith.constant dense<0.000000e+00> : vector<256x128xf32>
    %58 = tpu.matmul %55, %57, %cst_30 {dimension_numbers = #tpu.dot_dimension_numbers<[1], [0], [0], [1], [0, 0, 1, 1], [], []>} : vector<256x128xf32>, vector<128x128xf32>, vector<256x128xf32> -> vector<256x128xf32>
    %59 = arith.addf %53, %58 : vector<256x128xf32>
    %60 = vector.shape_cast %59 : vector<256x128xf32> to vector<1x16x16x128xf32>
    %c0_31 = arith.constant 0 : index
    %c0_32 = arith.constant 0 : index
    %c0_33 = arith.constant 0 : index
    %c0_34 = arith.constant 0 : index
    %61 = vector.load %arg3[%c0_31, %c0_32, %c0_33, %c0_34] : memref<1x16x16x128xf32, #tpu.memory_space<vmem>>, vector<1x16x16x128xf32>
    tpu.vector_store %arg3[%c0_31, %c0_32, %c0_33, %c0_34], %60 {strides = array<i32>} : memref<1x16x16x128xf32, #tpu.memory_space<vmem>>, vector<1x16x16x128xf32>,
    return
  }
  func.func @transform_0(%arg0: i32) -> (i32, i32, i32, i32) {
    %c0_i32 = arith.constant 0 : i32
    %c0_i32_0 = arith.constant 0 : i32
    %c0_i32_1 = arith.constant 0 : i32
    %c0_i32_2 = arith.constant 0 : i32
    return %arg0, %c0_i32, %c0_i32_0, %c0_i32_1 : i32, i32, i32, i32
  }
  func.func @transform_1(%arg0: i32) -> (i32, i32, i32) {
    %c0_i32 = arith.constant 0 : i32
    %c0_i32_0 = arith.constant 0 : i32
    %c0_i32_1 = arith.constant 0 : i32
    %c0_i32_2 = arith.constant 0 : i32
    return %c0_i32, %c0_i32_0, %c0_i32_1 : i32, i32, i32
  }
  func.func @transform_2(%arg0: i32) -> (i32, i32, i32, i32) {
    %c0_i32 = arith.constant 0 : i32
    %c0_i32_0 = arith.constant 0 : i32
    %c0_i32_1 = arith.constant 0 : i32
    %c0_i32_2 = arith.constant 0 : i32
    return %arg0, %c0_i32, %c0_i32_0, %c0_i32_1 : i32, i32, i32, i32
  }
}

</mosaic_0001>

<llo_original>
// kernel: tpu_custom_call.1
$region0: #{tpu_custom_call.1}
  #allocation0 [shape = 'u32[]', space=smem, size = 0x4, offset = 0x4, fixed_abs, tag = 'smem constant byte address 0x4 - core index']
  #allocation1 [shape = 'u32[144,128]{1,0:T(1,128)}', space=vmem, size = 0x12000, scoped, tag = 'internal scratch']
  %s0 = inlined_call_operand.vmem [shape: f32[2,18,18,128], index: 0, kind: input, shape index: {}]
  %s1 = inlined_call_operand.vmem [shape: f32[9,128,128], index: 1, kind: input, shape index: {}]
  %s2 = inlined_call_operand.hbm [shape: f32[2,16,16,128], index: 2, kind: output, shape index: {}]
  %s3 = sld [smem:[#allocation0]]
  $region41: #{tpu_custom_call.1} parent=0
    _
  %s5 = ssub.s32 1, %s3
  %s6 = scalar_select 0, %s5, %s3
  $region1: #{tpu_custom_call.1} parent=0
    #allocation2 [shape = 'u8[262144]{0}', space=vmem, size = 0x40000, scoped, tag = 'output window, operand 0']
    #allocation3 [shape = 's32[2]{0}', space=sflag, size = 0x8, scoped, tag = 'scoped memory for tpu_custom_call.1']
    %7 = vsyncpa [#allocation3], 0
    %s8 = scalar_lea.sflag [#allocation3], 1
    %9 = vsyncpa %s8, 0
    loop: start=0, step=1, limit=4
    $region2: #{tpu_custom_call.1} parent=1 // loop_pre_header
      _
    $region3: #{tpu_custom_call.1} parent=1 // loop_header
      %s11 = sphi 0, %s15
      %p12 = scmp.ge.s32.totalorder %s11, 4
      %s21 = sphi 0, %s23
      %s24 = sphi 0, %s21
      %s25 = sphi 0, %s24
      %s41 = sphi 0, %s25
      %s45 = sphi 0, %s45
      %s47 = sphi 0, %s45
      %s48 = sphi 0, %s47
      %s62 = sphi 0, %s48
      %s68 = sphi 0, %s70
      %s71 = sphi 0, %s68
      %s72 = sphi 0, %s71
      %s88 = sphi 0, %s72
    $region4: #{tpu_custom_call.1} parent=1 // loop_header_branch
      %14 = sbr.rel (%p12) target = $region8
    $region5: #{tpu_custom_call.1} parent=1 // loop_body
      %s16 = ssub.s32 %s11, 1
      %s17 = ssub.s32 %s11, 2
      %s18 = sadd.s32 %s11, 1
      %s19 = ssub.s32 %s11, %s18
      %p20 = scmp.eq.s32.totalorder %s19, 0
      %s22 = sadd.s32 %s21, 1
      %s23 = scalar_select %p20, %s21, %s22
      %p26 = pneg %p20
      %p27 = scmp.eq.s32.totalorder %s11, 1
      %p28 = por %p26, %p27
      %p29 = scmp.ne.s32.totalorder %s21, %s24
      %p30 = scmp.eq.s32.totalorder %s11, 0
      %p31 = por %p29, %p30
      %p32 = scmp.ne.s32.totalorder %s21, %s24
      %p33 = scmp.eq.s32.totalorder %s16, 1
      %p34 = por %p32, %p33
      %p35 = scmp.ne.s32.totalorder %s24, %s25
      %p36 = scmp.eq.s32.totalorder %s16, 0
      %p37 = por %p35, %p36
      %p38 = scmp.ne.s32.totalorder %s24, %s25
      %p39 = scmp.eq.s32.totalorder %s17, 1
      %p40 = por %p38, %p39
      %p42 = scmp.ne.s32.totalorder %s25, %s41
      %p43 = scmp.eq.s32.totalorder %s17, 0
      %p44 = por %p42, %p43
      %s46 = sadd.s32 %s45, 1
      %p49 = scmp.eq.s32.totalorder %s11, 1
      %p50 = scmp.ne.s32.totalorder %s45, %s47
      %p51 = scmp.eq.s32.totalorder %s11, 0
      %p52 = por %p50, %p51
      %p53 = scmp.ne.s32.totalorder %s45, %s47
      %p54 = scmp.eq.s32.totalorder %s16, 1
      %p55 = por %p53, %p54
      %p56 = scmp.ne.s32.totalorder %s47, %s48
      %p57 = scmp.eq.s32.totalorder %s16, 0
      %p58 = por %p56, %p57
      %p59 = scmp.ne.s32.totalorder %s47, %s48
      %p60 = scmp.eq.s32.totalorder %s17, 1
      %p61 = por %p59, %p60
      %p63 = scmp.ne.s32.totalorder %s48, %s62
      %p64 = scmp.eq.s32.totalorder %s17, 0
      %p65 = por %p63, %p64
      %s66 = ssub.s32 %s11, %s18
      %p67 = scmp.eq.s32.totalorder %s66, 0
      %s69 = sadd.s32 %s68, 1
      %s70 = scalar_select %p67, %s68, %s69
      %p73 = pneg %p67
      %p74 = scmp.eq.s32.totalorder %s11, 1
      %p75 = por %p73, %p74
      %p76 = scmp.ne.s32.totalorder %s68, %s71
      %p77 = scmp.eq.s32.totalorder %s11, 0
      %p78 = por %p76, %p77
      %p79 = scmp.ne.s32.totalorder %s68, %s71
      %p80 = scmp.eq.s32.totalorder %s16, 1
      %p81 = por %p79, %p80
      %p82 = scmp.ne.s32.totalorder %s71, %s72
      %p83 = scmp.eq.s32.totalorder %s16, 0
      %p84 = por %p82, %p83
      %p85 = scmp.ne.s32.totalorder %s71, %s72
      %p86 = scmp.eq.s32.totalorder %s17, 1
      %p87 = por %p85, %p86
      %p89 = scmp.ne.s32.totalorder %s72, %s88
      %p90 = scmp.eq.s32.totalorder %s17, 0
      %p91 = por %p89, %p90
      %p92 = scmp.le.s32.totalorder 1, %s11
      %p93 = scmp.lt.s32.totalorder %s11, 3
      %p94 = pnand %p92, %p93
      %p95 = pneg %p94
      // Predicated region
      $region9: #{tpu_custom_call.1} parent=5 // pred_check
        _
      $region10: #{tpu_custom_call.1} parent=5 // pred_check_branch
        %97 = sbr.rel (%p94) target = $region12
      $region11: #{tpu_custom_call.1} parent=5 // pred_region
        %s98 = ssub.s32 %s11, 1
        // Predicated region
        $region13: #{tpu_custom_call.1} parent=11 // pred_check
          %p99 = pneg %p58
        $region14: #{tpu_custom_call.1} parent=11 // pred_check_branch
          %101 = sbr.rel (%p99) target = $region16
        $region15: #{tpu_custom_call.1} parent=11 // pred_region
          _
        $region16: #{tpu_custom_call.1} parent=11 // pred_fallthru
          _
      $region12: #{tpu_custom_call.1} parent=5 // pred_fallthru
        _
      %p102 = scmp.lt.s32.totalorder %s11, 2
      // Predicated region
      $region17: #{tpu_custom_call.1} parent=5 // pred_check
        %p103 = pneg %p102
      $region18: #{tpu_custom_call.1} parent=5 // pred_check_branch
        %105 = sbr.rel (%p103) target = $region20
      $region19: #{tpu_custom_call.1} parent=5 // pred_region
        // Predicated region
        $region21: #{tpu_custom_call.1} parent=19 // pred_check
          %p106 = pneg %p31
        $region22: #{tpu_custom_call.1} parent=19 // pred_check_branch
          %108 = sbr.rel (%p106) target = $region24
        $region23: #{tpu_custom_call.1} parent=19 // pred_region
          %p109 = scmp.lt.s32.totalorder %s11, 1
          %s110 = scalar_select %p109, %s11, 1
          %s111 = smul.addr %s110, 54
          %s112 = smul.addr %s111, 8
          %s113 = scalar_lea.vmem %s0, %s112
        $region24: #{tpu_custom_call.1} parent=19 // pred_fallthru
          _
      $region20: #{tpu_custom_call.1} parent=5 // pred_fallthru
        _
      %p114 = scmp.le.s32.totalorder 1, %s11
      %p115 = scmp.lt.s32.totalorder %s11, 3
      %p116 = pnand %p114, %p115
      %p117 = pneg %p116
      // Predicated region
      $region25: #{tpu_custom_call.1} parent=5 // pred_check
        _
      $region26: #{tpu_custom_call.1} parent=5 // pred_check_branch
        %119 = sbr.rel (%p116) target = $region28
      $region27: #{tpu_custom_call.1} parent=5 // pred_region
        %s120 = ssub.s32 %s11, 1
        %p121 = scmp.lt.s32.totalorder %s16, 1
        %s122 = scalar_select %p121, %s16, 1
        %s123 = smul.addr %s122, 54
        %s124 = smul.addr %s123, 8
        %s125 = scalar_lea.vmem %s0, %s124
        %p126 = pneg %p37
        %p127 = pneg %p34
        %p128 = pneg %p58
        %p129 = pneg %p55
        %p130 = pneg %p84
        %p131 = pneg %p81
        %s132 = sand.u32 %s71, 1
        %s133 = scalar_lea.sflag [#allocation3], %s132
        %s134 = sand.u32 %s71, 1
        %s135 = smul.addr %s134, 256
        %s136 = scalar_lea.vmem [#allocation2], %s135
        %p137 = scmp.lt.s32.totalorder %s16, 1
        %s138 = scalar_select %p137, %s16, 1
        %s139 = smul.addr %s138, 54
        %s140 = smul.addr %s139, 8
        %s141 = scalar_lea.vmem %s0, %s140
        %v142 = vld [vmem:[%s141] sm:$0xff]
        %v143 = vld [vmem:[%s141 + $0x8] sm:$0xff]
        %v144 = vld [vmem:[%s141 + $0x10] sm:$0x3]
        %v145 = vld [vmem:[%s141 + $0x18] sm:$0xff]
        %v146 = vld [vmem:[%s141 + $0x20] sm:$0xff]
        %v147 = vld [vmem:[%s141 + $0x28] sm:$0x3]
        %v148 = vld [vmem:[%s141 + $0x30] sm:$0xff]
        %v149 = vld [vmem:[%s141 + $0x38] sm:$0xff]
        %v150 = vld [vmem:[%s141 + $0x40] sm:$0x3]
        %v151 = vld [vmem:[%s141 + $0x48] sm:$0xff]
        %v152 = vld [vmem:[%s141 + $0x50] sm:$0xff]
        %v153 = vld [vmem:[%s141 + $0x58] sm:$0x3]
        %v154 = vld [vmem:[%s141 + $0x60] sm:$0xff]
        %v155 = vld [vmem:[%s141 + $0x68] sm:$0xff]
        %v156 = vld [vmem:[%s141 + $0x70] sm:$0x3]
        %v157 = vld [vmem:[%s141 + $0x78] sm:$0xff]
        %v158 = vld [vmem:[%s141 + $0x80] sm:$0xff]
        %v159 = vld [vmem:[%s141 + $0x88] sm:$0x3]
        %v160 = vld [vmem:[%s141 + $0x90] sm:$0xff]
        %v161 = vld [vmem:[%s141 + $0x98] sm:$0xff]
        %v162 = vld [vmem:[%s141 + $0xa0] sm:$0x3]
        %v163 = vld [vmem:[%s141 + $0xa8] sm:$0xff]
        %v164 = vld [vmem:[%s141 + $0xb0] sm:$0xff]
        %v165 = vld [vmem:[%s141 + $0xb8] sm:$0x3]
        %v166 = vld [vmem:[%s141 + $0xc0] sm:$0xff]
        %v167 = vld [vmem:[%s141 + $0xc8] sm:$0xff]
        %v168 = vld [vmem:[%s141 + $0xd0] sm:$0x3]
        %v169 = vld [vmem:[%s141 + $0xd8] sm:$0xff]
        %v170 = vld [vmem:[%s141 + $0xe0] sm:$0xff]
        %v171 = vld [vmem:[%s141 + $0xe8] sm:$0x3]
        %v172 = vld [vmem:[%s141 + $0xf0] sm:$0xff]
        %v173 = vld [vmem:[%s141 + $0xf8] sm:$0xff]
        %v174 = vld [vmem:[%s141 + $0x100] sm:$0x3]
        %v175 = vld [vmem:[%s141 + $0x108] sm:$0xff]
        %v176 = vld [vmem:[%s141 + $0x110] sm:$0xff]
        %v177 = vld [vmem:[%s141 + $0x118] sm:$0x3]
        %v178 = vld [vmem:[%s141 + $0x120] sm:$0xff]
        %v179 = vld [vmem:[%s141 + $0x128] sm:$0xff]
        %v180 = vld [vmem:[%s141 + $0x130] sm:$0x3]
        %v181 = vld [vmem:[%s141 + $0x138] sm:$0xff]
        %v182 = vld [vmem:[%s141 + $0x140] sm:$0xff]
        %v183 = vld [vmem:[%s141 + $0x148] sm:$0x3]
        %v184 = vld [vmem:[%s141 + $0x150] sm:$0xff]
        %v185 = vld [vmem:[%s141 + $0x158] sm:$0xff]
        %v186 = vld [vmem:[%s141 + $0x160] sm:$0x3]
        %v187 = vld [vmem:[%s141 + $0x168] sm:$0xff]
        %v188 = vld [vmem:[%s141 + $0x170] sm:$0xff]
        %v189 = vld [vmem:[%s141 + $0x178] sm:$0x3]
        %v190 = vld [vmem:[%s141 + $0x180] sm:$0xff]
        %v191 = vld [vmem:[%s141 + $0x188] sm:$0xff]
        %v192 = vld [vmem:[%s141 + $0x190] sm:$0x3]
        %v193 = vld [vmem:[%s141 + $0x198] sm:$0xff]
        %v194 = vld [vmem:[%s141 + $0x1a0] sm:$0xff]
        %v195 = vld [vmem:[%s141 + $0x1a8] sm:$0x3]
        %v196 = vld [vmem:[%s1] sm:$0xff]
        %v197 = vld [vmem:[%s1 + $0x8] sm:$0xff]
        %v198 = vld [vmem:[%s1 + $0x10] sm:$0xff]
        %v199 = vld [vmem:[%s1 + $0x18] sm:$0xff]
        %v200 = vld [vmem:[%s1 + $0x20] sm:$0xff]
        %v201 = vld [vmem:[%s1 + $0x28] sm:$0xff]
        %v202 = vld [vmem:[%s1 + $0x30] sm:$0xff]
        %v203 = vld [vmem:[%s1 + $0x38] sm:$0xff]
        %v204 = vld [vmem:[%s1 + $0x40] sm:$0xff]
        %v205 = vld [vmem:[%s1 + $0x48] sm:$0xff]
        %v206 = vld [vmem:[%s1 + $0x50] sm:$0xff]
        %v207 = vld [vmem:[%s1 + $0x58] sm:$0xff]
        %v208 = vld [vmem:[%s1 + $0x60] sm:$0xff]
        %v209 = vld [vmem:[%s1 + $0x68] sm:$0xff]
        %v210 = vld [vmem:[%s1 + $0x70] sm:$0xff]
        %v211 = vld [vmem:[%s1 + $0x78] sm:$0xff]
        %vm260 = vcmask 1046528
        %v261 = vrot.slane %v142, 1
        %v262 = vrot.slane %v143, 1
        %v263 = vsel %vm260, %v261, %v262
        %v264 = vrot.slane %v144, 1
        %v265 = vsel %vm260, %v262, %v264
        %v266 = vrot.slane %v145, 1
        %v267 = vrot.slane %v146, 1
        %v268 = vsel %vm260, %v266, %v267
        %v269 = vrot.slane %v147, 1
        %v270 = vsel %vm260, %v267, %v269
        %v271 = vrot.slane %v148, 1
        %v272 = vrot.slane %v149, 1
        %v273 = vsel %vm260, %v271, %v272
        %v274 = vrot.slane %v150, 1
        %v275 = vsel %vm260, %v272, %v274
        %v276 = vrot.slane %v151, 1
        %v277 = vrot.slane %v152, 1
        %v278 = vsel %vm260, %v276, %v277
        %v279 = vrot.slane %v153, 1
        %v280 = vsel %vm260, %v277, %v279
        %v281 = vrot.slane %v154, 1
        %v282 = vrot.slane %v155, 1
        %v283 = vsel %vm260, %v281, %v282
        %v284 = vrot.slane %v156, 1
        %v285 = vsel %vm260, %v282, %v284
        %v286 = vrot.slane %v157, 1
        %v287 = vrot.slane %v158, 1
        %v288 = vsel %vm260, %v286, %v287
        %v289 = vrot.slane %v159, 1
        %v290 = vsel %vm260, %v287, %v289
        %v291 = vrot.slane %v160, 1
        %v292 = vrot.slane %v161, 1
        %v293 = vsel %vm260, %v291, %v292
        %v294 = vrot.slane %v162, 1
        %v295 = vsel %vm260, %v292, %v294
        %v296 = vrot.slane %v163, 1
        %v297 = vrot.slane %v164, 1
        %v298 = vsel %vm260, %v296, %v297
        %v299 = vrot.slane %v165, 1
        %v300 = vsel %vm260, %v297, %v299
        %v301 = vrot.slane %v166, 1
        %v302 = vrot.slane %v167, 1
        %v303 = vsel %vm260, %v301, %v302
        %v304 = vrot.slane %v168, 1
        %v305 = vsel %vm260, %v302, %v304
        %v306 = vrot.slane %v169, 1
        %v307 = vrot.slane %v170, 1
        %v308 = vsel %vm260, %v306, %v307
        %v309 = vrot.slane %v171, 1
        %v310 = vsel %vm260, %v307, %v309
        %v311 = vrot.slane %v172, 1
        %v312 = vrot.slane %v173, 1
        %v313 = vsel %vm260, %v311, %v312
        %v314 = vrot.slane %v174, 1
        %v315 = vsel %vm260, %v312, %v314
        %v316 = vrot.slane %v175, 1
        %v317 = vrot.slane %v176, 1
        %v318 = vsel %vm260, %v316, %v317
        %v319 = vrot.slane %v177, 1
        %v320 = vsel %vm260, %v317, %v319
        %v321 = vrot.slane %v178, 1
        %v322 = vrot.slane %v179, 1
        %v323 = vsel %vm260, %v321, %v322
        %v324 = vrot.slane %v180, 1
        %v325 = vsel %vm260, %v322, %v324
        %v326 = vrot.slane %v181, 1
        %v327 = vrot.slane %v182, 1
        %v328 = vsel %vm260, %v326, %v327
        %v329 = vrot.slane %v183, 1
        %v330 = vsel %vm260, %v327, %v329
        %v331 = vrot.slane %v184, 1
        %v332 = vrot.slane %v185, 1
        %v333 = vsel %vm260, %v331, %v332
        %v334 = vrot.slane %v186, 1
        %v335 = vsel %vm260, %v332, %v334
        %v336 = vrot.slane %v187, 1
        %v337 = vrot.slane %v188, 1
        %v338 = vsel %vm260, %v336, %v337
        %v339 = vrot.slane %v189, 1
        %v340 = vsel %vm260, %v337, %v339
        %s373 = scalar_lea.vmem %s1, 128
        %v374 = vld [vmem:[%s373] sm:$0xff]
        %v375 = vld [vmem:[%s373 + $0x8] sm:$0xff]
        %v376 = vld [vmem:[%s373 + $0x10] sm:$0xff]
        %v377 = vld [vmem:[%s373 + $0x18] sm:$0xff]
        %v378 = vld [vmem:[%s373 + $0x20] sm:$0xff]
        %v379 = vld [vmem:[%s373 + $0x28] sm:$0xff]
        %v380 = vld [vmem:[%s373 + $0x30] sm:$0xff]
        %v381 = vld [vmem:[%s373 + $0x38] sm:$0xff]
        %v382 = vld [vmem:[%s373 + $0x40] sm:$0xff]
        %v383 = vld [vmem:[%s373 + $0x48] sm:$0xff]
        %v384 = vld [vmem:[%s373 + $0x50] sm:$0xff]
        %v385 = vld [vmem:[%s373 + $0x58] sm:$0xff]
        %v386 = vld [vmem:[%s373 + $0x60] sm:$0xff]
        %v387 = vld [vmem:[%s373 + $0x68] sm:$0xff]
        %v388 = vld [vmem:[%s373 + $0x70] sm:$0xff]
        %v389 = vld [vmem:[%s373 + $0x78] sm:$0xff]
        %390 = vmatprep.subr.mxu0 0.0
        %391 = vmatpush1.msra.mxu0 %v374
        %392 = vmatprep.subr.mxu0 0.0
        %393 = vmatpush1.msra.mxu0 %v375
        %394 = vmatprep.subr.mxu0 0.0
        %395 = vmatpush1.msra.mxu0 %v376
        %396 = vmatprep.subr.mxu0 0.0
        %397 = vmatpush1.msra.mxu0 %v377
        %398 = vmatprep.subr.mxu0 0.0
        %399 = vmatpush1.msra.mxu0 %v378
        %400 = vmatprep.subr.mxu0 0.0
        %401 = vmatpush1.msra.mxu0 %v379
        %402 = vmatprep.subr.mxu0 0.0
        %403 = vmatpush1.msra.mxu0 %v380
        %404 = vmatprep.subr.mxu0 0.0
        %405 = vmatpush1.msra.mxu0 %v381
        %406 = vmatprep.subr.mxu0 0.0
        %407 = vmatpush1.msra.mxu0 %v382
        %408 = vmatprep.subr.mxu0 0.0
        %409 = vmatpush1.msra.mxu0 %v383
        %410 = vmatprep.subr.mxu0 0.0
        %411 = vmatpush1.msra.mxu0 %v384
        %412 = vmatprep.subr.mxu0 0.0
        %413 = vmatpush1.msra.mxu0 %v385
        %414 = vmatprep.subr.mxu0 0.0
        %415 = vmatpush1.msra.mxu0 %v386
        %416 = vmatprep.subr.mxu0 0.0
        %417 = vmatpush1.msra.mxu0 %v387
        %418 = vmatprep.subr.mxu0 0.0
        %419 = vmatpush1.msra.mxu0 %v388
        %420 = vmatprep.subr.mxu0 0.0
        %421 = vmatpush1.msra.mxu0 %v389
        %422 = vmatprep.subr.mxu0 0.0
        %423 = vmatpush1.msra.mxu0 0.0
        %424 = vmatprep.subr.mxu0 0.0
        %425 = vmatpush1.msra.mxu0 0.0
        %426 = vmatprep.subr.mxu0 0.0
        %427 = vmatpush1.msra.mxu0 0.0
        %428 = vmatprep.subr.mxu0 0.0
        %429 = vmatpush1.msra.mxu0 0.0
        %430 = vmatprep.subr.mxu0 0.0
        %431 = vmatpush1.msra.mxu0 0.0
        %432 = vmatprep.subr.mxu0 0.0
        %433 = vmatpush1.msra.mxu0 0.0
        %434 = vmatprep.subr.mxu0 0.0
        %435 = vmatpush1.msra.mxu0 0.0
        %436 = vmatprep.subr.mxu0 0.0
        %437 = vmatpush1.msra.mxu0 0.0
        %438 = vmatprep.subr.mxu0 0.0
        %439 = vmatpush1.msra.mxu0 0.0
        %440 = vmatprep.subr.mxu0 0.0
        %441 = vmatpush1.msra.mxu0 0.0
        %442 = vmatprep.subr.mxu0 0.0
        %443 = vmatpush1.msra.mxu0 0.0
        %444 = vmatprep.subr.mxu0 0.0
        %445 = vmatpush1.msra.mxu0 0.0
        %446 = vmatprep.subr.mxu0 0.0
        %447 = vmatpush1.msra.mxu0 0.0
        %448 = vmatprep.subr.mxu0 0.0
        %449 = vmatpush1.msra.mxu0 0.0
        %450 = vmatprep.subr.mxu0 0.0
        %451 = vmatpush1.msra.mxu0 0.0
        %452 = vmatprep.subr.mxu0 0.0
        %453 = vmatpush1.msra.mxu0 0.0
        %454 = vmatprep.mubr.f32.mxu0 0.0
        %455 = vmatmul.mubr.f32.gmra.mrb[0].mxu0 %v263
        %v456 = vpop.f32.mrb[0].mxu0
        %v457 = vadd.f32 0.0, %v456
        %v458 = vpop.f32.mrb[0].mxu0
        %459 = vmatprep.mubr.f32.mxu0 0.0
        %460 = vmatmul.mubr.f32.gmra.mrb[0].mxu0 %v265
        %v461 = vpop.f32.mrb[0].mxu0
        %v462 = vadd.f32 0.0, %v461
        %v463 = vpop.f32.mrb[0].mxu0
        %464 = vmatprep.mubr.f32.mxu0 0.0
        %465 = vmatmul.mubr.f32.gmra.mrb[0].mxu0 %v268
        %v466 = vpop.f32.mrb[0].mxu0
        %v467 = vadd.f32 0.0, %v466
        %v468 = vpop.f32.mrb[0].mxu0
        %469 = vmatprep.mubr.f32.mxu0 0.0
        %470 = vmatmul.mubr.f32.gmra.mrb[0].mxu0 %v270
        %v471 = vpop.f32.mrb[0].mxu0
        %v472 = vadd.f32 0.0, %v471
        %v473 = vpop.f32.mrb[0].mxu0
        %474 = vmatprep.mubr.f32.mxu0 0.0
        %475 = vmatmul.mubr.f32.gmra.mrb[0].mxu0 %v273
        %v476 = vpop.f32.mrb[0].mxu0
        %v477 = vadd.f32 0.0, %v476
        %v478 = vpop.f32.mrb[0].mxu0
        %479 = vmatprep.mubr.f32.mxu0 0.0
        %480 = vmatmul.mubr.f32.gmra.mrb[0].mxu0 %v275
        %v481 = vpop.f32.mrb[0].mxu0
        %v482 = vadd.f32 0.0, %v481
        %v483 = vpop.f32.mrb[0].mxu0
        %484 = vmatprep.mubr.f32.mxu0 0.0
        %485 = vmatmul.mubr.f32.gmra.mrb[0].mxu0 %v278
        %v486 = vpop.f32.mrb[0].mxu0
        %v487 = vadd.f32 0.0, %v486
        %v488 = vpop.f32.mrb[0].mxu0
        %489 = vmatprep.mubr.f32.mxu0 0.0
        %490 = vmatmul.mubr.f32.gmra.mrb[0].mxu0 %v280
        %v491 = vpop.f32.mrb[0].mxu0
        %v492 = vadd.f32 0.0, %v491
        %v493 = vpop.f32.mrb[0].mxu0
        %494 = vmatprep.mubr.f32.mxu0 0.0
        %495 = vmatmul.mubr.f32.gmra.mrb[0].mxu0 %v283
        %v496 = vpop.f32.mrb[0].mxu0
        %v497 = vadd.f32 0.0, %v496
        %v498 = vpop.f32.mrb[0].mxu0
        %499 = vmatprep.mubr.f32.mxu0 0.0
        %500 = vmatmul.mubr.f32.gmra.mrb[0].mxu0 %v285
        %v501 = vpop.f32.mrb[0].mxu0
        %v502 = vadd.f32 0.0, %v501
        %v503 = vpop.f32.mrb[0].mxu0
        %504 = vmatprep.mubr.f32.mxu0 0.0
        %505 = vmatmul.mubr.f32.gmra.mrb[0].mxu0 %v288
        %v506 = vpop.f32.mrb[0].mxu0
        %v507 = vadd.f32 0.0, %v506
        %v508 = vpop.f32.mrb[0].mxu0
        %509 = vmatprep.mubr.f32.mxu0 0.0
        %510 = vmatmul.mubr.f32.gmra.mrb[0].mxu0 %v290
        %v511 = vpop.f32.mrb[0].mxu0
        %v512 = vadd.f32 0.0, %v511
        %v513 = vpop.f32.mrb[0].mxu0
        %514 = vmatprep.mubr.f32.mxu0 0.0
        %515 = vmatmul.mubr.f32.gmra.mrb[0].mxu0 %v293
        %v516 = vpop.f32.mrb[0].mxu0
        %v517 = vadd.f32 0.0, %v516
        %v518 = vpop.f32.mrb[0].mxu0
        %519 = vmatprep.mubr.f32.mxu0 0.0
        %520 = vmatmul.mubr.f32.gmra.mrb[0].mxu0 %v295
        %v521 = vpop.f32.mrb[0].mxu0
        %v522 = vadd.f32 0.0, %v521
        %v523 = vpop.f32.mrb[0].mxu0
        %524 = vmatprep.mubr.f32.mxu0 0.0
        %525 = vmatmul.mubr.f32.gmra.mrb[0].mxu0 %v298
        %v526 = vpop.f32.mrb[0].mxu0
        %v527 = vadd.f32 0.0, %v526
        %v528 = vpop.f32.mrb[0].mxu0
        %529 = vmatprep.mubr.f32.mxu0 0.0
        %530 = vmatmul.mubr.f32.gmra.mrb[0].mxu0 %v300
        %v531 = vpop.f32.mrb[0].mxu0
        %v532 = vadd.f32 0.0, %v531
        %v533 = vpop.f32.mrb[0].mxu0
        %534 = vmatprep.mubr.f32.mxu0 0.0
        %535 = vmatmul.mubr.f32.gmra.mrb[0].mxu0 %v303
        %v536 = vpop.f32.mrb[0].mxu0
        %v537 = vadd.f32 0.0, %v536
        %v538 = vpop.f32.mrb[0].mxu0
        %539 = vmatprep.mubr.f32.mxu0 0.0
        %540 = vmatmul.mubr.f32.gmra.mrb[0].mxu0 %v305
        %v541 = vpop.f32.mrb[0].mxu0
        %v542 = vadd.f32 0.0, %v541
        %v543 = vpop.f32.mrb[0].mxu0
        %544 = vmatprep.mubr.f32.mxu0 0.0
        %545 = vmatmul.mubr.f32.gmra.mrb[0].mxu0 %v308
        %v546 = vpop.f32.mrb[0].mxu0
        %v547 = vadd.f32 0.0, %v546
        %v548 = vpop.f32.mrb[0].mxu0
        %549 = vmatprep.mubr.f32.mxu0 0.0
        %550 = vmatmul.mubr.f32.gmra.mrb[0].mxu0 %v310
        %v551 = vpop.f32.mrb[0].mxu0
        %v552 = vadd.f32 0.0, %v551
        %v553 = vpop.f32.mrb[0].mxu0
        %554 = vmatprep.mubr.f32.mxu0 0.0
        %555 = vmatmul.mubr.f32.gmra.mrb[0].mxu0 %v313
        %v556 = vpop.f32.mrb[0].mxu0
        %v557 = vadd.f32 0.0, %v556
        %v558 = vpop.f32.mrb[0].mxu0
        %559 = vmatprep.mubr.f32.mxu0 0.0
        %560 = vmatmul.mubr.f32.gmra.mrb[0].mxu0 %v315
        %v561 = vpop.f32.mrb[0].mxu0
        %v562 = vadd.f32 0.0, %v561
        %v563 = vpop.f32.mrb[0].mxu0
        %564 = vmatprep.mubr.f32.mxu0 0.0
        %565 = vmatmul.mubr.f32.gmra.mrb[0].mxu0 %v318
        %v566 = vpop.f32.mrb[0].mxu0
        %v567 = vadd.f32 0.0, %v566
        %v568 = vpop.f32.mrb[0].mxu0
        %569 = vmatprep.mubr.f32.mxu0 0.0
        %570 = vmatmul.mubr.f32.gmra.mrb[0].mxu0 %v320
        %v571 = vpop.f32.mrb[0].mxu0
        %v572 = vadd.f32 0.0, %v571
        %v573 = vpop.f32.mrb[0].mxu0
        %574 = vmatprep.mubr.f32.mxu0 0.0
        %575 = vmatmul.mubr.f32.gmra.mrb[0].mxu0 %v323
        %v576 = vpop.f32.mrb[0].mxu0
        %v577 = vadd.f32 0.0, %v576
        %v578 = vpop.f32.mrb[0].mxu0
        %579 = vmatprep.mubr.f32.mxu0 0.0
        %580 = vmatmul.mubr.f32.gmra.mrb[0].mxu0 %v325
        %v581 = vpop.f32.mrb[0].mxu0
        %v582 = vadd.f32 0.0, %v581
        %v583 = vpop.f32.mrb[0].mxu0
        %584 = vmatprep.mubr.f32.mxu0 0.0
        %585 = vmatmul.mubr.f32.gmra.mrb[0].mxu0 %v328
        %v586 = vpop.f32.mrb[0].mxu0
        %v587 = vadd.f32 0.0, %v586
        %v588 = vpop.f32.mrb[0].mxu0
        %589 = vmatprep.mubr.f32.mxu0 0.0
        %590 = vmatmul.mubr.f32.gmra.mrb[0].mxu0 %v330
        %v591 = vpop.f32.mrb[0].mxu0
        %v592 = vadd.f32 0.0, %v591
        %v593 = vpop.f32.mrb[0].mxu0
        %594 = vmatprep.mubr.f32.mxu0 0.0
        %595 = vmatmul.mubr.f32.gmra.mrb[0].mxu0 %v333
        %v596 = vpop.f32.mrb[0].mxu0
        %v597 = vadd.f32 0.0, %v596
        %v598 = vpop.f32.mrb[0].mxu0
        %599 = vmatprep.mubr.f32.mxu0 0.0
        %600 = vmatmul.mubr.f32.gmra.mrb[0].mxu0 %v335
        %v601 = vpop.f32.mrb[0].mxu0
        %v602 = vadd.f32 0.0, %v601
        %v603 = vpop.f32.mrb[0].mxu0
        %604 = vmatprep.mubr.f32.mxu0 0.0
        %605 = vmatmul.mubr.f32.gmra.mrb[0].mxu0 %v338
        %v606 = vpop.f32.mrb[0].mxu0
        %v607 = vadd.f32 0.0, %v606
        %v608 = vpop.f32.mrb[0].mxu0
        %609 = vmatprep.mubr.f32.mxu0 0.0
        %610 = vmatmul.mubr.f32.gmra.mrb[0].mxu0 %v340
        %v611 = vpop.f32.mrb[0].mxu0
        %v612 = vadd.f32 0.0, %v611
        %v613 = vpop.f32.mrb[0].mxu0
        %614 = vdwg.mxu0
        %615 = vmatprep.subr.mxu0 0.0
        %616 = vmatpush1.msra.mxu0 %v196
        %617 = vmatprep.subr.mxu0 0.0
        %618 = vmatpush1.msra.mxu0 %v197
        %619 = vmatprep.subr.mxu0 0.0
        %620 = vmatpush1.msra.mxu0 %v198
        %621 = vmatprep.subr.mxu0 0.0
        %622 = vmatpush1.msra.mxu0 %v199
        %623 = vmatprep.subr.mxu0 0.0
        %624 = vmatpush1.msra.mxu0 %v200
        %625 = vmatprep.subr.mxu0 0.0
        %626 = vmatpush1.msra.mxu0 %v201
        %627 = vmatprep.subr.mxu0 0.0
        %628 = vmatpush1.msra.mxu0 %v202
        %629 = vmatprep.subr.mxu0 0.0
        %630 = vmatpush1.msra.mxu0 %v203
        %631 = vmatprep.subr.mxu0 0.0
        %632 = vmatpush1.msra.mxu0 %v204
        %633 = vmatprep.subr.mxu0 0.0
        %634 = vmatpush1.msra.mxu0 %v205
        %635 = vmatprep.subr.mxu0 0.0
        %636 = vmatpush1.msra.mxu0 %v206
        %637 = vmatprep.subr.mxu0 0.0
        %638 = vmatpush1.msra.mxu0 %v207
        %639 = vmatprep.subr.mxu0 0.0
        %640 = vmatpush1.msra.mxu0 %v208
        %641 = vmatprep.subr.mxu0 0.0
        %642 = vmatpush1.msra.mxu0 %v209
        %643 = vmatprep.subr.mxu0 0.0
        %644 = vmatpush1.msra.mxu0 %v210
        %645 = vmatprep.subr.mxu0 0.0
        %646 = vmatpush1.msra.mxu0 %v211
        %647 = vmatprep.subr.mxu0 0.0
        %648 = vmatpush1.msra.mxu0 0.0
        %649 = vmatprep.subr.mxu0 0.0
        %650 = vmatpush1.msra.mxu0 0.0
        %651 = vmatprep.subr.mxu0 0.0
        %652 = vmatpush1.msra.mxu0 0.0
        %653 = vmatprep.subr.mxu0 0.0
        %654 = vmatpush1.msra.mxu0 0.0
        %655 = vmatprep.subr.mxu0 0.0
        %656 = vmatpush1.msra.mxu0 0.0
        %657 = vmatprep.subr.mxu0 0.0
        %658 = vmatpush1.msra.mxu0 0.0
        %659 = vmatprep.subr.mxu0 0.0
        %660 = vmatpush1.msra.mxu0 0.0
        %661 = vmatprep.subr.mxu0 0.0
        %662 = vmatpush1.msra.mxu0 0.0
        %663 = vmatprep.subr.mxu0 0.0
        %664 = vmatpush1.msra.mxu0 0.0
        %665 = vmatprep.subr.mxu0 0.0
        %666 = vmatpush1.msra.mxu0 0.0
        %667 = vmatprep.subr.mxu0 0.0
        %668 = vmatpush1.msra.mxu0 0.0
        %669 = vmatprep.subr.mxu0 0.0
        %670 = vmatpush1.msra.mxu0 0.0
        %671 = vmatprep.subr.mxu0 0.0
        %672 = vmatpush1.msra.mxu0 0.0
        %673 = vmatprep.subr.mxu0 0.0
        %674 = vmatpush1.msra.mxu0 0.0
        %675 = vmatprep.subr.mxu0 0.0
        %676 = vmatpush1.msra.mxu0 0.0
        %677 = vmatprep.subr.mxu0 0.0
        %678 = vmatpush1.msra.mxu0 0.0
        %679 = vmatprep.mubr.f32.mxu0 0.0
        %680 = vmatmul.mubr.f32.gmra.mrb[0].mxu0 %v142
        %v681 = vpop.f32.mrb[0].mxu0
        %v682 = vadd.f32 %v457, %v681
        %v683 = vpop.f32.mrb[0].mxu0
        %684 = vmatprep.mubr.f32.mxu0 0.0
        %685 = vmatmul.mubr.f32.gmra.mrb[0].mxu0 %v143
        %v686 = vpop.f32.mrb[0].mxu0
        %v687 = vadd.f32 %v462, %v686
        %v688 = vpop.f32.mrb[0].mxu0
        %689 = vmatprep.mubr.f32.mxu0 0.0
        %690 = vmatmul.mubr.f32.gmra.mrb[0].mxu0 %v145
        %v691 = vpop.f32.mrb[0].mxu0
        %v692 = vadd.f32 %v467, %v691
        %v693 = vpop.f32.mrb[0].mxu0
        %694 = vmatprep.mubr.f32.mxu0 0.0
        %695 = vmatmul.mubr.f32.gmra.mrb[0].mxu0 %v146
        %v696 = vpop.f32.mrb[0].mxu0
        %v697 = vadd.f32 %v472, %v696
        %v698 = vpop.f32.mrb[0].mxu0
        %699 = vmatprep.mubr.f32.mxu0 0.0
        %700 = vmatmul.mubr.f32.gmra.mrb[0].mxu0 %v148
        %v701 = vpop.f32.mrb[0].mxu0
        %v702 = vadd.f32 %v477, %v701
        %v703 = vpop.f32.mrb[0].mxu0
        %704 = vmatprep.mubr.f32.mxu0 0.0
        %705 = vmatmul.mubr.f32.gmra.mrb[0].mxu0 %v149
        %v706 = vpop.f32.mrb[0].mxu0
        %v707 = vadd.f32 %v482, %v706
        %v708 = vpop.f32.mrb[0].mxu0
        %709 = vmatprep.mubr.f32.mxu0 0.0
        %710 = vmatmul.mubr.f32.gmra.mrb[0].mxu0 %v151
        %v711 = vpop.f32.mrb[0].mxu0
        %v712 = vadd.f32 %v487, %v711
        %v713 = vpop.f32.mrb[0].mxu0
        %714 = vmatprep.mubr.f32.mxu0 0.0
        %715 = vmatmul.mubr.f32.gmra.mrb[0].mxu0 %v152
        %v716 = vpop.f32.mrb[0].mxu0
        %v717 = vadd.f32 %v492, %v716
        %v718 = vpop.f32.mrb[0].mxu0
        %719 = vmatprep.mubr.f32.mxu0 0.0
        %720 = vmatmul.mubr.f32.gmra.mrb[0].mxu0 %v154
        %v721 = vpop.f32.mrb[0].mxu0
        %v722 = vadd.f32 %v497, %v721
        %v723 = vpop.f32.mrb[0].mxu0
        %724 = vmatprep.mubr.f32.mxu0 0.0
        %725 = vmatmul.mubr.f32.gmra.mrb[0].mxu0 %v155
        %v726 = vpop.f32.mrb[0].mxu0
        %v727 = vadd.f32 %v502, %v726
        %v728 = vpop.f32.mrb[0].mxu0
        %729 = vmatprep.mubr.f32.mxu0 0.0
        %730 = vmatmul.mubr.f32.gmra.mrb[0].mxu0 %v157
        %v731 = vpop.f32.mrb[0].mxu0
        %v732 = vadd.f32 %v507, %v731
        %v733 = vpop.f32.mrb[0].mxu0
        %734 = vmatprep.mubr.f32.mxu0 0.0
        %735 = vmatmul.mubr.f32.gmra.mrb[0].mxu0 %v158
        %v736 = vpop.f32.mrb[0].mxu0
        %v737 = vadd.f32 %v512, %v736
        %v738 = vpop.f32.mrb[0].mxu0
        %739 = vmatprep.mubr.f32.mxu0 0.0
        %740 = vmatmul.mubr.f32.gmra.mrb[0].mxu0 %v160
        %v741 = vpop.f32.mrb[0].mxu0
        %v742 = vadd.f32 %v517, %v741
        %v743 = vpop.f32.mrb[0].mxu0
        %744 = vmatprep.mubr.f32.mxu0 0.0
        %745 = vmatmul.mubr.f32.gmra.mrb[0].mxu0 %v161
        %v746 = vpop.f32.mrb[0].mxu0
        %v747 = vadd.f32 %v522, %v746
        %v748 = vpop.f32.mrb[0].mxu0
        %749 = vmatprep.mubr.f32.mxu0 0.0
        %750 = vmatmul.mubr.f32.gmra.mrb[0].mxu0 %v163
        %v751 = vpop.f32.mrb[0].mxu0
        %v752 = vadd.f32 %v527, %v751
        %v753 = vpop.f32.mrb[0].mxu0
        %754 = vmatprep.mubr.f32.mxu0 0.0
        %755 = vmatmul.mubr.f32.gmra.mrb[0].mxu0 %v164
        %v756 = vpop.f32.mrb[0].mxu0
        %v757 = vadd.f32 %v532, %v756
        %v758 = vpop.f32.mrb[0].mxu0
        %759 = vmatprep.mubr.f32.mxu0 0.0
        %760 = vmatmul.mubr.f32.gmra.mrb[0].mxu0 %v166
        %v761 = vpop.f32.mrb[0].mxu0
        %v762 = vadd.f32 %v537, %v761
        %v763 = vpop.f32.mrb[0].mxu0
        %764 = vmatprep.mubr.f32.mxu0 0.0
        %765 = vmatmul.mubr.f32.gmra.mrb[0].mxu0 %v167
        %v766 = vpop.f32.mrb[0].mxu0
        %v767 = vadd.f32 %v542, %v766
        %v768 = vpop.f32.mrb[0].mxu0
        %769 = vmatprep.mubr.f32.mxu0 0.0
        %770 = vmatmul.mubr.f32.gmra.mrb[0].mxu0 %v169
        %v771 = vpop.f32.mrb[0].mxu0
        %v772 = vadd.f32 %v547, %v771
        %v773 = vpop.f32.mrb[0].mxu0
        %774 = vmatprep.mubr.f32.mxu0 0.0
        %775 = vmatmul.mubr.f32.gmra.mrb[0].mxu0 %v170
        %v776 = vpop.f32.mrb[0].mxu0
        %v777 = vadd.f32 %v552, %v776
        %v778 = vpop.f32.mrb[0].mxu0
        %779 = vmatprep.mubr.f32.mxu0 0.0
        %780 = vmatmul.mubr.f32.gmra.mrb[0].mxu0 %v172
        %v781 = vpop.f32.mrb[0].mxu0
        %v782 = vadd.f32 %v557, %v781
        %v783 = vpop.f32.mrb[0].mxu0
        %784 = vmatprep.mubr.f32.mxu0 0.0
        %785 = vmatmul.mubr.f32.gmra.mrb[0].mxu0 %v173
        %v786 = vpop.f32.mrb[0].mxu0
        %v787 = vadd.f32 %v562, %v786
        %v788 = vpop.f32.mrb[0].mxu0
        %789 = vmatprep.mubr.f32.mxu0 0.0
        %790 = vmatmul.mubr.f32.gmra.mrb[0].mxu0 %v175
        %v791 = vpop.f32.mrb[0].mxu0
        %v792 = vadd.f32 %v567, %v791
        %v793 = vpop.f32.mrb[0].mxu0
        %794 = vmatprep.mubr.f32.mxu0 0.0
        %795 = vmatmul.mubr.f32.gmra.mrb[0].mxu0 %v176
        %v796 = vpop.f32.mrb[0].mxu0
        %v797 = vadd.f32 %v572, %v796
        %v798 = vpop.f32.mrb[0].mxu0
        %799 = vmatprep.mubr.f32.mxu0 0.0
        %800 = vmatmul.mubr.f32.gmra.mrb[0].mxu0 %v178
        %v801 = vpop.f32.mrb[0].mxu0
        %v802 = vadd.f32 %v577, %v801
        %v803 = vpop.f32.mrb[0].mxu0
        %804 = vmatprep.mubr.f32.mxu0 0.0
        %805 = vmatmul.mubr.f32.gmra.mrb[0].mxu0 %v179
        %v806 = vpop.f32.mrb[0].mxu0
        %v807 = vadd.f32 %v582, %v806
        %v808 = vpop.f32.mrb[0].mxu0
        %809 = vmatprep.mubr.f32.mxu0 0.0
        %810 = vmatmul.mubr.f32.gmra.mrb[0].mxu0 %v181
        %v811 = vpop.f32.mrb[0].mxu0
        %v812 = vadd.f32 %v587, %v811
        %v813 = vpop.f32.mrb[0].mxu0
        %814 = vmatprep.mubr.f32.mxu0 0.0
        %815 = vmatmul.mubr.f32.gmra.mrb[0].mxu0 %v182
        %v816 = vpop.f32.mrb[0].mxu0
        %v817 = vadd.f32 %v592, %v816
        %v818 = vpop.f32.mrb[0].mxu0
        %819 = vmatprep.mubr.f32.mxu0 0.0
        %820 = vmatmul.mubr.f32.gmra.mrb[0].mxu0 %v184
        %v821 = vpop.f32.mrb[0].mxu0
        %v822 = vadd.f32 %v597, %v821
        %v823 = vpop.f32.mrb[0].mxu0
        %824 = vmatprep.mubr.f32.mxu0 0.0
        %825 = vmatmul.mubr.f32.gmra.mrb[0].mxu0 %v185
        %v826 = vpop.f32.mrb[0].mxu0
        %v827 = vadd.f32 %v602, %v826
        %v828 = vpop.f32.mrb[0].mxu0
        %829 = vmatprep.mubr.f32.mxu0 0.0
        %830 = vmatmul.mubr.f32.gmra.mrb[0].mxu0 %v187
        %v831 = vpop.f32.mrb[0].mxu0
        %v832 = vadd.f32 %v607, %v831
        %v833 = vpop.f32.mrb[0].mxu0
        %834 = vmatprep.mubr.f32.mxu0 0.0
        %835 = vmatmul.mubr.f32.gmra.mrb[0].mxu0 %v188
        %v836 = vpop.f32.mrb[0].mxu0
        %v837 = vadd.f32 %v612, %v836
        %v838 = vpop.f32.mrb[0].mxu0
        %839 = vdwg.mxu0
        %vm840 = vcmask 1045504
        %v841 = vrot.slane %v142, 2
        %v842 = vrot.slane %v143, 2
        %v843 = vsel %vm840, %v841, %v842
        %v844 = vrot.slane %v144, 2
        %v845 = vsel %vm840, %v842, %v844
        %v846 = vrot.slane %v145, 2
        %v847 = vrot.slane %v146, 2
        %v848 = vsel %vm840, %v846, %v847
        %v849 = vrot.slane %v147, 2
        %v850 = vsel %vm840, %v847, %v849
        %v851 = vrot.slane %v148, 2
        %v852 = vrot.slane %v149, 2
        %v853 = vsel %vm840, %v851, %v852
        %v854 = vrot.slane %v150, 2
        %v855 = vsel %vm840, %v852, %v854
        %v856 = vrot.slane %v151, 2
        %v857 = vrot.slane %v152, 2
        %v858 = vsel %vm840, %v856, %v857
        %v859 = vrot.slane %v153, 2
        %v860 = vsel %vm840, %v857, %v859
        %v861 = vrot.slane %v154, 2
        %v862 = vrot.slane %v155, 2
        %v863 = vsel %vm840, %v861, %v862
        %v864 = vrot.slane %v156, 2
        %v865 = vsel %vm840, %v862, %v864
        %v866 = vrot.slane %v157, 2
        %v867 = vrot.slane %v158, 2
        %v868 = vsel %vm840, %v866, %v867
        %v869 = vrot.slane %v159, 2
        %v870 = vsel %vm840, %v867, %v869
        %v871 = vrot.slane %v160, 2
        %v872 = vrot.slane %v161, 2
        %v873 = vsel %vm840, %v871, %v872
        %v874 = vrot.slane %v162, 2
        %v875 = vsel %vm840, %v872, %v874
        %v876 = vrot.slane %v163, 2
        %v877 = vrot.slane %v164, 2
        %v878 = vsel %vm840, %v876, %v877
        %v879 = vrot.slane %v165, 2
        %v880 = vsel %vm840, %v877, %v879
        %v881 = vrot.slane %v166, 2
        %v882 = vrot.slane %v167, 2
        %v883 = vsel %vm840, %v881, %v882
        %v884 = vrot.slane %v168, 2
        %v885 = vsel %vm840, %v882, %v884
        %v886 = vrot.slane %v169, 2
        %v887 = vrot.slane %v170, 2
        %v888 = vsel %vm840, %v886, %v887
        %v889 = vrot.slane %v171, 2
        %v890 = vsel %vm840, %v887, %v889
        %v891 = vrot.slane %v172, 2
        %v892 = vrot.slane %v173, 2
        %v893 = vsel %vm840, %v891, %v892
        %v894 = vrot.slane %v174, 2
        %v895 = vsel %vm840, %v892, %v894
        %v896 = vrot.slane %v175, 2
        %v897 = vrot.slane %v176, 2
        %v898 = vsel %vm840, %v896, %v897
        %v899 = vrot.slane %v177, 2
        %v900 = vsel %vm840, %v897, %v899
        %v901 = vrot.slane %v178, 2
        %v902 = vrot.slane %v179, 2
        %v903 = vsel %vm840, %v901, %v902
        %v904 = vrot.slane %v180, 2
        %v905 = vsel %vm840, %v902, %v904
        %v906 = vrot.slane %v181, 2
        %v907 = vrot.slane %v182, 2
        %v908 = vsel %vm840, %v906, %v907
        %v909 = vrot.slane %v183, 2
        %v910 = vsel %vm840, %v907, %v909
        %v911 = vrot.slane %v184, 2
        %v912 = vrot.slane %v185, 2
        %v913 = vsel %vm840, %v911, %v912
        %v914 = vrot.slane %v186, 2
        %v915 = vsel %vm840, %v912, %v914
        %v916 = vrot.slane %v187, 2
        %v917 = vrot.slane %v188, 2
        %v918 = vsel %vm840, %v916, %v917
        %v919 = vrot.slane %v189, 2
        %v920 = vsel %vm840, %v917, %v919
        %s953 = scalar_lea.vmem %s1, 256
        %v954 = vld [vmem:[%s953] sm:$0xff]
        %v955 = vld [vmem:[%s953 + $0x8] sm:$0xff]
        %v956 = vld [vmem:[%s953 + $0x10] sm:$0xff]
        %v957 = vld [vmem:[%s953 + $0x18] sm:$0xff]
        %v958 = vld [vmem:[%s953 + $0x20] sm:$0xff]
        %v959 = vld [vmem:[%s953 + $0x28] sm:$0xff]
        %v960 = vld [vmem:[%s953 + $0x30] sm:$0xff]
        %v961 = vld [vmem:[%s953 + $0x38] sm:$0xff]
        %v962 = vld [vmem:[%s953 + $0x40] sm:$0xff]
        %v963 = vld [vmem:[%s953 + $0x48] sm:$0xff]
        %v964 = vld [vmem:[%s953 + $0x50] sm:$0xff]
        %v965 = vld [vmem:[%s953 + $0x58] sm:$0xff]
        %v966 = vld [vmem:[%s953 + $0x60] sm:$0xff]
        %v967 = vld [vmem:[%s953 + $0x68] sm:$0xff]
        %v968 = vld [vmem:[%s953 + $0x70] sm:$0xff]
        %v969 = vld [vmem:[%s953 + $0x78] sm:$0xff]
        %970 = vmatprep.subr.mxu0 0.0
        %971 = vmatpush1.msra.mxu0 %v954
        %972 = vmatprep.subr.mxu0 0.0
        %973 = vmatpush1.msra.mxu0 %v955
        %974 = vmatprep.subr.mxu0 0.0
        %975 = vmatpush1.msra.mxu0 %v956
        %976 = vmatprep.subr.mxu0 0.0
        %977 = vmatpush1.msra.mxu0 %v957
        %978 = vmatprep.subr.mxu0 0.0
        %979 = vmatpush1.msra.mxu0 %v958
        %980 = vmatprep.subr.mxu0 0.0
        %981 = vmatpush1.msra.mxu0 %v959
        %982 = vmatprep.subr.mxu0 0.0
        %983 = vmatpush1.msra.mxu0 %v960
        %984 = vmatprep.subr.mxu0 0.0
        %985 = vmatpush1.msra.mxu0 %v961
        %986 = vmatprep.subr.mxu0 0.0
        %987 = vmatpush1.msra.mxu0 %v962
        %988 = vmatprep.subr.mxu0 0.0
        %989 = vmatpush1.msra.mxu0 %v963
        %990 = vmatprep.subr.mxu0 0.0
        %991 = vmatpush1.msra.mxu0 %v964
        %992 = vmatprep.subr.mxu0 0.0
        %993 = vmatpush1.msra.mxu0 %v965
        %994 = vmatprep.subr.mxu0 0.0
        %995 = vmatpush1.msra.mxu0 %v966
        %996 = vmatprep.subr.mxu0 0.0
        %997 = vmatpush1.msra.mxu0 %v967
        %998 = vmatprep.subr.mxu0 0.0
        %999 = vmatpush1.msra.mxu0 %v968
        %1000 = vmatprep.subr.mxu0 0.0
        %1001 = vmatpush1.msra.mxu0 %v969
        %1002 = vmatprep.subr.mxu0 0.0
        %1003 = vmatpush1.msra.mxu0 0.0
        %1004 = vmatprep.subr.mxu0 0.0
        %1005 = vmatpush1.msra.mxu0 0.0
        %1006 = vmatprep.subr.mxu0 0.0
        %1007 = vmatpush1.msra.mxu0 0.0
        %1008 = vmatprep.subr.mxu0 0.0
        %1009 = vmatpush1.msra.mxu0 0.0
        %1010 = vmatprep.subr.mxu0 0.0
        %1011 = vmatpush1.msra.mxu0 0.0
        %1012 = vmatprep.subr.mxu0 0.0
        %1013 = vmatpush1.msra.mxu0 0.0
        %1014 = vmatprep.subr.mxu0 0.0
        %1015 = vmatpush1.msra.mxu0 0.0
        %1016 = vmatprep.subr.mxu0 0.0
        %1017 = vmatpush1.msra.mxu0 0.0
        %1018 = vmatprep.subr.mxu0 0.0
        %1019 = vmatpush1.msra.mxu0 0.0
        %1020 = vmatprep.subr.mxu0 0.0
        %1021 = vmatpush1.msra.mxu0 0.0
        %1022 = vmatprep.subr.mxu0 0.0
        %1023 = vmatpush1.msra.mxu0 0.0
        %1024 = vmatprep.subr.mxu0 0.0
        %1025 = vmatpush1.msra.mxu0 0.0
        %1026 = vmatprep.subr.mxu0 0.0
        %1027 = vmatpush1.msra.mxu0 0.0
        %1028 = vmatprep.subr.mxu0 0.0
        %1029 = vmatpush1.msra.mxu0 0.0
        %1030 = vmatprep.subr.mxu0 0.0
        %1031 = vmatpush1.msra.mxu0 0.0
        %1032 = vmatprep.subr.mxu0 0.0
        %1033 = vmatpush1.msra.mxu0 0.0
        %1034 = vmatprep.mubr.f32.mxu0 0.0
        %1035 = vmatmul.mubr.f32.gmra.mrb[0].mxu0 %v843
        %v1036 = vpop.f32.mrb[0].mxu0
        %v1037 = vadd.f32 0.0, %v1036
        %v1038 = vpop.f32.mrb[0].mxu0
        %1039 = vmatprep.mubr.f32.mxu0 0.0
        %1040 = vmatmul.mubr.f32.gmra.mrb[0].mxu0 %v845
        %v1041 = vpop.f32.mrb[0].mxu0
        %v1042 = vadd.f32 0.0, %v1041
        %v1043 = vpop.f32.mrb[0].mxu0
        %1044 = vmatprep.mubr.f32.mxu0 0.0
        %1045 = vmatmul.mubr.f32.gmra.mrb[0].mxu0 %v848
        %v1046 = vpop.f32.mrb[0].mxu0
        %v1047 = vadd.f32 0.0, %v1046
        %v1048 = vpop.f32.mrb[0].mxu0
        %1049 = vmatprep.mubr.f32.mxu0 0.0
        %1050 = vmatmul.mubr.f32.gmra.mrb[0].mxu0 %v850
        %v1051 = vpop.f32.mrb[0].mxu0
        %v1052 = vadd.f32 0.0, %v1051
        %v1053 = vpop.f32.mrb[0].mxu0
        %1054 = vmatprep.mubr.f32.mxu0 0.0
        %1055 = vmatmul.mubr.f32.gmra.mrb[0].mxu0 %v853
        %v1056 = vpop.f32.mrb[0].mxu0
        %v1057 = vadd.f32 0.0, %v1056
        %v1058 = vpop.f32.mrb[0].mxu0
        %1059 = vmatprep.mubr.f32.mxu0 0.0
        %1060 = vmatmul.mubr.f32.gmra.mrb[0].mxu0 %v855
        %v1061 = vpop.f32.mrb[0].mxu0
        %v1062 = vadd.f32 0.0, %v1061
        %v1063 = vpop.f32.mrb[0].mxu0
        %1064 = vmatprep.mubr.f32.mxu0 0.0
        %1065 = vmatmul.mubr.f32.gmra.mrb[0].mxu0 %v858
        %v1066 = vpop.f32.mrb[0].mxu0
        %v1067 = vadd.f32 0.0, %v1066
        %v1068 = vpop.f32.mrb[0].mxu0
        %1069 = vmatprep.mubr.f32.mxu0 0.0
        %1070 = vmatmul.mubr.f32.gmra.mrb[0].mxu0 %v860
        %v1071 = vpop.f32.mrb[0].mxu0
        %v1072 = vadd.f32 0.0, %v1071
        %v1073 = vpop.f32.mrb[0].mxu0
        %1074 = vmatprep.mubr.f32.mxu0 0.0
        %1075 = vmatmul.mubr.f32.gmra.mrb[0].mxu0 %v863
        %v1076 = vpop.f32.mrb[0].mxu0
        %v1077 = vadd.f32 0.0, %v1076
        %v1078 = vpop.f32.mrb[0].mxu0
        %1079 = vmatprep.mubr.f32.mxu0 0.0
        %1080 = vmatmul.mubr.f32.gmra.mrb[0].mxu0 %v865
        %v1081 = vpop.f32.mrb[0].mxu0
        %v1082 = vadd.f32 0.0, %v1081
        %v1083 = vpop.f32.mrb[0].mxu0
        %1084 = vmatprep.mubr.f32.mxu0 0.0
        %1085 = vmatmul.mubr.f32.gmra.mrb[0].mxu0 %v868
        %v1086 = vpop.f32.mrb[0].mxu0
        %v1087 = vadd.f32 0.0, %v1086
        %v1088 = vpop.f32.mrb[0].mxu0
        %1089 = vmatprep.mubr.f32.mxu0 0.0
        %1090 = vmatmul.mubr.f32.gmra.mrb[0].mxu0 %v870
        %v1091 = vpop.f32.mrb[0].mxu0
        %v1092 = vadd.f32 0.0, %v1091
        %v1093 = vpop.f32.mrb[0].mxu0
        %1094 = vmatprep.mubr.f32.mxu0 0.0
        %1095 = vmatmul.mubr.f32.gmra.mrb[0].mxu0 %v873
        %v1096 = vpop.f32.mrb[0].mxu0
        %v1097 = vadd.f32 0.0, %v1096
        %v1098 = vpop.f32.mrb[0].mxu0
        %1099 = vmatprep.mubr.f32.mxu0 0.0
        %1100 = vmatmul.mubr.f32.gmra.mrb[0].mxu0 %v875
        %v1101 = vpop.f32.mrb[0].mxu0
        %v1102 = vadd.f32 0.0, %v1101
        %v1103 = vpop.f32.mrb[0].mxu0
        %1104 = vmatprep.mubr.f32.mxu0 0.0
        %1105 = vmatmul.mubr.f32.gmra.mrb[0].mxu0 %v878
        %v1106 = vpop.f32.mrb[0].mxu0
        %v1107 = vadd.f32 0.0, %v1106
        %v1108 = vpop.f32.mrb[0].mxu0
        %1109 = vmatprep.mubr.f32.mxu0 0.0
        %1110 = vmatmul.mubr.f32.gmra.mrb[0].mxu0 %v880
        %v1111 = vpop.f32.mrb[0].mxu0
        %v1112 = vadd.f32 0.0, %v1111
        %v1113 = vpop.f32.mrb[0].mxu0
        %1114 = vmatprep.mubr.f32.mxu0 0.0
        %1115 = vmatmul.mubr.f32.gmra.mrb[0].mxu0 %v883
        %v1116 = vpop.f32.mrb[0].mxu0
        %v1117 = vadd.f32 0.0, %v1116
        %v1118 = vpop.f32.mrb[0].mxu0
        %1119 = vmatprep.mubr.f32.mxu0 0.0
        %1120 = vmatmul.mubr.f32.gmra.mrb[0].mxu0 %v885
        %v1121 = vpop.f32.mrb[0].mxu0
        %v1122 = vadd.f32 0.0, %v1121
        %v1123 = vpop.f32.mrb[0].mxu0
        %1124 = vmatprep.mubr.f32.mxu0 0.0
        %1125 = vmatmul.mubr.f32.gmra.mrb[0].mxu0 %v888
        %v1126 = vpop.f32.mrb[0].mxu0
        %v1127 = vadd.f32 0.0, %v1126
        %v1128 = vpop.f32.mrb[0].mxu0
        %1129 = vmatprep.mubr.f32.mxu0 0.0
        %1130 = vmatmul.mubr.f32.gmra.mrb[0].mxu0 %v890
        %v1131 = vpop.f32.mrb[0].mxu0
        %v1132 = vadd.f32 0.0, %v1131
        %v1133 = vpop.f32.mrb[0].mxu0
        %1134 = vmatprep.mubr.f32.mxu0 0.0
        %1135 = vmatmul.mubr.f32.gmra.mrb[0].mxu0 %v893
        %v1136 = vpop.f32.mrb[0].mxu0
        %v1137 = vadd.f32 0.0, %v1136
        %v1138 = vpop.f32.mrb[0].mxu0
        %1139 = vmatprep.mubr.f32.mxu0 0.0
        %1140 = vmatmul.mubr.f32.gmra.mrb[0].mxu0 %v895
        %v1141 = vpop.f32.mrb[0].mxu0
        %v1142 = vadd.f32 0.0, %v1141
        %v1143 = vpop.f32.mrb[0].mxu0
        %1144 = vmatprep.mubr.f32.mxu0 0.0
        %1145 = vmatmul.mubr.f32.gmra.mrb[0].mxu0 %v898
        %v1146 = vpop.f32.mrb[0].mxu0
        %v1147 = vadd.f32 0.0, %v1146
        %v1148 = vpop.f32.mrb[0].mxu0
        %1149 = vmatprep.mubr.f32.mxu0 0.0
        %1150 = vmatmul.mubr.f32.gmra.mrb[0].mxu0 %v900
        %v1151 = vpop.f32.mrb[0].mxu0
        %v1152 = vadd.f32 0.0, %v1151
        %v1153 = vpop.f32.mrb[0].mxu0
        %1154 = vmatprep.mubr.f32.mxu0 0.0
        %1155 = vmatmul.mubr.f32.gmra.mrb[0].mxu0 %v903
        %v1156 = vpop.f32.mrb[0].mxu0
        %v1157 = vadd.f32 0.0, %v1156
        %v1158 = vpop.f32.mrb[0].mxu0
        %1159 = vmatprep.mubr.f32.mxu0 0.0
        %1160 = vmatmul.mubr.f32.gmra.mrb[0].mxu0 %v905
        %v1161 = vpop.f32.mrb[0].mxu0
        %v1162 = vadd.f32 0.0, %v1161
        %v1163 = vpop.f32.mrb[0].mxu0
        %1164 = vmatprep.mubr.f32.mxu0 0.0
        %1165 = vmatmul.mubr.f32.gmra.mrb[0].mxu0 %v908
        %v1166 = vpop.f32.mrb[0].mxu0
        %v1167 = vadd.f32 0.0, %v1166
        %v1168 = vpop.f32.mrb[0].mxu0
        %1169 = vmatprep.mubr.f32.mxu0 0.0
        %1170 = vmatmul.mubr.f32.gmra.mrb[0].mxu0 %v910
        %v1171 = vpop.f32.mrb[0].mxu0
        %v1172 = vadd.f32 0.0, %v1171
        %v1173 = vpop.f32.mrb[0].mxu0
        %1174 = vmatprep.mubr.f32.mxu0 0.0
        %1175 = vmatmul.mubr.f32.gmra.mrb[0].mxu0 %v913
        %v1176 = vpop.f32.mrb[0].mxu0
        %v1177 = vadd.f32 0.0, %v1176
        %v1178 = vpop.f32.mrb[0].mxu0
        %1179 = vmatprep.mubr.f32.mxu0 0.0
        %1180 = vmatmul.mubr.f32.gmra.mrb[0].mxu0 %v915
        %v1181 = vpop.f32.mrb[0].mxu0
        %v1182 = vadd.f32 0.0, %v1181
        %v1183 = vpop.f32.mrb[0].mxu0
        %1184 = vmatprep.mubr.f32.mxu0 0.0
        %1185 = vmatmul.mubr.f32.gmra.mrb[0].mxu0 %v918
        %v1186 = vpop.f32.mrb[0].mxu0
        %v1187 = vadd.f32 0.0, %v1186
        %v1188 = vpop.f32.mrb[0].mxu0
        %1189 = vmatprep.mubr.f32.mxu0 0.0
        %1190 = vmatmul.mubr.f32.gmra.mrb[0].mxu0 %v920
        %v1191 = vpop.f32.mrb[0].mxu0
        %v1192 = vadd.f32 0.0, %v1191
        %v1193 = vpop.f32.mrb[0].mxu0
        %1194 = vdwg.mxu0
        %v1195 = vadd.f32 %v682, %v1037
        %v1196 = vadd.f32 %v687, %v1042
        %v1197 = vadd.f32 %v692, %v1047
        %v1198 = vadd.f32 %v697, %v1052
        %v1199 = vadd.f32 %v702, %v1057
        %v1200 = vadd.f32 %v707, %v1062
        %v1201 = vadd.f32 %v712, %v1067
        %v1202 = vadd.f32 %v717, %v1072
        %v1203 = vadd.f32 %v722, %v1077
        %v1204 = vadd.f32 %v727, %v1082
        %v1205 = vadd.f32 %v732, %v1087
        %v1206 = vadd.f32 %v737, %v1092
        %v1207 = vadd.f32 %v742, %v1097
        %v1208 = vadd.f32 %v747, %v1102
        %v1209 = vadd.f32 %v752, %v1107
        %v1210 = vadd.f32 %v757, %v1112
        %v1211 = vadd.f32 %v762, %v1117
        %v1212 = vadd.f32 %v767, %v1122
        %v1213 = vadd.f32 %v772, %v1127
        %v1214 = vadd.f32 %v777, %v1132
        %v1215 = vadd.f32 %v782, %v1137
        %v1216 = vadd.f32 %v787, %v1142
        %v1217 = vadd.f32 %v792, %v1147
        %v1218 = vadd.f32 %v797, %v1152
        %v1219 = vadd.f32 %v802, %v1157
        %v1220 = vadd.f32 %v807, %v1162
        %v1221 = vadd.f32 %v812, %v1167
        %v1222 = vadd.f32 %v817, %v1172
        %v1223 = vadd.f32 %v822, %v1177
        %v1224 = vadd.f32 %v827, %v1182
        %v1225 = vadd.f32 %v832, %v1187
        %v1226 = vadd.f32 %v837, %v1192
        %s1227 = scalar_lea.vmem %s1, 384
        %v1228 = vld [vmem:[%s1227] sm:$0xff]
        %v1229 = vld [vmem:[%s1227 + $0x8] sm:$0xff]
        %v1230 = vld [vmem:[%s1227 + $0x10] sm:$0xff]
        %v1231 = vld [vmem:[%s1227 + $0x18] sm:$0xff]
        %v1232 = vld [vmem:[%s1227 + $0x20] sm:$0xff]
        %v1233 = vld [vmem:[%s1227 + $0x28] sm:$0xff]
        %v1234 = vld [vmem:[%s1227 + $0x30] sm:$0xff]
        %v1235 = vld [vmem:[%s1227 + $0x38] sm:$0xff]
        %v1236 = vld [vmem:[%s1227 + $0x40] sm:$0xff]
        %v1237 = vld [vmem:[%s1227 + $0x48] sm:$0xff]
        %v1238 = vld [vmem:[%s1227 + $0x50] sm:$0xff]
        %v1239 = vld [vmem:[%s1227 + $0x58] sm:$0xff]
        %v1240 = vld [vmem:[%s1227 + $0x60] sm:$0xff]
        %v1241 = vld [vmem:[%s1227 + $0x68] sm:$0xff]
        %v1242 = vld [vmem:[%s1227 + $0x70] sm:$0xff]
        %v1243 = vld [vmem:[%s1227 + $0x78] sm:$0xff]
        %1244 = vmatprep.subr.mxu0 0.0
        %1245 = vmatpush1.msra.mxu0 %v1228
        %1246 = vmatprep.subr.mxu0 0.0
        %1247 = vmatpush1.msra.mxu0 %v1229
        %1248 = vmatprep.subr.mxu0 0.0
        %1249 = vmatpush1.msra.mxu0 %v1230
        %1250 = vmatprep.subr.mxu0 0.0
        %1251 = vmatpush1.msra.mxu0 %v1231
        %1252 = vmatprep.subr.mxu0 0.0
        %1253 = vmatpush1.msra.mxu0 %v1232
        %1254 = vmatprep.subr.mxu0 0.0
        %1255 = vmatpush1.msra.mxu0 %v1233
        %1256 = vmatprep.subr.mxu0 0.0
        %1257 = vmatpush1.msra.mxu0 %v1234
        %1258 = vmatprep.subr.mxu0 0.0
        %1259 = vmatpush1.msra.mxu0 %v1235
        %1260 = vmatprep.subr.mxu0 0.0
        %1261 = vmatpush1.msra.mxu0 %v1236
        %1262 = vmatprep.subr.mxu0 0.0
        %1263 = vmatpush1.msra.mxu0 %v1237
        %1264 = vmatprep.subr.mxu0 0.0
        %1265 = vmatpush1.msra.mxu0 %v1238
        %1266 = vmatprep.subr.mxu0 0.0
        %1267 = vmatpush1.msra.mxu0 %v1239
        %1268 = vmatprep.subr.mxu0 0.0
        %1269 = vmatpush1.msra.mxu0 %v1240
        %1270 = vmatprep.subr.mxu0 0.0
        %1271 = vmatpush1.msra.mxu0 %v1241
        %1272 = vmatprep.subr.mxu0 0.0
        %1273 = vmatpush1.msra.mxu0 %v1242
        %1274 = vmatprep.subr.mxu0 0.0
        %1275 = vmatpush1.msra.mxu0 %v1243
        %1276 = vmatprep.subr.mxu0 0.0
        %1277 = vmatpush1.msra.mxu0 0.0
        %1278 = vmatprep.subr.mxu0 0.0
        %1279 = vmatpush1.msra.mxu0 0.0
        %1280 = vmatprep.subr.mxu0 0.0
        %1281 = vmatpush1.msra.mxu0 0.0
        %1282 = vmatprep.subr.mxu0 0.0
        %1283 = vmatpush1.msra.mxu0 0.0
        %1284 = vmatprep.subr.mxu0 0.0
        %1285 = vmatpush1.msra.mxu0 0.0
        %1286 = vmatprep.subr.mxu0 0.0
        %1287 = vmatpush1.msra.mxu0 0.0
        %1288 = vmatprep.subr.mxu0 0.0
        %1289 = vmatpush1.msra.mxu0 0.0
        %1290 = vmatprep.subr.mxu0 0.0
        %1291 = vmatpush1.msra.mxu0 0.0
        %1292 = vmatprep.subr.mxu0 0.0
        %1293 = vmatpush1.msra.mxu0 0.0
        %1294 = vmatprep.subr.mxu0 0.0
        %1295 = vmatpush1.msra.mxu0 0.0
        %1296 = vmatprep.subr.mxu0 0.0
        %1297 = vmatpush1.msra.mxu0 0.0
        %1298 = vmatprep.subr.mxu0 0.0
        %1299 = vmatpush1.msra.mxu0 0.0
        %1300 = vmatprep.subr.mxu0 0.0
        %1301 = vmatpush1.msra.mxu0 0.0
        %1302 = vmatprep.subr.mxu0 0.0
        %1303 = vmatpush1.msra.mxu0 0.0
        %1304 = vmatprep.subr.mxu0 0.0
        %1305 = vmatpush1.msra.mxu0 0.0
        %1306 = vmatprep.subr.mxu0 0.0
        %1307 = vmatpush1.msra.mxu0 0.0
        %1308 = vmatprep.mubr.f32.mxu0 0.0
        %1309 = vmatmul.mubr.f32.gmra.mrb[0].mxu0 %v145
        %v1310 = vpop.f32.mrb[0].mxu0
        %v1311 = vadd.f32 0.0, %v1310
        %v1312 = vpop.f32.mrb[0].mxu0
        %1313 = vmatprep.mubr.f32.mxu0 0.0
        %1314 = vmatmul.mubr.f32.gmra.mrb[0].mxu0 %v146
        %v1315 = vpop.f32.mrb[0].mxu0
        %v1316 = vadd.f32 0.0, %v1315
        %v1317 = vpop.f32.mrb[0].mxu0
        %1318 = vmatprep.mubr.f32.mxu0 0.0
        %1319 = vmatmul.mubr.f32.gmra.mrb[0].mxu0 %v148
        %v1320 = vpop.f32.mrb[0].mxu0
        %v1321 = vadd.f32 0.0, %v1320
        %v1322 = vpop.f32.mrb[0].mxu0
        %1323 = vmatprep.mubr.f32.mxu0 0.0
        %1324 = vmatmul.mubr.f32.gmra.mrb[0].mxu0 %v149
        %v1325 = vpop.f32.mrb[0].mxu0
        %v1326 = vadd.f32 0.0, %v1325
        %v1327 = vpop.f32.mrb[0].mxu0
        %1328 = vmatprep.mubr.f32.mxu0 0.0
        %1329 = vmatmul.mubr.f32.gmra.mrb[0].mxu0 %v151
        %v1330 = vpop.f32.mrb[0].mxu0
        %v1331 = vadd.f32 0.0, %v1330
        %v1332 = vpop.f32.mrb[0].mxu0
        %1333 = vmatprep.mubr.f32.mxu0 0.0
        %1334 = vmatmul.mubr.f32.gmra.mrb[0].mxu0 %v152
        %v1335 = vpop.f32.mrb[0].mxu0
        %v1336 = vadd.f32 0.0, %v1335
        %v1337 = vpop.f32.mrb[0].mxu0
        %1338 = vmatprep.mubr.f32.mxu0 0.0
        %1339 = vmatmul.mubr.f32.gmra.mrb[0].mxu0 %v154
        %v1340 = vpop.f32.mrb[0].mxu0
        %v1341 = vadd.f32 0.0, %v1340
        %v1342 = vpop.f32.mrb[0].mxu0
        %1343 = vmatprep.mubr.f32.mxu0 0.0
        %1344 = vmatmul.mubr.f32.gmra.mrb[0].mxu0 %v155
        %v1345 = vpop.f32.mrb[0].mxu0
        %v1346 = vadd.f32 0.0, %v1345
        %v1347 = vpop.f32.mrb[0].mxu0
        %1348 = vmatprep.mubr.f32.mxu0 0.0
        %1349 = vmatmul.mubr.f32.gmra.mrb[0].mxu0 %v157
        %v1350 = vpop.f32.mrb[0].mxu0
        %v1351 = vadd.f32 0.0, %v1350
        %v1352 = vpop.f32.mrb[0].mxu0
        %1353 = vmatprep.mubr.f32.mxu0 0.0
        %1354 = vmatmul.mubr.f32.gmra.mrb[0].mxu0 %v158
        %v1355 = vpop.f32.mrb[0].mxu0
        %v1356 = vadd.f32 0.0, %v1355
        %v1357 = vpop.f32.mrb[0].mxu0
        %1358 = vmatprep.mubr.f32.mxu0 0.0
        %1359 = vmatmul.mubr.f32.gmra.mrb[0].mxu0 %v160
        %v1360 = vpop.f32.mrb[0].mxu0
        %v1361 = vadd.f32 0.0, %v1360
        %v1362 = vpop.f32.mrb[0].mxu0
        %1363 = vmatprep.mubr.f32.mxu0 0.0
        %1364 = vmatmul.mubr.f32.gmra.mrb[0].mxu0 %v161
        %v1365 = vpop.f32.mrb[0].mxu0
        %v1366 = vadd.f32 0.0, %v1365
        %v1367 = vpop.f32.mrb[0].mxu0
        %1368 = vmatprep.mubr.f32.mxu0 0.0
        %1369 = vmatmul.mubr.f32.gmra.mrb[0].mxu0 %v163
        %v1370 = vpop.f32.mrb[0].mxu0
        %v1371 = vadd.f32 0.0, %v1370
        %v1372 = vpop.f32.mrb[0].mxu0
        %1373 = vmatprep.mubr.f32.mxu0 0.0
        %1374 = vmatmul.mubr.f32.gmra.mrb[0].mxu0 %v164
        %v1375 = vpop.f32.mrb[0].mxu0
        %v1376 = vadd.f32 0.0, %v1375
        %v1377 = vpop.f32.mrb[0].mxu0
        %1378 = vmatprep.mubr.f32.mxu0 0.0
        %1379 = vmatmul.mubr.f32.gmra.mrb[0].mxu0 %v166
        %v1380 = vpop.f32.mrb[0].mxu0
        %v1381 = vadd.f32 0.0, %v1380
        %v1382 = vpop.f32.mrb[0].mxu0
        %1383 = vmatprep.mubr.f32.mxu0 0.0
        %1384 = vmatmul.mubr.f32.gmra.mrb[0].mxu0 %v167
        %v1385 = vpop.f32.mrb[0].mxu0
        %v1386 = vadd.f32 0.0, %v1385
        %v1387 = vpop.f32.mrb[0].mxu0
        %1388 = vmatprep.mubr.f32.mxu0 0.0
        %1389 = vmatmul.mubr.f32.gmra.mrb[0].mxu0 %v169
        %v1390 = vpop.f32.mrb[0].mxu0
        %v1391 = vadd.f32 0.0, %v1390
        %v1392 = vpop.f32.mrb[0].mxu0
        %1393 = vmatprep.mubr.f32.mxu0 0.0
        %1394 = vmatmul.mubr.f32.gmra.mrb[0].mxu0 %v170
        %v1395 = vpop.f32.mrb[0].mxu0
        %v1396 = vadd.f32 0.0, %v1395
        %v1397 = vpop.f32.mrb[0].mxu0
        %1398 = vmatprep.mubr.f32.mxu0 0.0
        %1399 = vmatmul.mubr.f32.gmra.mrb[0].mxu0 %v172
        %v1400 = vpop.f32.mrb[0].mxu0
        %v1401 = vadd.f32 0.0, %v1400
        %v1402 = vpop.f32.mrb[0].mxu0
        %1403 = vmatprep.mubr.f32.mxu0 0.0
        %1404 = vmatmul.mubr.f32.gmra.mrb[0].mxu0 %v173
        %v1405 = vpop.f32.mrb[0].mxu0
        %v1406 = vadd.f32 0.0, %v1405
        %v1407 = vpop.f32.mrb[0].mxu0
        %1408 = vmatprep.mubr.f32.mxu0 0.0
        %1409 = vmatmul.mubr.f32.gmra.mrb[0].mxu0 %v175
        %v1410 = vpop.f32.mrb[0].mxu0
        %v1411 = vadd.f32 0.0, %v1410
        %v1412 = vpop.f32.mrb[0].mxu0
        %1413 = vmatprep.mubr.f32.mxu0 0.0
        %1414 = vmatmul.mubr.f32.gmra.mrb[0].mxu0 %v176
        %v1415 = vpop.f32.mrb[0].mxu0
        %v1416 = vadd.f32 0.0, %v1415
        %v1417 = vpop.f32.mrb[0].mxu0
        %1418 = vmatprep.mubr.f32.mxu0 0.0
        %1419 = vmatmul.mubr.f32.gmra.mrb[0].mxu0 %v178
        %v1420 = vpop.f32.mrb[0].mxu0
        %v1421 = vadd.f32 0.0, %v1420
        %v1422 = vpop.f32.mrb[0].mxu0
        %1423 = vmatprep.mubr.f32.mxu0 0.0
        %1424 = vmatmul.mubr.f32.gmra.mrb[0].mxu0 %v179
        %v1425 = vpop.f32.mrb[0].mxu0
        %v1426 = vadd.f32 0.0, %v1425
        %v1427 = vpop.f32.mrb[0].mxu0
        %1428 = vmatprep.mubr.f32.mxu0 0.0
        %1429 = vmatmul.mubr.f32.gmra.mrb[0].mxu0 %v181
        %v1430 = vpop.f32.mrb[0].mxu0
        %v1431 = vadd.f32 0.0, %v1430
        %v1432 = vpop.f32.mrb[0].mxu0
        %1433 = vmatprep.mubr.f32.mxu0 0.0
        %1434 = vmatmul.mubr.f32.gmra.mrb[0].mxu0 %v182
        %v1435 = vpop.f32.mrb[0].mxu0
        %v1436 = vadd.f32 0.0, %v1435
        %v1437 = vpop.f32.mrb[0].mxu0
        %1438 = vmatprep.mubr.f32.mxu0 0.0
        %1439 = vmatmul.mubr.f32.gmra.mrb[0].mxu0 %v184
        %v1440 = vpop.f32.mrb[0].mxu0
        %v1441 = vadd.f32 0.0, %v1440
        %v1442 = vpop.f32.mrb[0].mxu0
        %1443 = vmatprep.mubr.f32.mxu0 0.0
        %1444 = vmatmul.mubr.f32.gmra.mrb[0].mxu0 %v185
        %v1445 = vpop.f32.mrb[0].mxu0
        %v1446 = vadd.f32 0.0, %v1445
        %v1447 = vpop.f32.mrb[0].mxu0
        %1448 = vmatprep.mubr.f32.mxu0 0.0
        %1449 = vmatmul.mubr.f32.gmra.mrb[0].mxu0 %v187
        %v1450 = vpop.f32.mrb[0].mxu0
        %v1451 = vadd.f32 0.0, %v1450
        %v1452 = vpop.f32.mrb[0].mxu0
        %1453 = vmatprep.mubr.f32.mxu0 0.0
        %1454 = vmatmul.mubr.f32.gmra.mrb[0].mxu0 %v188
        %v1455 = vpop.f32.mrb[0].mxu0
        %v1456 = vadd.f32 0.0, %v1455
        %v1457 = vpop.f32.mrb[0].mxu0
        %1458 = vmatprep.mubr.f32.mxu0 0.0
        %1459 = vmatmul.mubr.f32.gmra.mrb[0].mxu0 %v190
        %v1460 = vpop.f32.mrb[0].mxu0
        %v1461 = vadd.f32 0.0, %v1460
        %v1462 = vpop.f32.mrb[0].mxu0
        %1463 = vmatprep.mubr.f32.mxu0 0.0
        %1464 = vmatmul.mubr.f32.gmra.mrb[0].mxu0 %v191
        %v1465 = vpop.f32.mrb[0].mxu0
        %v1466 = vadd.f32 0.0, %v1465
        %v1467 = vpop.f32.mrb[0].mxu0
        %1468 = vdwg.mxu0
        %v1469 = vadd.f32 %v1195, %v1311
        %v1470 = vadd.f32 %v1196, %v1316
        %v1471 = vadd.f32 %v1197, %v1321
        %v1472 = vadd.f32 %v1198, %v1326
        %v1473 = vadd.f32 %v1199, %v1331
        %v1474 = vadd.f32 %v1200, %v1336
        %v1475 = vadd.f32 %v1201, %v1341
        %v1476 = vadd.f32 %v1202, %v1346
        %v1477 = vadd.f32 %v1203, %v1351
        %v1478 = vadd.f32 %v1204, %v1356
        %v1479 = vadd.f32 %v1205, %v1361
        %v1480 = vadd.f32 %v1206, %v1366
        %v1481 = vadd.f32 %v1207, %v1371
        %v1482 = vadd.f32 %v1208, %v1376
        %v1483 = vadd.f32 %v1209, %v1381
        %v1484 = vadd.f32 %v1210, %v1386
        %v1485 = vadd.f32 %v1211, %v1391
        %v1486 = vadd.f32 %v1212, %v1396
        %v1487 = vadd.f32 %v1213, %v1401
        %v1488 = vadd.f32 %v1214, %v1406
        %v1489 = vadd.f32 %v1215, %v1411
        %v1490 = vadd.f32 %v1216, %v1416
        %v1491 = vadd.f32 %v1217, %v1421
        %v1492 = vadd.f32 %v1218, %v1426
        %v1493 = vadd.f32 %v1219, %v1431
        %v1494 = vadd.f32 %v1220, %v1436
        %v1495 = vadd.f32 %v1221, %v1441
        %v1496 = vadd.f32 %v1222, %v1446
        %v1497 = vadd.f32 %v1223, %v1451
        %v1498 = vadd.f32 %v1224, %v1456
        %v1499 = vadd.f32 %v1225, %v1461
        %v1500 = vadd.f32 %v1226, %v1466
        %v1504 = vrot.slane %v190, 1
        %v1505 = vrot.slane %v191, 1
        %v1506 = vsel %vm260, %v1504, %v1505
        %v1507 = vrot.slane %v192, 1
        %v1508 = vsel %vm260, %v1505, %v1507
        %s1511 = scalar_lea.vmem %s1, 512
        %v1512 = vld [vmem:[%s1511] sm:$0xff]
        %v1513 = vld [vmem:[%s1511 + $0x8] sm:$0xff]
        %v1514 = vld [vmem:[%s1511 + $0x10] sm:$0xff]
        %v1515 = vld [vmem:[%s1511 + $0x18] sm:$0xff]
        %v1516 = vld [vmem:[%s1511 + $0x20] sm:$0xff]
        %v1517 = vld [vmem:[%s1511 + $0x28] sm:$0xff]
        %v1518 = vld [vmem:[%s1511 + $0x30] sm:$0xff]
        %v1519 = vld [vmem:[%s1511 + $0x38] sm:$0xff]
        %v1520 = vld [vmem:[%s1511 + $0x40] sm:$0xff]
        %v1521 = vld [vmem:[%s1511 + $0x48] sm:$0xff]
        %v1522 = vld [vmem:[%s1511 + $0x50] sm:$0xff]
        %v1523 = vld [vmem:[%s1511 + $0x58] sm:$0xff]
        %v1524 = vld [vmem:[%s1511 + $0x60] sm:$0xff]
        %v1525 = vld [vmem:[%s1511 + $0x68] sm:$0xff]
        %v1526 = vld [vmem:[%s1511 + $0x70] sm:$0xff]
        %v1527 = vld [vmem:[%s1511 + $0x78] sm:$0xff]
        %1528 = vmatprep.subr.mxu0 0.0
        %1529 = vmatpush1.msra.mxu0 %v1512
        %1530 = vmatprep.subr.mxu0 0.0
        %1531 = vmatpush1.msra.mxu0 %v1513
        %1532 = vmatprep.subr.mxu0 0.0
        %1533 = vmatpush1.msra.mxu0 %v1514
        %1534 = vmatprep.subr.mxu0 0.0
        %1535 = vmatpush1.msra.mxu0 %v1515
        %1536 = vmatprep.subr.mxu0 0.0
        %1537 = vmatpush1.msra.mxu0 %v1516
        %1538 = vmatprep.subr.mxu0 0.0
        %1539 = vmatpush1.msra.mxu0 %v1517
        %1540 = vmatprep.subr.mxu0 0.0
        %1541 = vmatpush1.msra.mxu0 %v1518
        %1542 = vmatprep.subr.mxu0 0.0
        %1543 = vmatpush1.msra.mxu0 %v1519
        %1544 = vmatprep.subr.mxu0 0.0
        %1545 = vmatpush1.msra.mxu0 %v1520
        %1546 = vmatprep.subr.mxu0 0.0
        %1547 = vmatpush1.msra.mxu0 %v1521
        %1548 = vmatprep.subr.mxu0 0.0
        %1549 = vmatpush1.msra.mxu0 %v1522
        %1550 = vmatprep.subr.mxu0 0.0
        %1551 = vmatpush1.msra.mxu0 %v1523
        %1552 = vmatprep.subr.mxu0 0.0
        %1553 = vmatpush1.msra.mxu0 %v1524
        %1554 = vmatprep.subr.mxu0 0.0
        %1555 = vmatpush1.msra.mxu0 %v1525
        %1556 = vmatprep.subr.mxu0 0.0
        %1557 = vmatpush1.msra.mxu0 %v1526
        %1558 = vmatprep.subr.mxu0 0.0
        %1559 = vmatpush1.msra.mxu0 %v1527
        %1560 = vmatprep.subr.mxu0 0.0
        %1561 = vmatpush1.msra.mxu0 0.0
        %1562 = vmatprep.subr.mxu0 0.0
        %1563 = vmatpush1.msra.mxu0 0.0
        %1564 = vmatprep.subr.mxu0 0.0
        %1565 = vmatpush1.msra.mxu0 0.0
        %1566 = vmatprep.subr.mxu0 0.0
        %1567 = vmatpush1.msra.mxu0 0.0
        %1568 = vmatprep.subr.mxu0 0.0
        %1569 = vmatpush1.msra.mxu0 0.0
        %1570 = vmatprep.subr.mxu0 0.0
        %1571 = vmatpush1.msra.mxu0 0.0
        %1572 = vmatprep.subr.mxu0 0.0
        %1573 = vmatpush1.msra.mxu0 0.0
        %1574 = vmatprep.subr.mxu0 0.0
        %1575 = vmatpush1.msra.mxu0 0.0
        %1576 = vmatprep.subr.mxu0 0.0
        %1577 = vmatpush1.msra.mxu0 0.0
        %1578 = vmatprep.subr.mxu0 0.0
        %1579 = vmatpush1.msra.mxu0 0.0
        %1580 = vmatprep.subr.mxu0 0.0
        %1581 = vmatpush1.msra.mxu0 0.0
        %1582 = vmatprep.subr.mxu0 0.0
        %1583 = vmatpush1.msra.mxu0 0.0
        %1584 = vmatprep.subr.mxu0 0.0
        %1585 = vmatpush1.msra.mxu0 0.0
        %1586 = vmatprep.subr.mxu0 0.0
        %1587 = vmatpush1.msra.mxu0 0.0
        %1588 = vmatprep.subr.mxu0 0.0
        %1589 = vmatpush1.msra.mxu0 0.0
        %1590 = vmatprep.subr.mxu0 0.0
        %1591 = vmatpush1.msra.mxu0 0.0
        %1592 = vmatprep.mubr.f32.mxu0 0.0
        %1593 = vmatmul.mubr.f32.gmra.mrb[0].mxu0 %v268
        %v1594 = vpop.f32.mrb[0].mxu0
        %v1595 = vadd.f32 0.0, %v1594
        %v1596 = vpop.f32.mrb[0].mxu0
        %1597 = vmatprep.mubr.f32.mxu0 0.0
        %1598 = vmatmul.mubr.f32.gmra.mrb[0].mxu0 %v270
        %v1599 = vpop.f32.mrb[0].mxu0
        %v1600 = vadd.f32 0.0, %v1599
        %v1601 = vpop.f32.mrb[0].mxu0
        %1602 = vmatprep.mubr.f32.mxu0 0.0
        %1603 = vmatmul.mubr.f32.gmra.mrb[0].mxu0 %v273
        %v1604 = vpop.f32.mrb[0].mxu0
        %v1605 = vadd.f32 0.0, %v1604
        %v1606 = vpop.f32.mrb[0].mxu0
        %1607 = vmatprep.mubr.f32.mxu0 0.0
        %1608 = vmatmul.mubr.f32.gmra.mrb[0].mxu0 %v275
        %v1609 = vpop.f32.mrb[0].mxu0
        %v1610 = vadd.f32 0.0, %v1609
        %v1611 = vpop.f32.mrb[0].mxu0
        %1612 = vmatprep.mubr.f32.mxu0 0.0
        %1613 = vmatmul.mubr.f32.gmra.mrb[0].mxu0 %v278
        %v1614 = vpop.f32.mrb[0].mxu0
        %v1615 = vadd.f32 0.0, %v1614
        %v1616 = vpop.f32.mrb[0].mxu0
        %1617 = vmatprep.mubr.f32.mxu0 0.0
        %1618 = vmatmul.mubr.f32.gmra.mrb[0].mxu0 %v280
        %v1619 = vpop.f32.mrb[0].mxu0
        %v1620 = vadd.f32 0.0, %v1619
        %v1621 = vpop.f32.mrb[0].mxu0
        %1622 = vmatprep.mubr.f32.mxu0 0.0
        %1623 = vmatmul.mubr.f32.gmra.mrb[0].mxu0 %v283
        %v1624 = vpop.f32.mrb[0].mxu0
        %v1625 = vadd.f32 0.0, %v1624
        %v1626 = vpop.f32.mrb[0].mxu0
        %1627 = vmatprep.mubr.f32.mxu0 0.0
        %1628 = vmatmul.mubr.f32.gmra.mrb[0].mxu0 %v285
        %v1629 = vpop.f32.mrb[0].mxu0
        %v1630 = vadd.f32 0.0, %v1629
        %v1631 = vpop.f32.mrb[0].mxu0
        %1632 = vmatprep.mubr.f32.mxu0 0.0
        %1633 = vmatmul.mubr.f32.gmra.mrb[0].mxu0 %v288
        %v1634 = vpop.f32.mrb[0].mxu0
        %v1635 = vadd.f32 0.0, %v1634
        %v1636 = vpop.f32.mrb[0].mxu0
        %1637 = vmatprep.mubr.f32.mxu0 0.0
        %1638 = vmatmul.mubr.f32.gmra.mrb[0].mxu0 %v290
        %v1639 = vpop.f32.mrb[0].mxu0
        %v1640 = vadd.f32 0.0, %v1639
        %v1641 = vpop.f32.mrb[0].mxu0
        %1642 = vmatprep.mubr.f32.mxu0 0.0
        %1643 = vmatmul.mubr.f32.gmra.mrb[0].mxu0 %v293
        %v1644 = vpop.f32.mrb[0].mxu0
        %v1645 = vadd.f32 0.0, %v1644
        %v1646 = vpop.f32.mrb[0].mxu0
        %1647 = vmatprep.mubr.f32.mxu0 0.0
        %1648 = vmatmul.mubr.f32.gmra.mrb[0].mxu0 %v295
        %v1649 = vpop.f32.mrb[0].mxu0
        %v1650 = vadd.f32 0.0, %v1649
        %v1651 = vpop.f32.mrb[0].mxu0
        %1652 = vmatprep.mubr.f32.mxu0 0.0
        %1653 = vmatmul.mubr.f32.gmra.mrb[0].mxu0 %v298
        %v1654 = vpop.f32.mrb[0].mxu0
        %v1655 = vadd.f32 0.0, %v1654
        %v1656 = vpop.f32.mrb[0].mxu0
        %1657 = vmatprep.mubr.f32.mxu0 0.0
        %1658 = vmatmul.mubr.f32.gmra.mrb[0].mxu0 %v300
        %v1659 = vpop.f32.mrb[0].mxu0
        %v1660 = vadd.f32 0.0, %v1659
        %v1661 = vpop.f32.mrb[0].mxu0
        %1662 = vmatprep.mubr.f32.mxu0 0.0
        %1663 = vmatmul.mubr.f32.gmra.mrb[0].mxu0 %v303
        %v1664 = vpop.f32.mrb[0].mxu0
        %v1665 = vadd.f32 0.0, %v1664
        %v1666 = vpop.f32.mrb[0].mxu0
        %1667 = vmatprep.mubr.f32.mxu0 0.0
        %1668 = vmatmul.mubr.f32.gmra.mrb[0].mxu0 %v305
        %v1669 = vpop.f32.mrb[0].mxu0
        %v1670 = vadd.f32 0.0, %v1669
        %v1671 = vpop.f32.mrb[0].mxu0
        %1672 = vmatprep.mubr.f32.mxu0 0.0
        %1673 = vmatmul.mubr.f32.gmra.mrb[0].mxu0 %v308
        %v1674 = vpop.f32.mrb[0].mxu0
        %v1675 = vadd.f32 0.0, %v1674
        %v1676 = vpop.f32.mrb[0].mxu0
        %1677 = vmatprep.mubr.f32.mxu0 0.0
        %1678 = vmatmul.mubr.f32.gmra.mrb[0].mxu0 %v310
        %v1679 = vpop.f32.mrb[0].mxu0
        %v1680 = vadd.f32 0.0, %v1679
        %v1681 = vpop.f32.mrb[0].mxu0
        %1682 = vmatprep.mubr.f32.mxu0 0.0
        %1683 = vmatmul.mubr.f32.gmra.mrb[0].mxu0 %v313
        %v1684 = vpop.f32.mrb[0].mxu0
        %v1685 = vadd.f32 0.0, %v1684
        %v1686 = vpop.f32.mrb[0].mxu0
        %1687 = vmatprep.mubr.f32.mxu0 0.0
        %1688 = vmatmul.mubr.f32.gmra.mrb[0].mxu0 %v315
        %v1689 = vpop.f32.mrb[0].mxu0
        %v1690 = vadd.f32 0.0, %v1689
        %v1691 = vpop.f32.mrb[0].mxu0
        %1692 = vmatprep.mubr.f32.mxu0 0.0
        %1693 = vmatmul.mubr.f32.gmra.mrb[0].mxu0 %v318
        %v1694 = vpop.f32.mrb[0].mxu0
        %v1695 = vadd.f32 0.0, %v1694
        %v1696 = vpop.f32.mrb[0].mxu0
        %1697 = vmatprep.mubr.f32.mxu0 0.0
        %1698 = vmatmul.mubr.f32.gmra.mrb[0].mxu0 %v320
        %v1699 = vpop.f32.mrb[0].mxu0
        %v1700 = vadd.f32 0.0, %v1699
        %v1701 = vpop.f32.mrb[0].mxu0
        %1702 = vmatprep.mubr.f32.mxu0 0.0
        %1703 = vmatmul.mubr.f32.gmra.mrb[0].mxu0 %v323
        %v1704 = vpop.f32.mrb[0].mxu0
        %v1705 = vadd.f32 0.0, %v1704
        %v1706 = vpop.f32.mrb[0].mxu0
        %1707 = vmatprep.mubr.f32.mxu0 0.0
        %1708 = vmatmul.mubr.f32.gmra.mrb[0].mxu0 %v325
        %v1709 = vpop.f32.mrb[0].mxu0
        %v1710 = vadd.f32 0.0, %v1709
        %v1711 = vpop.f32.mrb[0].mxu0
        %1712 = vmatprep.mubr.f32.mxu0 0.0
        %1713 = vmatmul.mubr.f32.gmra.mrb[0].mxu0 %v328
        %v1714 = vpop.f32.mrb[0].mxu0
        %v1715 = vadd.f32 0.0, %v1714
        %v1716 = vpop.f32.mrb[0].mxu0
        %1717 = vmatprep.mubr.f32.mxu0 0.0
        %1718 = vmatmul.mubr.f32.gmra.mrb[0].mxu0 %v330
        %v1719 = vpop.f32.mrb[0].mxu0
        %v1720 = vadd.f32 0.0, %v1719
        %v1721 = vpop.f32.mrb[0].mxu0
        %1722 = vmatprep.mubr.f32.mxu0 0.0
        %1723 = vmatmul.mubr.f32.gmra.mrb[0].mxu0 %v333
        %v1724 = vpop.f32.mrb[0].mxu0
        %v1725 = vadd.f32 0.0, %v1724
        %v1726 = vpop.f32.mrb[0].mxu0
        %1727 = vmatprep.mubr.f32.mxu0 0.0
        %1728 = vmatmul.mubr.f32.gmra.mrb[0].mxu0 %v335
        %v1729 = vpop.f32.mrb[0].mxu0
        %v1730 = vadd.f32 0.0, %v1729
        %v1731 = vpop.f32.mrb[0].mxu0
        %1732 = vmatprep.mubr.f32.mxu0 0.0
        %1733 = vmatmul.mubr.f32.gmra.mrb[0].mxu0 %v338
        %v1734 = vpop.f32.mrb[0].mxu0
        %v1735 = vadd.f32 0.0, %v1734
        %v1736 = vpop.f32.mrb[0].mxu0
        %1737 = vmatprep.mubr.f32.mxu0 0.0
        %1738 = vmatmul.mubr.f32.gmra.mrb[0].mxu0 %v340
        %v1739 = vpop.f32.mrb[0].mxu0
        %v1740 = vadd.f32 0.0, %v1739
        %v1741 = vpop.f32.mrb[0].mxu0
        %1742 = vmatprep.mubr.f32.mxu0 0.0
        %1743 = vmatmul.mubr.f32.gmra.mrb[0].mxu0 %v1506
        %v1744 = vpop.f32.mrb[0].mxu0
        %v1745 = vadd.f32 0.0, %v1744
        %v1746 = vpop.f32.mrb[0].mxu0
        %1747 = vmatprep.mubr.f32.mxu0 0.0
        %1748 = vmatmul.mubr.f32.gmra.mrb[0].mxu0 %v1508
        %v1749 = vpop.f32.mrb[0].mxu0
        %v1750 = vadd.f32 0.0, %v1749
        %v1751 = vpop.f32.mrb[0].mxu0
        %1752 = vdwg.mxu0
        %v1753 = vadd.f32 %v1469, %v1595
        %v1754 = vadd.f32 %v1470, %v1600
        %v1755 = vadd.f32 %v1471, %v1605
        %v1756 = vadd.f32 %v1472, %v1610
        %v1757 = vadd.f32 %v1473, %v1615
        %v1758 = vadd.f32 %v1474, %v1620
        %v1759 = vadd.f32 %v1475, %v1625
        %v1760 = vadd.f32 %v1476, %v1630
        %v1761 = vadd.f32 %v1477, %v1635
        %v1762 = vadd.f32 %v1478, %v1640
        %v1763 = vadd.f32 %v1479, %v1645
        %v1764 = vadd.f32 %v1480, %v1650
        %v1765 = vadd.f32 %v1481, %v1655
        %v1766 = vadd.f32 %v1482, %v1660
        %v1767 = vadd.f32 %v1483, %v1665
        %v1768 = vadd.f32 %v1484, %v1670
        %v1769 = vadd.f32 %v1485, %v1675
        %v1770 = vadd.f32 %v1486, %v1680
        %v1771 = vadd.f32 %v1487, %v1685
        %v1772 = vadd.f32 %v1488, %v1690
        %v1773 = vadd.f32 %v1489, %v1695
        %v1774 = vadd.f32 %v1490, %v1700
        %v1775 = vadd.f32 %v1491, %v1705
        %v1776 = vadd.f32 %v1492, %v1710
        %v1777 = vadd.f32 %v1493, %v1715
        %v1778 = vadd.f32 %v1494, %v1720
        %v1779 = vadd.f32 %v1495, %v1725
        %v1780 = vadd.f32 %v1496, %v1730
        %v1781 = vadd.f32 %v1497, %v1735
        %v1782 = vadd.f32 %v1498, %v1740
        %v1783 = vadd.f32 %v1499, %v1745
        %v1784 = vadd.f32 %v1500, %v1750
        %v1785 = vrot.slane %v190, 2
        %v1786 = vrot.slane %v191, 2
        %v1787 = vsel %vm840, %v1785, %v1786
        %v1788 = vrot.slane %v192, 2
        %v1789 = vsel %vm840, %v1786, %v1788
        %s1792 = scalar_lea.vmem %s1, 640
        %v1793 = vld [vmem:[%s1792] sm:$0xff]
        %v1794 = vld [vmem:[%s1792 + $0x8] sm:$0xff]
        %v1795 = vld [vmem:[%s1792 + $0x10] sm:$0xff]
        %v1796 = vld [vmem:[%s1792 + $0x18] sm:$0xff]
        %v1797 = vld [vmem:[%s1792 + $0x20] sm:$0xff]
        %v1798 = vld [vmem:[%s1792 + $0x28] sm:$0xff]
        %v1799 = vld [vmem:[%s1792 + $0x30] sm:$0xff]
        %v1800 = vld [vmem:[%s1792 + $0x38] sm:$0xff]
        %v1801 = vld [vmem:[%s1792 + $0x40] sm:$0xff]
        %v1802 = vld [vmem:[%s1792 + $0x48] sm:$0xff]
        %v1803 = vld [vmem:[%s1792 + $0x50] sm:$0xff]
        %v1804 = vld [vmem:[%s1792 + $0x58] sm:$0xff]
        %v1805 = vld [vmem:[%s1792 + $0x60] sm:$0xff]
        %v1806 = vld [vmem:[%s1792 + $0x68] sm:$0xff]
        %v1807 = vld [vmem:[%s1792 + $0x70] sm:$0xff]
        %v1808 = vld [vmem:[%s1792 + $0x78] sm:$0xff]
        %1809 = vmatprep.subr.mxu0 0.0
        %1810 = vmatpush1.msra.mxu0 %v1793
        %1811 = vmatprep.subr.mxu0 0.0
        %1812 = vmatpush1.msra.mxu0 %v1794
        %1813 = vmatprep.subr.mxu0 0.0
        %1814 = vmatpush1.msra.mxu0 %v1795
        %1815 = vmatprep.subr.mxu0 0.0
        %1816 = vmatpush1.msra.mxu0 %v1796
        %1817 = vmatprep.subr.mxu0 0.0
        %1818 = vmatpush1.msra.mxu0 %v1797
        %1819 = vmatprep.subr.mxu0 0.0
        %1820 = vmatpush1.msra.mxu0 %v1798
        %1821 = vmatprep.subr.mxu0 0.0
        %1822 = vmatpush1.msra.mxu0 %v1799
        %1823 = vmatprep.subr.mxu0 0.0
        %1824 = vmatpush1.msra.mxu0 %v1800
        %1825 = vmatprep.subr.mxu0 0.0
        %1826 = vmatpush1.msra.mxu0 %v1801
        %1827 = vmatprep.subr.mxu0 0.0
        %1828 = vmatpush1.msra.mxu0 %v1802
        %1829 = vmatprep.subr.mxu0 0.0
        %1830 = vmatpush1.msra.mxu0 %v1803
        %1831 = vmatprep.subr.mxu0 0.0
        %1832 = vmatpush1.msra.mxu0 %v1804
        %1833 = vmatprep.subr.mxu0 0.0
        %1834 = vmatpush1.msra.mxu0 %v1805
        %1835 = vmatprep.subr.mxu0 0.0
        %1836 = vmatpush1.msra.mxu0 %v1806
        %1837 = vmatprep.subr.mxu0 0.0
        %1838 = vmatpush1.msra.mxu0 %v1807
        %1839 = vmatprep.subr.mxu0 0.0
        %1840 = vmatpush1.msra.mxu0 %v1808
        %1841 = vmatprep.subr.mxu0 0.0
        %1842 = vmatpush1.msra.mxu0 0.0
        %1843 = vmatprep.subr.mxu0 0.0
        %1844 = vmatpush1.msra.mxu0 0.0
        %1845 = vmatprep.subr.mxu0 0.0
        %1846 = vmatpush1.msra.mxu0 0.0
        %1847 = vmatprep.subr.mxu0 0.0
        %1848 = vmatpush1.msra.mxu0 0.0
        %1849 = vmatprep.subr.mxu0 0.0
        %1850 = vmatpush1.msra.mxu0 0.0
        %1851 = vmatprep.subr.mxu0 0.0
        %1852 = vmatpush1.msra.mxu0 0.0
        %1853 = vmatprep.subr.mxu0 0.0
        %1854 = vmatpush1.msra.mxu0 0.0
        %1855 = vmatprep.subr.mxu0 0.0
        %1856 = vmatpush1.msra.mxu0 0.0
        %1857 = vmatprep.subr.mxu0 0.0
        %1858 = vmatpush1.msra.mxu0 0.0
        %1859 = vmatprep.subr.mxu0 0.0
        %1860 = vmatpush1.msra.mxu0 0.0
        %1861 = vmatprep.subr.mxu0 0.0
        %1862 = vmatpush1.msra.mxu0 0.0
        %1863 = vmatprep.subr.mxu0 0.0
        %1864 = vmatpush1.msra.mxu0 0.0
        %1865 = vmatprep.subr.mxu0 0.0
        %1866 = vmatpush1.msra.mxu0 0.0
        %1867 = vmatprep.subr.mxu0 0.0
        %1868 = vmatpush1.msra.mxu0 0.0
        %1869 = vmatprep.subr.mxu0 0.0
        %1870 = vmatpush1.msra.mxu0 0.0
        %1871 = vmatprep.subr.mxu0 0.0
        %1872 = vmatpush1.msra.mxu0 0.0
        %1873 = vmatprep.mubr.f32.mxu0 0.0
        %1874 = vmatmul.mubr.f32.gmra.mrb[0].mxu0 %v848
        %v1875 = vpop.f32.mrb[0].mxu0
        %v1876 = vadd.f32 0.0, %v1875
        %v1877 = vpop.f32.mrb[0].mxu0
        %1878 = vmatprep.mubr.f32.mxu0 0.0
        %1879 = vmatmul.mubr.f32.gmra.mrb[0].mxu0 %v850
        %v1880 = vpop.f32.mrb[0].mxu0
        %v1881 = vadd.f32 0.0, %v1880
        %v1882 = vpop.f32.mrb[0].mxu0
        %1883 = vmatprep.mubr.f32.mxu0 0.0
        %1884 = vmatmul.mubr.f32.gmra.mrb[0].mxu0 %v853
        %v1885 = vpop.f32.mrb[0].mxu0
        %v1886 = vadd.f32 0.0, %v1885
        %v1887 = vpop.f32.mrb[0].mxu0
        %1888 = vmatprep.mubr.f32.mxu0 0.0
        %1889 = vmatmul.mubr.f32.gmra.mrb[0].mxu0 %v855
        %v1890 = vpop.f32.mrb[0].mxu0
        %v1891 = vadd.f32 0.0, %v1890
        %v1892 = vpop.f32.mrb[0].mxu0
        %1893 = vmatprep.mubr.f32.mxu0 0.0
        %1894 = vmatmul.mubr.f32.gmra.mrb[0].mxu0 %v858
        %v1895 = vpop.f32.mrb[0].mxu0
        %v1896 = vadd.f32 0.0, %v1895
        %v1897 = vpop.f32.mrb[0].mxu0
        %1898 = vmatprep.mubr.f32.mxu0 0.0
        %1899 = vmatmul.mubr.f32.gmra.mrb[0].mxu0 %v860
        %v1900 = vpop.f32.mrb[0].mxu0
        %v1901 = vadd.f32 0.0, %v1900
        %v1902 = vpop.f32.mrb[0].mxu0
        %1903 = vmatprep.mubr.f32.mxu0 0.0
        %1904 = vmatmul.mubr.f32.gmra.mrb[0].mxu0 %v863
        %v1905 = vpop.f32.mrb[0].mxu0
        %v1906 = vadd.f32 0.0, %v1905
        %v1907 = vpop.f32.mrb[0].mxu0
        %1908 = vmatprep.mubr.f32.mxu0 0.0
        %1909 = vmatmul.mubr.f32.gmra.mrb[0].mxu0 %v865
        %v1910 = vpop.f32.mrb[0].mxu0
        %v1911 = vadd.f32 0.0, %v1910
        %v1912 = vpop.f32.mrb[0].mxu0
        %1913 = vmatprep.mubr.f32.mxu0 0.0
        %1914 = vmatmul.mubr.f32.gmra.mrb[0].mxu0 %v868
        %v1915 = vpop.f32.mrb[0].mxu0
        %v1916 = vadd.f32 0.0, %v1915
        %v1917 = vpop.f32.mrb[0].mxu0
        %1918 = vmatprep.mubr.f32.mxu0 0.0
        %1919 = vmatmul.mubr.f32.gmra.mrb[0].mxu0 %v870
        %v1920 = vpop.f32.mrb[0].mxu0
        %v1921 = vadd.f32 0.0, %v1920
        %v1922 = vpop.f32.mrb[0].mxu0
        %1923 = vmatprep.mubr.f32.mxu0 0.0
        %1924 = vmatmul.mubr.f32.gmra.mrb[0].mxu0 %v873
        %v1925 = vpop.f32.mrb[0].mxu0
        %v1926 = vadd.f32 0.0, %v1925
        %v1927 = vpop.f32.mrb[0].mxu0
        %1928 = vmatprep.mubr.f32.mxu0 0.0
        %1929 = vmatmul.mubr.f32.gmra.mrb[0].mxu0 %v875
        %v1930 = vpop.f32.mrb[0].mxu0
        %v1931 = vadd.f32 0.0, %v1930
        %v1932 = vpop.f32.mrb[0].mxu0
        %1933 = vmatprep.mubr.f32.mxu0 0.0
        %1934 = vmatmul.mubr.f32.gmra.mrb[0].mxu0 %v878
        %v1935 = vpop.f32.mrb[0].mxu0
        %v1936 = vadd.f32 0.0, %v1935
        %v1937 = vpop.f32.mrb[0].mxu0
        %1938 = vmatprep.mubr.f32.mxu0 0.0
        %1939 = vmatmul.mubr.f32.gmra.mrb[0].mxu0 %v880
        %v1940 = vpop.f32.mrb[0].mxu0
        %v1941 = vadd.f32 0.0, %v1940
        %v1942 = vpop.f32.mrb[0].mxu0
        %1943 = vmatprep.mubr.f32.mxu0 0.0
        %1944 = vmatmul.mubr.f32.gmra.mrb[0].mxu0 %v883
        %v1945 = vpop.f32.mrb[0].mxu0
        %v1946 = vadd.f32 0.0, %v1945
        %v1947 = vpop.f32.mrb[0].mxu0
        %1948 = vmatprep.mubr.f32.mxu0 0.0
        %1949 = vmatmul.mubr.f32.gmra.mrb[0].mxu0 %v885
        %v1950 = vpop.f32.mrb[0].mxu0
        %v1951 = vadd.f32 0.0, %v1950
        %v1952 = vpop.f32.mrb[0].mxu0
        %1953 = vmatprep.mubr.f32.mxu0 0.0
        %1954 = vmatmul.mubr.f32.gmra.mrb[0].mxu0 %v888
        %v1955 = vpop.f32.mrb[0].mxu0
        %v1956 = vadd.f32 0.0, %v1955
        %v1957 = vpop.f32.mrb[0].mxu0
        %1958 = vmatprep.mubr.f32.mxu0 0.0
        %1959 = vmatmul.mubr.f32.gmra.mrb[0].mxu0 %v890
        %v1960 = vpop.f32.mrb[0].mxu0
        %v1961 = vadd.f32 0.0, %v1960
        %v1962 = vpop.f32.mrb[0].mxu0
        %1963 = vmatprep.mubr.f32.mxu0 0.0
        %1964 = vmatmul.mubr.f32.gmra.mrb[0].mxu0 %v893
        %v1965 = vpop.f32.mrb[0].mxu0
        %v1966 = vadd.f32 0.0, %v1965
        %v1967 = vpop.f32.mrb[0].mxu0
        %1968 = vmatprep.mubr.f32.mxu0 0.0
        %1969 = vmatmul.mubr.f32.gmra.mrb[0].mxu0 %v895
        %v1970 = vpop.f32.mrb[0].mxu0
        %v1971 = vadd.f32 0.0, %v1970
        %v1972 = vpop.f32.mrb[0].mxu0
        %1973 = vmatprep.mubr.f32.mxu0 0.0
        %1974 = vmatmul.mubr.f32.gmra.mrb[0].mxu0 %v898
        %v1975 = vpop.f32.mrb[0].mxu0
        %v1976 = vadd.f32 0.0, %v1975
        %v1977 = vpop.f32.mrb[0].mxu0
        %1978 = vmatprep.mubr.f32.mxu0 0.0
        %1979 = vmatmul.mubr.f32.gmra.mrb[0].mxu0 %v900
        %v1980 = vpop.f32.mrb[0].mxu0
        %v1981 = vadd.f32 0.0, %v1980
        %v1982 = vpop.f32.mrb[0].mxu0
        %1983 = vmatprep.mubr.f32.mxu0 0.0
        %1984 = vmatmul.mubr.f32.gmra.mrb[0].mxu0 %v903
        %v1985 = vpop.f32.mrb[0].mxu0
        %v1986 = vadd.f32 0.0, %v1985
        %v1987 = vpop.f32.mrb[0].mxu0
        %1988 = vmatprep.mubr.f32.mxu0 0.0
        %1989 = vmatmul.mubr.f32.gmra.mrb[0].mxu0 %v905
        %v1990 = vpop.f32.mrb[0].mxu0
        %v1991 = vadd.f32 0.0, %v1990
        %v1992 = vpop.f32.mrb[0].mxu0
        %1993 = vmatprep.mubr.f32.mxu0 0.0
        %1994 = vmatmul.mubr.f32.gmra.mrb[0].mxu0 %v908
        %v1995 = vpop.f32.mrb[0].mxu0
        %v1996 = vadd.f32 0.0, %v1995
        %v1997 = vpop.f32.mrb[0].mxu0
        %1998 = vmatprep.mubr.f32.mxu0 0.0
        %1999 = vmatmul.mubr.f32.gmra.mrb[0].mxu0 %v910
        %v2000 = vpop.f32.mrb[0].mxu0
        %v2001 = vadd.f32 0.0, %v2000
        %v2002 = vpop.f32.mrb[0].mxu0
        %2003 = vmatprep.mubr.f32.mxu0 0.0
        %2004 = vmatmul.mubr.f32.gmra.mrb[0].mxu0 %v913
        %v2005 = vpop.f32.mrb[0].mxu0
        %v2006 = vadd.f32 0.0, %v2005
        %v2007 = vpop.f32.mrb[0].mxu0
        %2008 = vmatprep.mubr.f32.mxu0 0.0
        %2009 = vmatmul.mubr.f32.gmra.mrb[0].mxu0 %v915
        %v2010 = vpop.f32.mrb[0].mxu0
        %v2011 = vadd.f32 0.0, %v2010
        %v2012 = vpop.f32.mrb[0].mxu0
        %2013 = vmatprep.mubr.f32.mxu0 0.0
        %2014 = vmatmul.mubr.f32.gmra.mrb[0].mxu0 %v918
        %v2015 = vpop.f32.mrb[0].mxu0
        %v2016 = vadd.f32 0.0, %v2015
        %v2017 = vpop.f32.mrb[0].mxu0
        %2018 = vmatprep.mubr.f32.mxu0 0.0
        %2019 = vmatmul.mubr.f32.gmra.mrb[0].mxu0 %v920
        %v2020 = vpop.f32.mrb[0].mxu0
        %v2021 = vadd.f32 0.0, %v2020
        %v2022 = vpop.f32.mrb[0].mxu0
        %2023 = vmatprep.mubr.f32.mxu0 0.0
        %2024 = vmatmul.mubr.f32.gmra.mrb[0].mxu0 %v1787
        %v2025 = vpop.f32.mrb[0].mxu0
        %v2026 = vadd.f32 0.0, %v2025
        %v2027 = vpop.f32.mrb[0].mxu0
        %2028 = vmatprep.mubr.f32.mxu0 0.0
        %2029 = vmatmul.mubr.f32.gmra.mrb[0].mxu0 %v1789
        %v2030 = vpop.f32.mrb[0].mxu0
        %v2031 = vadd.f32 0.0, %v2030
        %v2032 = vpop.f32.mrb[0].mxu0
        %2033 = vdwg.mxu0
        %v2034 = vadd.f32 %v1753, %v1876
        %v2035 = vadd.f32 %v1754, %v1881
        %v2036 = vadd.f32 %v1755, %v1886
        %v2037 = vadd.f32 %v1756, %v1891
        %v2038 = vadd.f32 %v1757, %v1896
        %v2039 = vadd.f32 %v1758, %v1901
        %v2040 = vadd.f32 %v1759, %v1906
        %v2041 = vadd.f32 %v1760, %v1911
        %v2042 = vadd.f32 %v1761, %v1916
        %v2043 = vadd.f32 %v1762, %v1921
        %v2044 = vadd.f32 %v1763, %v1926
        %v2045 = vadd.f32 %v1764, %v1931
        %v2046 = vadd.f32 %v1765, %v1936
        %v2047 = vadd.f32 %v1766, %v1941
        %v2048 = vadd.f32 %v1767, %v1946
        %v2049 = vadd.f32 %v1768, %v1951
        %v2050 = vadd.f32 %v1769, %v1956
        %v2051 = vadd.f32 %v1770, %v1961
        %v2052 = vadd.f32 %v1771, %v1966
        %v2053 = vadd.f32 %v1772, %v1971
        %v2054 = vadd.f32 %v1773, %v1976
        %v2055 = vadd.f32 %v1774, %v1981
        %v2056 = vadd.f32 %v1775, %v1986
        %v2057 = vadd.f32 %v1776, %v1991
        %v2058 = vadd.f32 %v1777, %v1996
        %v2059 = vadd.f32 %v1778, %v2001
        %v2060 = vadd.f32 %v1779, %v2006
        %v2061 = vadd.f32 %v1780, %v2011
        %v2062 = vadd.f32 %v1781, %v2016
        %v2063 = vadd.f32 %v1782, %v2021
        %v2064 = vadd.f32 %v1783, %v2026
        %v2065 = vadd.f32 %v1784, %v2031
        %s2066 = scalar_lea.vmem %s1, 768
        %v2067 = vld [vmem:[%s2066] sm:$0xff]
        %v2068 = vld [vmem:[%s2066 + $0x8] sm:$0xff]
        %v2069 = vld [vmem:[%s2066 + $0x10] sm:$0xff]
        %v2070 = vld [vmem:[%s2066 + $0x18] sm:$0xff]
        %v2071 = vld [vmem:[%s2066 + $0x20] sm:$0xff]
        %v2072 = vld [vmem:[%s2066 + $0x28] sm:$0xff]
        %v2073 = vld [vmem:[%s2066 + $0x30] sm:$0xff]
        %v2074 = vld [vmem:[%s2066 + $0x38] sm:$0xff]
        %v2075 = vld [vmem:[%s2066 + $0x40] sm:$0xff]
        %v2076 = vld [vmem:[%s2066 + $0x48] sm:$0xff]
        %v2077 = vld [vmem:[%s2066 + $0x50] sm:$0xff]
        %v2078 = vld [vmem:[%s2066 + $0x58] sm:$0xff]
        %v2079 = vld [vmem:[%s2066 + $0x60] sm:$0xff]
        %v2080 = vld [vmem:[%s2066 + $0x68] sm:$0xff]
        %v2081 = vld [vmem:[%s2066 + $0x70] sm:$0xff]
        %v2082 = vld [vmem:[%s2066 + $0x78] sm:$0xff]
        %2083 = vmatprep.subr.mxu0 0.0
        %2084 = vmatpush1.msra.mxu0 %v2067
        %2085 = vmatprep.subr.mxu0 0.0
        %2086 = vmatpush1.msra.mxu0 %v2068
        %2087 = vmatprep.subr.mxu0 0.0
        %2088 = vmatpush1.msra.mxu0 %v2069
        %2089 = vmatprep.subr.mxu0 0.0
        %2090 = vmatpush1.msra.mxu0 %v2070
        %2091 = vmatprep.subr.mxu0 0.0
        %2092 = vmatpush1.msra.mxu0 %v2071
        %2093 = vmatprep.subr.mxu0 0.0
        %2094 = vmatpush1.msra.mxu0 %v2072
        %2095 = vmatprep.subr.mxu0 0.0
        %2096 = vmatpush1.msra.mxu0 %v2073
        %2097 = vmatprep.subr.mxu0 0.0
        %2098 = vmatpush1.msra.mxu0 %v2074
        %2099 = vmatprep.subr.mxu0 0.0
        %2100 = vmatpush1.msra.mxu0 %v2075
        %2101 = vmatprep.subr.mxu0 0.0
        %2102 = vmatpush1.msra.mxu0 %v2076
        %2103 = vmatprep.subr.mxu0 0.0
        %2104 = vmatpush1.msra.mxu0 %v2077
        %2105 = vmatprep.subr.mxu0 0.0
        %2106 = vmatpush1.msra.mxu0 %v2078
        %2107 = vmatprep.subr.mxu0 0.0
        %2108 = vmatpush1.msra.mxu0 %v2079
        %2109 = vmatprep.subr.mxu0 0.0
        %2110 = vmatpush1.msra.mxu0 %v2080
        %2111 = vmatprep.subr.mxu0 0.0
        %2112 = vmatpush1.msra.mxu0 %v2081
        %2113 = vmatprep.subr.mxu0 0.0
        %2114 = vmatpush1.msra.mxu0 %v2082
        %2115 = vmatprep.subr.mxu0 0.0
        %2116 = vmatpush1.msra.mxu0 0.0
        %2117 = vmatprep.subr.mxu0 0.0
        %2118 = vmatpush1.msra.mxu0 0.0
        %2119 = vmatprep.subr.mxu0 0.0
        %2120 = vmatpush1.msra.mxu0 0.0
        %2121 = vmatprep.subr.mxu0 0.0
        %2122 = vmatpush1.msra.mxu0 0.0
        %2123 = vmatprep.subr.mxu0 0.0
        %2124 = vmatpush1.msra.mxu0 0.0
        %2125 = vmatprep.subr.mxu0 0.0
        %2126 = vmatpush1.msra.mxu0 0.0
        %2127 = vmatprep.subr.mxu0 0.0
        %2128 = vmatpush1.msra.mxu0 0.0
        %2129 = vmatprep.subr.mxu0 0.0
        %2130 = vmatpush1.msra.mxu0 0.0
        %2131 = vmatprep.subr.mxu0 0.0
        %2132 = vmatpush1.msra.mxu0 0.0
        %2133 = vmatprep.subr.mxu0 0.0
        %2134 = vmatpush1.msra.mxu0 0.0
        %2135 = vmatprep.subr.mxu0 0.0
        %2136 = vmatpush1.msra.mxu0 0.0
        %2137 = vmatprep.subr.mxu0 0.0
        %2138 = vmatpush1.msra.mxu0 0.0
        %2139 = vmatprep.subr.mxu0 0.0
        %2140 = vmatpush1.msra.mxu0 0.0
        %2141 = vmatprep.subr.mxu0 0.0
        %2142 = vmatpush1.msra.mxu0 0.0
        %2143 = vmatprep.subr.mxu0 0.0
        %2144 = vmatpush1.msra.mxu0 0.0
        %2145 = vmatprep.subr.mxu0 0.0
        %2146 = vmatpush1.msra.mxu0 0.0
        %2147 = vmatprep.mubr.f32.mxu0 0.0
        %2148 = vmatmul.mubr.f32.gmra.mrb[0].mxu0 %v148
        %v2149 = vpop.f32.mrb[0].mxu0
        %v2150 = vadd.f32 0.0, %v2149
        %v2151 = vpop.f32.mrb[0].mxu0
        %2152 = vmatprep.mubr.f32.mxu0 0.0
        %2153 = vmatmul.mubr.f32.gmra.mrb[0].mxu0 %v149
        %v2154 = vpop.f32.mrb[0].mxu0
        %v2155 = vadd.f32 0.0, %v2154
        %v2156 = vpop.f32.mrb[0].mxu0
        %2157 = vmatprep.mubr.f32.mxu0 0.0
        %2158 = vmatmul.mubr.f32.gmra.mrb[0].mxu0 %v151
        %v2159 = vpop.f32.mrb[0].mxu0
        %v2160 = vadd.f32 0.0, %v2159
        %v2161 = vpop.f32.mrb[0].mxu0
        %2162 = vmatprep.mubr.f32.mxu0 0.0
        %2163 = vmatmul.mubr.f32.gmra.mrb[0].mxu0 %v152
        %v2164 = vpop.f32.mrb[0].mxu0
        %v2165 = vadd.f32 0.0, %v2164
        %v2166 = vpop.f32.mrb[0].mxu0
        %2167 = vmatprep.mubr.f32.mxu0 0.0
        %2168 = vmatmul.mubr.f32.gmra.mrb[0].mxu0 %v154
        %v2169 = vpop.f32.mrb[0].mxu0
        %v2170 = vadd.f32 0.0, %v2169
        %v2171 = vpop.f32.mrb[0].mxu0
        %2172 = vmatprep.mubr.f32.mxu0 0.0
        %2173 = vmatmul.mubr.f32.gmra.mrb[0].mxu0 %v155
        %v2174 = vpop.f32.mrb[0].mxu0
        %v2175 = vadd.f32 0.0, %v2174
        %v2176 = vpop.f32.mrb[0].mxu0
        %2177 = vmatprep.mubr.f32.mxu0 0.0
        %2178 = vmatmul.mubr.f32.gmra.mrb[0].mxu0 %v157
        %v2179 = vpop.f32.mrb[0].mxu0
        %v2180 = vadd.f32 0.0, %v2179
        %v2181 = vpop.f32.mrb[0].mxu0
        %2182 = vmatprep.mubr.f32.mxu0 0.0
        %2183 = vmatmul.mubr.f32.gmra.mrb[0].mxu0 %v158
        %v2184 = vpop.f32.mrb[0].mxu0
        %v2185 = vadd.f32 0.0, %v2184
        %v2186 = vpop.f32.mrb[0].mxu0
        %2187 = vmatprep.mubr.f32.mxu0 0.0
        %2188 = vmatmul.mubr.f32.gmra.mrb[0].mxu0 %v160
        %v2189 = vpop.f32.mrb[0].mxu0
        %v2190 = vadd.f32 0.0, %v2189
        %v2191 = vpop.f32.mrb[0].mxu0
        %2192 = vmatprep.mubr.f32.mxu0 0.0
        %2193 = vmatmul.mubr.f32.gmra.mrb[0].mxu0 %v161
        %v2194 = vpop.f32.mrb[0].mxu0
        %v2195 = vadd.f32 0.0, %v2194
        %v2196 = vpop.f32.mrb[0].mxu0
        %2197 = vmatprep.mubr.f32.mxu0 0.0
        %2198 = vmatmul.mubr.f32.gmra.mrb[0].mxu0 %v163
        %v2199 = vpop.f32.mrb[0].mxu0
        %v2200 = vadd.f32 0.0, %v2199
        %v2201 = vpop.f32.mrb[0].mxu0
        %2202 = vmatprep.mubr.f32.mxu0 0.0
        %2203 = vmatmul.mubr.f32.gmra.mrb[0].mxu0 %v164
        %v2204 = vpop.f32.mrb[0].mxu0
        %v2205 = vadd.f32 0.0, %v2204
        %v2206 = vpop.f32.mrb[0].mxu0
        %2207 = vmatprep.mubr.f32.mxu0 0.0
        %2208 = vmatmul.mubr.f32.gmra.mrb[0].mxu0 %v166
        %v2209 = vpop.f32.mrb[0].mxu0
        %v2210 = vadd.f32 0.0, %v2209
        %v2211 = vpop.f32.mrb[0].mxu0
        %2212 = vmatprep.mubr.f32.mxu0 0.0
        %2213 = vmatmul.mubr.f32.gmra.mrb[0].mxu0 %v167
        %v2214 = vpop.f32.mrb[0].mxu0
        %v2215 = vadd.f32 0.0, %v2214
        %v2216 = vpop.f32.mrb[0].mxu0
        %2217 = vmatprep.mubr.f32.mxu0 0.0
        %2218 = vmatmul.mubr.f32.gmra.mrb[0].mxu0 %v169
        %v2219 = vpop.f32.mrb[0].mxu0
        %v2220 = vadd.f32 0.0, %v2219
        %v2221 = vpop.f32.mrb[0].mxu0
        %2222 = vmatprep.mubr.f32.mxu0 0.0
        %2223 = vmatmul.mubr.f32.gmra.mrb[0].mxu0 %v170
        %v2224 = vpop.f32.mrb[0].mxu0
        %v2225 = vadd.f32 0.0, %v2224
        %v2226 = vpop.f32.mrb[0].mxu0
        %2227 = vmatprep.mubr.f32.mxu0 0.0
        %2228 = vmatmul.mubr.f32.gmra.mrb[0].mxu0 %v172
        %v2229 = vpop.f32.mrb[0].mxu0
        %v2230 = vadd.f32 0.0, %v2229
        %v2231 = vpop.f32.mrb[0].mxu0
        %2232 = vmatprep.mubr.f32.mxu0 0.0
        %2233 = vmatmul.mubr.f32.gmra.mrb[0].mxu0 %v173
        %v2234 = vpop.f32.mrb[0].mxu0
        %v2235 = vadd.f32 0.0, %v2234
        %v2236 = vpop.f32.mrb[0].mxu0
        %2237 = vmatprep.mubr.f32.mxu0 0.0
        %2238 = vmatmul.mubr.f32.gmra.mrb[0].mxu0 %v175
        %v2239 = vpop.f32.mrb[0].mxu0
        %v2240 = vadd.f32 0.0, %v2239
        %v2241 = vpop.f32.mrb[0].mxu0
        %2242 = vmatprep.mubr.f32.mxu0 0.0
        %2243 = vmatmul.mubr.f32.gmra.mrb[0].mxu0 %v176
        %v2244 = vpop.f32.mrb[0].mxu0
        %v2245 = vadd.f32 0.0, %v2244
        %v2246 = vpop.f32.mrb[0].mxu0
        %2247 = vmatprep.mubr.f32.mxu0 0.0
        %2248 = vmatmul.mubr.f32.gmra.mrb[0].mxu0 %v178
        %v2249 = vpop.f32.mrb[0].mxu0
        %v2250 = vadd.f32 0.0, %v2249
        %v2251 = vpop.f32.mrb[0].mxu0
        %2252 = vmatprep.mubr.f32.mxu0 0.0
        %2253 = vmatmul.mubr.f32.gmra.mrb[0].mxu0 %v179
        %v2254 = vpop.f32.mrb[0].mxu0
        %v2255 = vadd.f32 0.0, %v2254
        %v2256 = vpop.f32.mrb[0].mxu0
        %2257 = vmatprep.mubr.f32.mxu0 0.0
        %2258 = vmatmul.mubr.f32.gmra.mrb[0].mxu0 %v181
        %v2259 = vpop.f32.mrb[0].mxu0
        %v2260 = vadd.f32 0.0, %v2259
        %v2261 = vpop.f32.mrb[0].mxu0
        %2262 = vmatprep.mubr.f32.mxu0 0.0
        %2263 = vmatmul.mubr.f32.gmra.mrb[0].mxu0 %v182
        %v2264 = vpop.f32.mrb[0].mxu0
        %v2265 = vadd.f32 0.0, %v2264
        %v2266 = vpop.f32.mrb[0].mxu0
        %2267 = vmatprep.mubr.f32.mxu0 0.0
        %2268 = vmatmul.mubr.f32.gmra.mrb[0].mxu0 %v184
        %v2269 = vpop.f32.mrb[0].mxu0
        %v2270 = vadd.f32 0.0, %v2269
        %v2271 = vpop.f32.mrb[0].mxu0
        %2272 = vmatprep.mubr.f32.mxu0 0.0
        %2273 = vmatmul.mubr.f32.gmra.mrb[0].mxu0 %v185
        %v2274 = vpop.f32.mrb[0].mxu0
        %v2275 = vadd.f32 0.0, %v2274
        %v2276 = vpop.f32.mrb[0].mxu0
        %2277 = vmatprep.mubr.f32.mxu0 0.0
        %2278 = vmatmul.mubr.f32.gmra.mrb[0].mxu0 %v187
        %v2279 = vpop.f32.mrb[0].mxu0
        %v2280 = vadd.f32 0.0, %v2279
        %v2281 = vpop.f32.mrb[0].mxu0
        %2282 = vmatprep.mubr.f32.mxu0 0.0
        %2283 = vmatmul.mubr.f32.gmra.mrb[0].mxu0 %v188
        %v2284 = vpop.f32.mrb[0].mxu0
        %v2285 = vadd.f32 0.0, %v2284
        %v2286 = vpop.f32.mrb[0].mxu0
        %2287 = vmatprep.mubr.f32.mxu0 0.0
        %2288 = vmatmul.mubr.f32.gmra.mrb[0].mxu0 %v190
        %v2289 = vpop.f32.mrb[0].mxu0
        %v2290 = vadd.f32 0.0, %v2289
        %v2291 = vpop.f32.mrb[0].mxu0
        %2292 = vmatprep.mubr.f32.mxu0 0.0
        %2293 = vmatmul.mubr.f32.gmra.mrb[0].mxu0 %v191
        %v2294 = vpop.f32.mrb[0].mxu0
        %v2295 = vadd.f32 0.0, %v2294
        %v2296 = vpop.f32.mrb[0].mxu0
        %2297 = vmatprep.mubr.f32.mxu0 0.0
        %2298 = vmatmul.mubr.f32.gmra.mrb[0].mxu0 %v193
        %v2299 = vpop.f32.mrb[0].mxu0
        %v2300 = vadd.f32 0.0, %v2299
        %v2301 = vpop.f32.mrb[0].mxu0
        %2302 = vmatprep.mubr.f32.mxu0 0.0
        %2303 = vmatmul.mubr.f32.gmra.mrb[0].mxu0 %v194
        %v2304 = vpop.f32.mrb[0].mxu0
        %v2305 = vadd.f32 0.0, %v2304
        %v2306 = vpop.f32.mrb[0].mxu0
        %2307 = vdwg.mxu0
        %v2308 = vadd.f32 %v2034, %v2150
        %v2309 = vadd.f32 %v2035, %v2155
        %v2310 = vadd.f32 %v2036, %v2160
        %v2311 = vadd.f32 %v2037, %v2165
        %v2312 = vadd.f32 %v2038, %v2170
        %v2313 = vadd.f32 %v2039, %v2175
        %v2314 = vadd.f32 %v2040, %v2180
        %v2315 = vadd.f32 %v2041, %v2185
        %v2316 = vadd.f32 %v2042, %v2190
        %v2317 = vadd.f32 %v2043, %v2195
        %v2318 = vadd.f32 %v2044, %v2200
        %v2319 = vadd.f32 %v2045, %v2205
        %v2320 = vadd.f32 %v2046, %v2210
        %v2321 = vadd.f32 %v2047, %v2215
        %v2322 = vadd.f32 %v2048, %v2220
        %v2323 = vadd.f32 %v2049, %v2225
        %v2324 = vadd.f32 %v2050, %v2230
        %v2325 = vadd.f32 %v2051, %v2235
        %v2326 = vadd.f32 %v2052, %v2240
        %v2327 = vadd.f32 %v2053, %v2245
        %v2328 = vadd.f32 %v2054, %v2250
        %v2329 = vadd.f32 %v2055, %v2255
        %v2330 = vadd.f32 %v2056, %v2260
        %v2331 = vadd.f32 %v2057, %v2265
        %v2332 = vadd.f32 %v2058, %v2270
        %v2333 = vadd.f32 %v2059, %v2275
        %v2334 = vadd.f32 %v2060, %v2280
        %v2335 = vadd.f32 %v2061, %v2285
        %v2336 = vadd.f32 %v2062, %v2290
        %v2337 = vadd.f32 %v2063, %v2295
        %v2338 = vadd.f32 %v2064, %v2300
        %v2339 = vadd.f32 %v2065, %v2305
        %v2343 = vrot.slane %v193, 1
        %v2344 = vrot.slane %v194, 1
        %v2345 = vsel %vm260, %v2343, %v2344
        %v2346 = vrot.slane %v195, 1
        %v2347 = vsel %vm260, %v2344, %v2346
        %s2350 = scalar_lea.vmem %s1, 896
        %v2351 = vld [vmem:[%s2350] sm:$0xff]
        %v2352 = vld [vmem:[%s2350 + $0x8] sm:$0xff]
        %v2353 = vld [vmem:[%s2350 + $0x10] sm:$0xff]
        %v2354 = vld [vmem:[%s2350 + $0x18] sm:$0xff]
        %v2355 = vld [vmem:[%s2350 + $0x20] sm:$0xff]
        %v2356 = vld [vmem:[%s2350 + $0x28] sm:$0xff]
        %v2357 = vld [vmem:[%s2350 + $0x30] sm:$0xff]
        %v2358 = vld [vmem:[%s2350 + $0x38] sm:$0xff]
        %v2359 = vld [vmem:[%s2350 + $0x40] sm:$0xff]
        %v2360 = vld [vmem:[%s2350 + $0x48] sm:$0xff]
        %v2361 = vld [vmem:[%s2350 + $0x50] sm:$0xff]
        %v2362 = vld [vmem:[%s2350 + $0x58] sm:$0xff]
        %v2363 = vld [vmem:[%s2350 + $0x60] sm:$0xff]
        %v2364 = vld [vmem:[%s2350 + $0x68] sm:$0xff]
        %v2365 = vld [vmem:[%s2350 + $0x70] sm:$0xff]
        %v2366 = vld [vmem:[%s2350 + $0x78] sm:$0xff]
        %2367 = vmatprep.subr.mxu0 0.0
        %2368 = vmatpush1.msra.mxu0 %v2351
        %2369 = vmatprep.subr.mxu0 0.0
        %2370 = vmatpush1.msra.mxu0 %v2352
        %2371 = vmatprep.subr.mxu0 0.0
        %2372 = vmatpush1.msra.mxu0 %v2353
        %2373 = vmatprep.subr.mxu0 0.0
        %2374 = vmatpush1.msra.mxu0 %v2354
        %2375 = vmatprep.subr.mxu0 0.0
        %2376 = vmatpush1.msra.mxu0 %v2355
        %2377 = vmatprep.subr.mxu0 0.0
        %2378 = vmatpush1.msra.mxu0 %v2356
        %2379 = vmatprep.subr.mxu0 0.0
        %2380 = vmatpush1.msra.mxu0 %v2357
        %2381 = vmatprep.subr.mxu0 0.0
        %2382 = vmatpush1.msra.mxu0 %v2358
        %2383 = vmatprep.subr.mxu0 0.0
        %2384 = vmatpush1.msra.mxu0 %v2359
        %2385 = vmatprep.subr.mxu0 0.0
        %2386 = vmatpush1.msra.mxu0 %v2360
        %2387 = vmatprep.subr.mxu0 0.0
        %2388 = vmatpush1.msra.mxu0 %v2361
        %2389 = vmatprep.subr.mxu0 0.0
        %2390 = vmatpush1.msra.mxu0 %v2362
        %2391 = vmatprep.subr.mxu0 0.0
        %2392 = vmatpush1.msra.mxu0 %v2363
        %2393 = vmatprep.subr.mxu0 0.0
        %2394 = vmatpush1.msra.mxu0 %v2364
        %2395 = vmatprep.subr.mxu0 0.0
        %2396 = vmatpush1.msra.mxu0 %v2365
        %2397 = vmatprep.subr.mxu0 0.0
        %2398 = vmatpush1.msra.mxu0 %v2366
        %2399 = vmatprep.subr.mxu0 0.0
        %2400 = vmatpush1.msra.mxu0 0.0
        %2401 = vmatprep.subr.mxu0 0.0
        %2402 = vmatpush1.msra.mxu0 0.0
        %2403 = vmatprep.subr.mxu0 0.0
        %2404 = vmatpush1.msra.mxu0 0.0
        %2405 = vmatprep.subr.mxu0 0.0
        %2406 = vmatpush1.msra.mxu0 0.0
        %2407 = vmatprep.subr.mxu0 0.0
        %2408 = vmatpush1.msra.mxu0 0.0
        %2409 = vmatprep.subr.mxu0 0.0
        %2410 = vmatpush1.msra.mxu0 0.0
        %2411 = vmatprep.subr.mxu0 0.0
        %2412 = vmatpush1.msra.mxu0 0.0
        %2413 = vmatprep.subr.mxu0 0.0
        %2414 = vmatpush1.msra.mxu0 0.0
        %2415 = vmatprep.subr.mxu0 0.0
        %2416 = vmatpush1.msra.mxu0 0.0
        %2417 = vmatprep.subr.mxu0 0.0
        %2418 = vmatpush1.msra.mxu0 0.0
        %2419 = vmatprep.subr.mxu0 0.0
        %2420 = vmatpush1.msra.mxu0 0.0
        %2421 = vmatprep.subr.mxu0 0.0
        %2422 = vmatpush1.msra.mxu0 0.0
        %2423 = vmatprep.subr.mxu0 0.0
        %2424 = vmatpush1.msra.mxu0 0.0
        %2425 = vmatprep.subr.mxu0 0.0
        %2426 = vmatpush1.msra.mxu0 0.0
        %2427 = vmatprep.subr.mxu0 0.0
        %2428 = vmatpush1.msra.mxu0 0.0
        %2429 = vmatprep.subr.mxu0 0.0
        %2430 = vmatpush1.msra.mxu0 0.0
        %2431 = vmatprep.mubr.f32.mxu0 0.0
        %2432 = vmatmul.mubr.f32.gmra.mrb[0].mxu0 %v273
        %v2433 = vpop.f32.mrb[0].mxu0
        %v2434 = vadd.f32 0.0, %v2433
        %v2435 = vpop.f32.mrb[0].mxu0
        %2436 = vmatprep.mubr.f32.mxu0 0.0
        %2437 = vmatmul.mubr.f32.gmra.mrb[0].mxu0 %v275
        %v2438 = vpop.f32.mrb[0].mxu0
        %v2439 = vadd.f32 0.0, %v2438
        %v2440 = vpop.f32.mrb[0].mxu0
        %2441 = vmatprep.mubr.f32.mxu0 0.0
        %2442 = vmatmul.mubr.f32.gmra.mrb[0].mxu0 %v278
        %v2443 = vpop.f32.mrb[0].mxu0
        %v2444 = vadd.f32 0.0, %v2443
        %v2445 = vpop.f32.mrb[0].mxu0
        %2446 = vmatprep.mubr.f32.mxu0 0.0
        %2447 = vmatmul.mubr.f32.gmra.mrb[0].mxu0 %v280
        %v2448 = vpop.f32.mrb[0].mxu0
        %v2449 = vadd.f32 0.0, %v2448
        %v2450 = vpop.f32.mrb[0].mxu0
        %2451 = vmatprep.mubr.f32.mxu0 0.0
        %2452 = vmatmul.mubr.f32.gmra.mrb[0].mxu0 %v283
        %v2453 = vpop.f32.mrb[0].mxu0
        %v2454 = vadd.f32 0.0, %v2453
        %v2455 = vpop.f32.mrb[0].mxu0
        %2456 = vmatprep.mubr.f32.mxu0 0.0
        %2457 = vmatmul.mubr.f32.gmra.mrb[0].mxu0 %v285
        %v2458 = vpop.f32.mrb[0].mxu0
        %v2459 = vadd.f32 0.0, %v2458
        %v2460 = vpop.f32.mrb[0].mxu0
        %2461 = vmatprep.mubr.f32.mxu0 0.0
        %2462 = vmatmul.mubr.f32.gmra.mrb[0].mxu0 %v288
        %v2463 = vpop.f32.mrb[0].mxu0
        %v2464 = vadd.f32 0.0, %v2463
        %v2465 = vpop.f32.mrb[0].mxu0
        %2466 = vmatprep.mubr.f32.mxu0 0.0
        %2467 = vmatmul.mubr.f32.gmra.mrb[0].mxu0 %v290
        %v2468 = vpop.f32.mrb[0].mxu0
        %v2469 = vadd.f32 0.0, %v2468
        %v2470 = vpop.f32.mrb[0].mxu0
        %2471 = vmatprep.mubr.f32.mxu0 0.0
        %2472 = vmatmul.mubr.f32.gmra.mrb[0].mxu0 %v293
        %v2473 = vpop.f32.mrb[0].mxu0
        %v2474 = vadd.f32 0.0, %v2473
        %v2475 = vpop.f32.mrb[0].mxu0
        %2476 = vmatprep.mubr.f32.mxu0 0.0
        %2477 = vmatmul.mubr.f32.gmra.mrb[0].mxu0 %v295
        %v2478 = vpop.f32.mrb[0].mxu0
        %v2479 = vadd.f32 0.0, %v2478
        %v2480 = vpop.f32.mrb[0].mxu0
        %2481 = vmatprep.mubr.f32.mxu0 0.0
        %2482 = vmatmul.mubr.f32.gmra.mrb[0].mxu0 %v298
        %v2483 = vpop.f32.mrb[0].mxu0
        %v2484 = vadd.f32 0.0, %v2483
        %v2485 = vpop.f32.mrb[0].mxu0
        %2486 = vmatprep.mubr.f32.mxu0 0.0
        %2487 = vmatmul.mubr.f32.gmra.mrb[0].mxu0 %v300
        %v2488 = vpop.f32.mrb[0].mxu0
        %v2489 = vadd.f32 0.0, %v2488
        %v2490 = vpop.f32.mrb[0].mxu0
        %2491 = vmatprep.mubr.f32.mxu0 0.0
        %2492 = vmatmul.mubr.f32.gmra.mrb[0].mxu0 %v303
        %v2493 = vpop.f32.mrb[0].mxu0
        %v2494 = vadd.f32 0.0, %v2493
        %v2495 = vpop.f32.mrb[0].mxu0
        %2496 = vmatprep.mubr.f32.mxu0 0.0
        %2497 = vmatmul.mubr.f32.gmra.mrb[0].mxu0 %v305
        %v2498 = vpop.f32.mrb[0].mxu0
        %v2499 = vadd.f32 0.0, %v2498
        %v2500 = vpop.f32.mrb[0].mxu0
        %2501 = vmatprep.mubr.f32.mxu0 0.0
        %2502 = vmatmul.mubr.f32.gmra.mrb[0].mxu0 %v308
        %v2503 = vpop.f32.mrb[0].mxu0
        %v2504 = vadd.f32 0.0, %v2503
        %v2505 = vpop.f32.mrb[0].mxu0
        %2506 = vmatprep.mubr.f32.mxu0 0.0
        %2507 = vmatmul.mubr.f32.gmra.mrb[0].mxu0 %v310
        %v2508 = vpop.f32.mrb[0].mxu0
        %v2509 = vadd.f32 0.0, %v2508
        %v2510 = vpop.f32.mrb[0].mxu0
        %2511 = vmatprep.mubr.f32.mxu0 0.0
        %2512 = vmatmul.mubr.f32.gmra.mrb[0].mxu0 %v313
        %v2513 = vpop.f32.mrb[0].mxu0
        %v2514 = vadd.f32 0.0, %v2513
        %v2515 = vpop.f32.mrb[0].mxu0
        %2516 = vmatprep.mubr.f32.mxu0 0.0
        %2517 = vmatmul.mubr.f32.gmra.mrb[0].mxu0 %v315
        %v2518 = vpop.f32.mrb[0].mxu0
        %v2519 = vadd.f32 0.0, %v2518
        %v2520 = vpop.f32.mrb[0].mxu0
        %2521 = vmatprep.mubr.f32.mxu0 0.0
        %2522 = vmatmul.mubr.f32.gmra.mrb[0].mxu0 %v318
        %v2523 = vpop.f32.mrb[0].mxu0
        %v2524 = vadd.f32 0.0, %v2523
        %v2525 = vpop.f32.mrb[0].mxu0
        %2526 = vmatprep.mubr.f32.mxu0 0.0
        %2527 = vmatmul.mubr.f32.gmra.mrb[0].mxu0 %v320
        %v2528 = vpop.f32.mrb[0].mxu0
        %v2529 = vadd.f32 0.0, %v2528
        %v2530 = vpop.f32.mrb[0].mxu0
        %2531 = vmatprep.mubr.f32.mxu0 0.0
        %2532 = vmatmul.mubr.f32.gmra.mrb[0].mxu0 %v323
        %v2533 = vpop.f32.mrb[0].mxu0
        %v2534 = vadd.f32 0.0, %v2533
        %v2535 = vpop.f32.mrb[0].mxu0
        %2536 = vmatprep.mubr.f32.mxu0 0.0
        %2537 = vmatmul.mubr.f32.gmra.mrb[0].mxu0 %v325
        %v2538 = vpop.f32.mrb[0].mxu0
        %v2539 = vadd.f32 0.0, %v2538
        %v2540 = vpop.f32.mrb[0].mxu0
        %2541 = vmatprep.mubr.f32.mxu0 0.0
        %2542 = vmatmul.mubr.f32.gmra.mrb[0].mxu0 %v328
        %v2543 = vpop.f32.mrb[0].mxu0
        %v2544 = vadd.f32 0.0, %v2543
        %v2545 = vpop.f32.mrb[0].mxu0
        %2546 = vmatprep.mubr.f32.mxu0 0.0
        %2547 = vmatmul.mubr.f32.gmra.mrb[0].mxu0 %v330
        %v2548 = vpop.f32.mrb[0].mxu0
        %v2549 = vadd.f32 0.0, %v2548
        %v2550 = vpop.f32.mrb[0].mxu0
        %2551 = vmatprep.mubr.f32.mxu0 0.0
        %2552 = vmatmul.mubr.f32.gmra.mrb[0].mxu0 %v333
        %v2553 = vpop.f32.mrb[0].mxu0
        %v2554 = vadd.f32 0.0, %v2553
        %v2555 = vpop.f32.mrb[0].mxu0
        %2556 = vmatprep.mubr.f32.mxu0 0.0
        %2557 = vmatmul.mubr.f32.gmra.mrb[0].mxu0 %v335
        %v2558 = vpop.f32.mrb[0].mxu0
        %v2559 = vadd.f32 0.0, %v2558
        %v2560 = vpop.f32.mrb[0].mxu0
        %2561 = vmatprep.mubr.f32.mxu0 0.0
        %2562 = vmatmul.mubr.f32.gmra.mrb[0].mxu0 %v338
        %v2563 = vpop.f32.mrb[0].mxu0
        %v2564 = vadd.f32 0.0, %v2563
        %v2565 = vpop.f32.mrb[0].mxu0
        %2566 = vmatprep.mubr.f32.mxu0 0.0
        %2567 = vmatmul.mubr.f32.gmra.mrb[0].mxu0 %v340
        %v2568 = vpop.f32.mrb[0].mxu0
        %v2569 = vadd.f32 0.0, %v2568
        %v2570 = vpop.f32.mrb[0].mxu0
        %2571 = vmatprep.mubr.f32.mxu0 0.0
        %2572 = vmatmul.mubr.f32.gmra.mrb[0].mxu0 %v1506
        %v2573 = vpop.f32.mrb[0].mxu0
        %v2574 = vadd.f32 0.0, %v2573
        %v2575 = vpop.f32.mrb[0].mxu0
        %2576 = vmatprep.mubr.f32.mxu0 0.0
        %2577 = vmatmul.mubr.f32.gmra.mrb[0].mxu0 %v1508
        %v2578 = vpop.f32.mrb[0].mxu0
        %v2579 = vadd.f32 0.0, %v2578
        %v2580 = vpop.f32.mrb[0].mxu0
        %2581 = vmatprep.mubr.f32.mxu0 0.0
        %2582 = vmatmul.mubr.f32.gmra.mrb[0].mxu0 %v2345
        %v2583 = vpop.f32.mrb[0].mxu0
        %v2584 = vadd.f32 0.0, %v2583
        %v2585 = vpop.f32.mrb[0].mxu0
        %2586 = vmatprep.mubr.f32.mxu0 0.0
        %2587 = vmatmul.mubr.f32.gmra.mrb[0].mxu0 %v2347
        %v2588 = vpop.f32.mrb[0].mxu0
        %v2589 = vadd.f32 0.0, %v2588
        %v2590 = vpop.f32.mrb[0].mxu0
        %2591 = vdwg.mxu0
        %v2592 = vadd.f32 %v2308, %v2434
        %v2593 = vadd.f32 %v2309, %v2439
        %v2594 = vadd.f32 %v2310, %v2444
        %v2595 = vadd.f32 %v2311, %v2449
        %v2596 = vadd.f32 %v2312, %v2454
        %v2597 = vadd.f32 %v2313, %v2459
        %v2598 = vadd.f32 %v2314, %v2464
        %v2599 = vadd.f32 %v2315, %v2469
        %v2600 = vadd.f32 %v2316, %v2474
        %v2601 = vadd.f32 %v2317, %v2479
        %v2602 = vadd.f32 %v2318, %v2484
        %v2603 = vadd.f32 %v2319, %v2489
        %v2604 = vadd.f32 %v2320, %v2494
        %v2605 = vadd.f32 %v2321, %v2499
        %v2606 = vadd.f32 %v2322, %v2504
        %v2607 = vadd.f32 %v2323, %v2509
        %v2608 = vadd.f32 %v2324, %v2514
        %v2609 = vadd.f32 %v2325, %v2519
        %v2610 = vadd.f32 %v2326, %v2524
        %v2611 = vadd.f32 %v2327, %v2529
        %v2612 = vadd.f32 %v2328, %v2534
        %v2613 = vadd.f32 %v2329, %v2539
        %v2614 = vadd.f32 %v2330, %v2544
        %v2615 = vadd.f32 %v2331, %v2549
        %v2616 = vadd.f32 %v2332, %v2554
        %v2617 = vadd.f32 %v2333, %v2559
        %v2618 = vadd.f32 %v2334, %v2564
        %v2619 = vadd.f32 %v2335, %v2569
        %v2620 = vadd.f32 %v2336, %v2574
        %v2621 = vadd.f32 %v2337, %v2579
        %v2622 = vadd.f32 %v2338, %v2584
        %v2623 = vadd.f32 %v2339, %v2589
        %v2624 = vrot.slane %v193, 2
        %v2625 = vrot.slane %v194, 2
        %v2626 = vsel %vm840, %v2624, %v2625
        %v2627 = vrot.slane %v195, 2
        %v2628 = vsel %vm840, %v2625, %v2627
        %s2631 = scalar_lea.vmem %s1, 1024
        %v2632 = vld [vmem:[%s2631] sm:$0xff]
        %v2633 = vld [vmem:[%s2631 + $0x8] sm:$0xff]
        %v2634 = vld [vmem:[%s2631 + $0x10] sm:$0xff]
        %v2635 = vld [vmem:[%s2631 + $0x18] sm:$0xff]
        %v2636 = vld [vmem:[%s2631 + $0x20] sm:$0xff]
        %v2637 = vld [vmem:[%s2631 + $0x28] sm:$0xff]
        %v2638 = vld [vmem:[%s2631 + $0x30] sm:$0xff]
        %v2639 = vld [vmem:[%s2631 + $0x38] sm:$0xff]
        %v2640 = vld [vmem:[%s2631 + $0x40] sm:$0xff]
        %v2641 = vld [vmem:[%s2631 + $0x48] sm:$0xff]
        %v2642 = vld [vmem:[%s2631 + $0x50] sm:$0xff]
        %v2643 = vld [vmem:[%s2631 + $0x58] sm:$0xff]
        %v2644 = vld [vmem:[%s2631 + $0x60] sm:$0xff]
        %v2645 = vld [vmem:[%s2631 + $0x68] sm:$0xff]
        %v2646 = vld [vmem:[%s2631 + $0x70] sm:$0xff]
        %v2647 = vld [vmem:[%s2631 + $0x78] sm:$0xff]
        %2648 = vmatprep.subr.mxu0 0.0
        %2649 = vmatpush1.msra.mxu0 %v2632
        %2650 = vmatprep.subr.mxu0 0.0
        %2651 = vmatpush1.msra.mxu0 %v2633
        %2652 = vmatprep.subr.mxu0 0.0
        %2653 = vmatpush1.msra.mxu0 %v2634
        %2654 = vmatprep.subr.mxu0 0.0
        %2655 = vmatpush1.msra.mxu0 %v2635
        %2656 = vmatprep.subr.mxu0 0.0
        %2657 = vmatpush1.msra.mxu0 %v2636
        %2658 = vmatprep.subr.mxu0 0.0
        %2659 = vmatpush1.msra.mxu0 %v2637
        %2660 = vmatprep.subr.mxu0 0.0
        %2661 = vmatpush1.msra.mxu0 %v2638
        %2662 = vmatprep.subr.mxu0 0.0
        %2663 = vmatpush1.msra.mxu0 %v2639
        %2664 = vmatprep.subr.mxu0 0.0
        %2665 = vmatpush1.msra.mxu0 %v2640
        %2666 = vmatprep.subr.mxu0 0.0
        %2667 = vmatpush1.msra.mxu0 %v2641
        %2668 = vmatprep.subr.mxu0 0.0
        %2669 = vmatpush1.msra.mxu0 %v2642
        %2670 = vmatprep.subr.mxu0 0.0
        %2671 = vmatpush1.msra.mxu0 %v2643
        %2672 = vmatprep.subr.mxu0 0.0
        %2673 = vmatpush1.msra.mxu0 %v2644
        %2674 = vmatprep.subr.mxu0 0.0
        %2675 = vmatpush1.msra.mxu0 %v2645
        %2676 = vmatprep.subr.mxu0 0.0
        %2677 = vmatpush1.msra.mxu0 %v2646
        %2678 = vmatprep.subr.mxu0 0.0
        %2679 = vmatpush1.msra.mxu0 %v2647
        %2680 = vmatprep.subr.mxu0 0.0
        %2681 = vmatpush1.msra.mxu0 0.0
        %2682 = vmatprep.subr.mxu0 0.0
        %2683 = vmatpush1.msra.mxu0 0.0
        %2684 = vmatprep.subr.mxu0 0.0
        %2685 = vmatpush1.msra.mxu0 0.0
        %2686 = vmatprep.subr.mxu0 0.0
        %2687 = vmatpush1.msra.mxu0 0.0
        %2688 = vmatprep.subr.mxu0 0.0
        %2689 = vmatpush1.msra.mxu0 0.0
        %2690 = vmatprep.subr.mxu0 0.0
        %2691 = vmatpush1.msra.mxu0 0.0
        %2692 = vmatprep.subr.mxu0 0.0
        %2693 = vmatpush1.msra.mxu0 0.0
        %2694 = vmatprep.subr.mxu0 0.0
        %2695 = vmatpush1.msra.mxu0 0.0
        %2696 = vmatprep.subr.mxu0 0.0
        %2697 = vmatpush1.msra.mxu0 0.0
        %2698 = vmatprep.subr.mxu0 0.0
        %2699 = vmatpush1.msra.mxu0 0.0
        %2700 = vmatprep.subr.mxu0 0.0
        %2701 = vmatpush1.msra.mxu0 0.0
        %2702 = vmatprep.subr.mxu0 0.0
        %2703 = vmatpush1.msra.mxu0 0.0
        %2704 = vmatprep.subr.mxu0 0.0
        %2705 = vmatpush1.msra.mxu0 0.0
        %2706 = vmatprep.subr.mxu0 0.0
        %2707 = vmatpush1.msra.mxu0 0.0
        %2708 = vmatprep.subr.mxu0 0.0
        %2709 = vmatpush1.msra.mxu0 0.0
        %2710 = vmatprep.subr.mxu0 0.0
        %2711 = vmatpush1.msra.mxu0 0.0
        %2712 = vmatprep.mubr.f32.mxu0 0.0
        %2713 = vmatmul.mubr.f32.gmra.mrb[0].mxu0 %v853
        %v2714 = vpop.f32.mrb[0].mxu0
        %v2715 = vadd.f32 0.0, %v2714
        %v2716 = vpop.f32.mrb[0].mxu0
        %2717 = vmatprep.mubr.f32.mxu0 0.0
        %2718 = vmatmul.mubr.f32.gmra.mrb[0].mxu0 %v855
        %v2719 = vpop.f32.mrb[0].mxu0
        %v2720 = vadd.f32 0.0, %v2719
        %v2721 = vpop.f32.mrb[0].mxu0
        %2722 = vmatprep.mubr.f32.mxu0 0.0
        %2723 = vmatmul.mubr.f32.gmra.mrb[0].mxu0 %v858
        %v2724 = vpop.f32.mrb[0].mxu0
        %v2725 = vadd.f32 0.0, %v2724
        %v2726 = vpop.f32.mrb[0].mxu0
        %2727 = vmatprep.mubr.f32.mxu0 0.0
        %2728 = vmatmul.mubr.f32.gmra.mrb[0].mxu0 %v860
        %v2729 = vpop.f32.mrb[0].mxu0
        %v2730 = vadd.f32 0.0, %v2729
        %v2731 = vpop.f32.mrb[0].mxu0
        %2732 = vmatprep.mubr.f32.mxu0 0.0
        %2733 = vmatmul.mubr.f32.gmra.mrb[0].mxu0 %v863
        %v2734 = vpop.f32.mrb[0].mxu0
        %v2735 = vadd.f32 0.0, %v2734
        %v2736 = vpop.f32.mrb[0].mxu0
        %2737 = vmatprep.mubr.f32.mxu0 0.0
        %2738 = vmatmul.mubr.f32.gmra.mrb[0].mxu0 %v865
        %v2739 = vpop.f32.mrb[0].mxu0
        %v2740 = vadd.f32 0.0, %v2739
        %v2741 = vpop.f32.mrb[0].mxu0
        %2742 = vmatprep.mubr.f32.mxu0 0.0
        %2743 = vmatmul.mubr.f32.gmra.mrb[0].mxu0 %v868
        %v2744 = vpop.f32.mrb[0].mxu0
        %v2745 = vadd.f32 0.0, %v2744
        %v2746 = vpop.f32.mrb[0].mxu0
        %2747 = vmatprep.mubr.f32.mxu0 0.0
        %2748 = vmatmul.mubr.f32.gmra.mrb[0].mxu0 %v870
        %v2749 = vpop.f32.mrb[0].mxu0
        %v2750 = vadd.f32 0.0, %v2749
        %v2751 = vpop.f32.mrb[0].mxu0
        %2752 = vmatprep.mubr.f32.mxu0 0.0
        %2753 = vmatmul.mubr.f32.gmra.mrb[0].mxu0 %v873
        %v2754 = vpop.f32.mrb[0].mxu0
        %v2755 = vadd.f32 0.0, %v2754
        %v2756 = vpop.f32.mrb[0].mxu0
        %2757 = vmatprep.mubr.f32.mxu0 0.0
        %2758 = vmatmul.mubr.f32.gmra.mrb[0].mxu0 %v875
        %v2759 = vpop.f32.mrb[0].mxu0
        %v2760 = vadd.f32 0.0, %v2759
        %v2761 = vpop.f32.mrb[0].mxu0
        %2762 = vmatprep.mubr.f32.mxu0 0.0
        %2763 = vmatmul.mubr.f32.gmra.mrb[0].mxu0 %v878
        %v2764 = vpop.f32.mrb[0].mxu0
        %v2765 = vadd.f32 0.0, %v2764
        %v2766 = vpop.f32.mrb[0].mxu0
        %2767 = vmatprep.mubr.f32.mxu0 0.0
        %2768 = vmatmul.mubr.f32.gmra.mrb[0].mxu0 %v880
        %v2769 = vpop.f32.mrb[0].mxu0
        %v2770 = vadd.f32 0.0, %v2769
        %v2771 = vpop.f32.mrb[0].mxu0
        %2772 = vmatprep.mubr.f32.mxu0 0.0
        %2773 = vmatmul.mubr.f32.gmra.mrb[0].mxu0 %v883
        %v2774 = vpop.f32.mrb[0].mxu0
        %v2775 = vadd.f32 0.0, %v2774
        %v2776 = vpop.f32.mrb[0].mxu0
        %2777 = vmatprep.mubr.f32.mxu0 0.0
        %2778 = vmatmul.mubr.f32.gmra.mrb[0].mxu0 %v885
        %v2779 = vpop.f32.mrb[0].mxu0
        %v2780 = vadd.f32 0.0, %v2779
        %v2781 = vpop.f32.mrb[0].mxu0
        %2782 = vmatprep.mubr.f32.mxu0 0.0
        %2783 = vmatmul.mubr.f32.gmra.mrb[0].mxu0 %v888
        %v2784 = vpop.f32.mrb[0].mxu0
        %v2785 = vadd.f32 0.0, %v2784
        %v2786 = vpop.f32.mrb[0].mxu0
        %2787 = vmatprep.mubr.f32.mxu0 0.0
        %2788 = vmatmul.mubr.f32.gmra.mrb[0].mxu0 %v890
        %v2789 = vpop.f32.mrb[0].mxu0
        %v2790 = vadd.f32 0.0, %v2789
        %v2791 = vpop.f32.mrb[0].mxu0
        %2792 = vmatprep.mubr.f32.mxu0 0.0
        %2793 = vmatmul.mubr.f32.gmra.mrb[0].mxu0 %v893
        %v2794 = vpop.f32.mrb[0].mxu0
        %v2795 = vadd.f32 0.0, %v2794
        %v2796 = vpop.f32.mrb[0].mxu0
        %2797 = vmatprep.mubr.f32.mxu0 0.0
        %2798 = vmatmul.mubr.f32.gmra.mrb[0].mxu0 %v895
        %v2799 = vpop.f32.mrb[0].mxu0
        %v2800 = vadd.f32 0.0, %v2799
        %v2801 = vpop.f32.mrb[0].mxu0
        %2802 = vmatprep.mubr.f32.mxu0 0.0
        %2803 = vmatmul.mubr.f32.gmra.mrb[0].mxu0 %v898
        %v2804 = vpop.f32.mrb[0].mxu0
        %v2805 = vadd.f32 0.0, %v2804
        %v2806 = vpop.f32.mrb[0].mxu0
        %2807 = vmatprep.mubr.f32.mxu0 0.0
        %2808 = vmatmul.mubr.f32.gmra.mrb[0].mxu0 %v900
        %v2809 = vpop.f32.mrb[0].mxu0
        %v2810 = vadd.f32 0.0, %v2809
        %v2811 = vpop.f32.mrb[0].mxu0
        %2812 = vmatprep.mubr.f32.mxu0 0.0
        %2813 = vmatmul.mubr.f32.gmra.mrb[0].mxu0 %v903
        %v2814 = vpop.f32.mrb[0].mxu0
        %v2815 = vadd.f32 0.0, %v2814
        %v2816 = vpop.f32.mrb[0].mxu0
        %2817 = vmatprep.mubr.f32.mxu0 0.0
        %2818 = vmatmul.mubr.f32.gmra.mrb[0].mxu0 %v905
        %v2819 = vpop.f32.mrb[0].mxu0
        %v2820 = vadd.f32 0.0, %v2819
        %v2821 = vpop.f32.mrb[0].mxu0
        %2822 = vmatprep.mubr.f32.mxu0 0.0
        %2823 = vmatmul.mubr.f32.gmra.mrb[0].mxu0 %v908
        %v2824 = vpop.f32.mrb[0].mxu0
        %v2825 = vadd.f32 0.0, %v2824
        %v2826 = vpop.f32.mrb[0].mxu0
        %2827 = vmatprep.mubr.f32.mxu0 0.0
        %2828 = vmatmul.mubr.f32.gmra.mrb[0].mxu0 %v910
        %v2829 = vpop.f32.mrb[0].mxu0
        %v2830 = vadd.f32 0.0, %v2829
        %v2831 = vpop.f32.mrb[0].mxu0
        %2832 = vmatprep.mubr.f32.mxu0 0.0
        %2833 = vmatmul.mubr.f32.gmra.mrb[0].mxu0 %v913
        %v2834 = vpop.f32.mrb[0].mxu0
        %v2835 = vadd.f32 0.0, %v2834
        %v2836 = vpop.f32.mrb[0].mxu0
        %2837 = vmatprep.mubr.f32.mxu0 0.0
        %2838 = vmatmul.mubr.f32.gmra.mrb[0].mxu0 %v915
        %v2839 = vpop.f32.mrb[0].mxu0
        %v2840 = vadd.f32 0.0, %v2839
        %v2841 = vpop.f32.mrb[0].mxu0
        %2842 = vmatprep.mubr.f32.mxu0 0.0
        %2843 = vmatmul.mubr.f32.gmra.mrb[0].mxu0 %v918
        %v2844 = vpop.f32.mrb[0].mxu0
        %v2845 = vadd.f32 0.0, %v2844
        %v2846 = vpop.f32.mrb[0].mxu0
        %2847 = vmatprep.mubr.f32.mxu0 0.0
        %2848 = vmatmul.mubr.f32.gmra.mrb[0].mxu0 %v920
        %v2849 = vpop.f32.mrb[0].mxu0
        %v2850 = vadd.f32 0.0, %v2849
        %v2851 = vpop.f32.mrb[0].mxu0
        %2852 = vmatprep.mubr.f32.mxu0 0.0
        %2853 = vmatmul.mubr.f32.gmra.mrb[0].mxu0 %v1787
        %v2854 = vpop.f32.mrb[0].mxu0
        %v2855 = vadd.f32 0.0, %v2854
        %v2856 = vpop.f32.mrb[0].mxu0
        %2857 = vmatprep.mubr.f32.mxu0 0.0
        %2858 = vmatmul.mubr.f32.gmra.mrb[0].mxu0 %v1789
        %v2859 = vpop.f32.mrb[0].mxu0
        %v2860 = vadd.f32 0.0, %v2859
        %v2861 = vpop.f32.mrb[0].mxu0
        %2862 = vmatprep.mubr.f32.mxu0 0.0
        %2863 = vmatmul.mubr.f32.gmra.mrb[0].mxu0 %v2626
        %v2864 = vpop.f32.mrb[0].mxu0
        %v2865 = vadd.f32 0.0, %v2864
        %v2866 = vpop.f32.mrb[0].mxu0
        %2867 = vmatprep.mubr.f32.mxu0 0.0
        %2868 = vmatmul.mubr.f32.gmra.mrb[0].mxu0 %v2628
        %v2869 = vpop.f32.mrb[0].mxu0
        %v2870 = vadd.f32 0.0, %v2869
        %v2871 = vpop.f32.mrb[0].mxu0
        %2872 = vdwg.mxu0
        %v2873 = vadd.f32 %v2592, %v2715
        %v2874 = vadd.f32 %v2593, %v2720
        %v2875 = vadd.f32 %v2594, %v2725
        %v2876 = vadd.f32 %v2595, %v2730
        %v2877 = vadd.f32 %v2596, %v2735
        %v2878 = vadd.f32 %v2597, %v2740
        %v2879 = vadd.f32 %v2598, %v2745
        %v2880 = vadd.f32 %v2599, %v2750
        %v2881 = vadd.f32 %v2600, %v2755
        %v2882 = vadd.f32 %v2601, %v2760
        %v2883 = vadd.f32 %v2602, %v2765
        %v2884 = vadd.f32 %v2603, %v2770
        %v2885 = vadd.f32 %v2604, %v2775
        %v2886 = vadd.f32 %v2605, %v2780
        %v2887 = vadd.f32 %v2606, %v2785
        %v2888 = vadd.f32 %v2607, %v2790
        %v2889 = vadd.f32 %v2608, %v2795
        %v2890 = vadd.f32 %v2609, %v2800
        %v2891 = vadd.f32 %v2610, %v2805
        %v2892 = vadd.f32 %v2611, %v2810
        %v2893 = vadd.f32 %v2612, %v2815
        %v2894 = vadd.f32 %v2613, %v2820
        %v2895 = vadd.f32 %v2614, %v2825
        %v2896 = vadd.f32 %v2615, %v2830
        %v2897 = vadd.f32 %v2616, %v2835
        %v2898 = vadd.f32 %v2617, %v2840
        %v2899 = vadd.f32 %v2618, %v2845
        %v2900 = vadd.f32 %v2619, %v2850
        %v2901 = vadd.f32 %v2620, %v2855
        %v2902 = vadd.f32 %v2621, %v2860
        %v2903 = vadd.f32 %v2622, %v2865
        %v2904 = vadd.f32 %v2623, %v2870
        %2905 = vst [vmem:[%s136] sm:$0xff] %v2873
        %2906 = vst [vmem:[%s136 + $0x8] sm:$0xff] %v2874
        %2907 = vst [vmem:[%s136 + $0x10] sm:$0xff] %v2875
        %2908 = vst [vmem:[%s136 + $0x18] sm:$0xff] %v2876
        %2909 = vst [vmem:[%s136 + $0x20] sm:$0xff] %v2877
        %2910 = vst [vmem:[%s136 + $0x28] sm:$0xff] %v2878
        %2911 = vst [vmem:[%s136 + $0x30] sm:$0xff] %v2879
        %2912 = vst [vmem:[%s136 + $0x38] sm:$0xff] %v2880
        %2913 = vst [vmem:[%s136 + $0x40] sm:$0xff] %v2881
        %2914 = vst [vmem:[%s136 + $0x48] sm:$0xff] %v2882
        %2915 = vst [vmem:[%s136 + $0x50] sm:$0xff] %v2883
        %2916 = vst [vmem:[%s136 + $0x58] sm:$0xff] %v2884
        %2917 = vst [vmem:[%s136 + $0x60] sm:$0xff] %v2885
        %2918 = vst [vmem:[%s136 + $0x68] sm:$0xff] %v2886
        %2919 = vst [vmem:[%s136 + $0x70] sm:$0xff] %v2887
        %2920 = vst [vmem:[%s136 + $0x78] sm:$0xff] %v2888
        %2921 = vst [vmem:[%s136 + $0x80] sm:$0xff] %v2889
        %2922 = vst [vmem:[%s136 + $0x88] sm:$0xff] %v2890
        %2923 = vst [vmem:[%s136 + $0x90] sm:$0xff] %v2891
        %2924 = vst [vmem:[%s136 + $0x98] sm:$0xff] %v2892
        %2925 = vst [vmem:[%s136 + $0xa0] sm:$0xff] %v2893
        %2926 = vst [vmem:[%s136 + $0xa8] sm:$0xff] %v2894
        %2927 = vst [vmem:[%s136 + $0xb0] sm:$0xff] %v2895
        %2928 = vst [vmem:[%s136 + $0xb8] sm:$0xff] %v2896
        %2929 = vst [vmem:[%s136 + $0xc0] sm:$0xff] %v2897
        %2930 = vst [vmem:[%s136 + $0xc8] sm:$0xff] %v2898
        %2931 = vst [vmem:[%s136 + $0xd0] sm:$0xff] %v2899
        %2932 = vst [vmem:[%s136 + $0xd8] sm:$0xff] %v2900
        %2933 = vst [vmem:[%s136 + $0xe0] sm:$0xff] %v2901
        %2934 = vst [vmem:[%s136 + $0xe8] sm:$0xff] %v2902
        %2935 = vst [vmem:[%s136 + $0xf0] sm:$0xff] %v2903
        %2936 = vst [vmem:[%s136 + $0xf8] sm:$0xff] %v2904
        %s2937 = sand.u32 %s71, 1
        %s2938 = scalar_lea.sflag [#allocation3], %s2937
        %s2939 = sand.u32 %s71, 1
        %s2940 = smul.addr %s2939, 256
        %s2941 = scalar_lea.vmem [#allocation2], %s2940
        // Predicated region
        $region29: #{tpu_custom_call.1} parent=27 // pred_check
          %p2942 = pneg %p81
        $region30: #{tpu_custom_call.1} parent=27 // pred_check_branch
          %2944 = sbr.rel (%p2942) target = $region32
        $region31: #{tpu_custom_call.1} parent=27 // pred_region
          %s2946 = ssub.s32 4096, 4096
          %2947 = vsyncadd %s2938, %s2946
          %s2948 = smul.addr %s16, 32
          %s2949 = smul.addr %s2948, 128
          %s2950 = scalar_lea.hbm %s2, %s2949
          %s2951 = sshll.u32 %s2941, 4
          %s2952 = int_to_ptr.vmem [resolvable:$true] %s2951
          %2957 = dma.vmem_to_hbm [thread:$0]  %s2952, 4096, %s2950, %s2938, 128, 128, 8
        $region32: #{tpu_custom_call.1} parent=27 // pred_fallthru
          _
      $region28: #{tpu_custom_call.1} parent=5 // pred_fallthru
        _
      %p2958 = scmp.le.s32.totalorder 2, %s11
      // Predicated region
      $region33: #{tpu_custom_call.1} parent=5 // pred_check
        %p2959 = pneg %p2958
      $region34: #{tpu_custom_call.1} parent=5 // pred_check_branch
        %2961 = sbr.rel (%p2959) target = $region36
      $region35: #{tpu_custom_call.1} parent=5 // pred_region
        %s2962 = ssub.s32 %s11, 2
        // Predicated region
        $region37: #{tpu_custom_call.1} parent=35 // pred_check
          %p2963 = pneg %p87
        $region38: #{tpu_custom_call.1} parent=35 // pred_check_branch
          %2965 = sbr.rel (%p2963) target = $region40
        $region39: #{tpu_custom_call.1} parent=35 // pred_region
          %s2966 = sand.u32 %s72, 1
          %s2967 = scalar_lea.sflag [#allocation3], %s2966
          %s2968 = sand.u32 %s72, 1
          %s2969 = smul.addr %s2968, 256
          %s2970 = scalar_lea.vmem [#allocation2], %s2969
          %2971 = dma.done %s2967, 4096
        $region40: #{tpu_custom_call.1} parent=35 // pred_fallthru
          _
      $region36: #{tpu_custom_call.1} parent=5 // pred_fallthru
        _
    $region6: #{tpu_custom_call.1} parent=1 // loop_footer
      %s15 = sadd.s32 1, %s11
    $region7: #{tpu_custom_call.1} parent=1 // loop_footer_branch
      %10 = sbr.rel target = $region3
    $region8: #{tpu_custom_call.1} parent=1 // loop_exit
      _
    %2972 = vsyncpa [#allocation3], 1
    %s2973 = scalar_lea.sflag [#allocation3], 1
    %2974 = vsyncpa %s2973, 1

</llo_original>
